<compile_context>
chip_gen: v5e
topology: v5e:2x2
jax: 0.10.0
libtpu: 0.0.40
codegen_flags: <defaults>
</compile_context>

<pallas_src>
import jax
import jax.numpy as jnp
from jax import lax
from jax.experimental import pallas as pl
from jax.experimental.pallas import tpu as pltpu

EPS = 1e-5


def _zero_border(pad_ref):
    """Zero only the 1-pixel border strips of a (Bblk, Hp+2, Wp+2, C) scratch.

    The interior is fully overwritten every grid step, so only the border
    needs (re)zeroing; done every step so per-core scratch stays correct when
    the "parallel" grid axis is split across v7x's two TensorCores.
    """
    Bblk, Hpad, Wpad, C = pad_ref.shape
    row = jnp.zeros((Bblk, 1, Wpad, C), pad_ref.dtype)
    col = jnp.zeros((Bblk, Hpad, 1, C), pad_ref.dtype)
    pad_ref[:, 0:1, :, :] = row
    pad_ref[:, Hpad - 1:Hpad, :, :] = row
    pad_ref[:, :, 0:1, :] = col
    pad_ref[:, :, Wpad - 1:Wpad, :] = col


def _conv3x3_acc(pad_ref, w_ref, Hp, Wp, M, C):
    """9 accumulating per-tap MXU dots: (M, C) x (C, Cout), f32 accumulate.

    Reads the shifted tap windows directly from the bf16 padded scratch; no
    im2col patch buffer, no per-tap casts (operands are already bf16).
    """
    acc = None
    for tap in range(9):
        dy, dx = divmod(tap, 3)
        sl = pad_ref[:, dy:dy + Hp, dx:dx + Wp, :].reshape(M, C)      # bf16
        d = jnp.dot(sl, w_ref[tap], preferred_element_type=jnp.float32)
        acc = d if acc is None else acc + d
    return acc                                                        # (M, Cout) f32


def down_kernel(x_ref, w1_ref, b1_ref, w2_ref, b2_ref, o_ref,
                pad1_ref, pad2_ref):
    # x_ref block: (4, Bblk, Hp, Wp, Cin) bf16; leading 4 = 2x2 pool window.
    _, Bblk, Hp, Wp, Cin = x_ref.shape
    Cout = o_ref.shape[2]
    HWp = Hp * Wp
    M = Bblk * HWp

    # ---- MaxPool2d(2): 3 elementwise VPU maxima over the window taps ------
    pooled = jnp.maximum(jnp.maximum(x_ref[0], x_ref[1]),
                         jnp.maximum(x_ref[2], x_ref[3]))   # (Bblk,Hp,Wp,Cin) bf16

    # ---- conv1 (3x3, pad=1, BN scale pre-folded into weights) -------------
    _zero_border(pad1_ref)
    pad1_ref[:, 1:Hp + 1, 1:Wp + 1, :] = pooled             # bf16, no cast

    acc1 = _conv3x3_acc(pad1_ref, w1_ref, Hp, Wp, M, Cin)   # (M, Cout) f32
    h = jnp.maximum(acc1 + b1_ref[...], 0.0)                # bias + ReLU

    # ---- conv2 (3x3, pad=1, BN scale pre-folded into weights) -------------
    _zero_border(pad2_ref)
    pad2_ref[:, 1:Hp + 1, 1:Wp + 1, :] = (
        h.reshape(Bblk, Hp, Wp, Cout).astype(jnp.bfloat16))  # single cast

    acc2 = _conv3x3_acc(pad2_ref, w2_ref, Hp, Wp, M, Cout)   # (M, Cout) f32
    y = jnp.maximum(acc2 + b2_ref[...], 0.0)                 # (M, Cout) f32

    # ---- lane-dense store: per-image (Cout, Hp*Wp) slabs -------------------
    # One small XLU transpose per image beats M/8 masked (8-of-128-lane)
    # stores; the wrapper then only needs free reshapes to get back to NCHW.
    y3 = y.reshape(Bblk, HWp, Cout)
    for b in range(Bblk):
        o_ref[0, b] = y3[b].T                                # (Cout, HWp)


def _vmem_need_bytes(Bblk, Hp, Wp, Cin, Cout):
    """Per-step VMEM footprint (BlockSpec double-buffers the I/O blocks)."""
    M = Bblk * Hp * Wp
    in_blk = 4 * M * Cin * 2                                    # bf16 input block
    out_blk = M * Cout * 4                                      # f32 output block
    pads = Bblk * (Hp + 2) * (Wp + 2) * (Cin + Cout) * 2        # bf16 pad scratch
    wts = (9 * Cin * Cout + 9 * Cout * Cout) * 2 + 2 * Cout * 4
    return 2 * (in_blk + out_blk + wts) + pads


def _pick_tiling(B, Hp, Wp, Cin, Cout):
    """Choose Bblk and a derived vmem_limit per TPU generation."""
    try:
        vmem_phys = pltpu.get_tpu_info().vmem_capacity_bytes
    except Exception:
        vmem_phys = 64 << 20            # assume the tightest (v7x per-TC) budget
    # Bigger blocks on 128 MiB parts (v5e/v6e), smaller on v7x's 64 MiB.
    target_m = 4096 if vmem_phys >= (96 << 20) else 2048
    scratch_cap = min(vmem_phys // 2, 48 << 20)

    # Keep grid >= 2 (both v7x TensorCores busy; pipeline has steps to overlap).
    min_grid = 2 if B >= 2 else 1
    bblk = 1
    for cand in range(1, B + 1):
        if B % cand:
            continue
        if B // cand < min_grid:
            continue
        if cand * Hp * Wp > max(Hp * Wp, target_m):
            continue
        if _vmem_need_bytes(cand, Hp, Wp, Cin, Cout) > scratch_cap:
            continue
        bblk = cand

    need = _vmem_need_bytes(bblk, Hp, Wp, Cin, Cout)
    limit = int(min(max(2 * need + (8 << 20), 16 << 20), 56 << 20))
    return bblk, limit


def down_pallas(x_nchw, params):
    (W1, bc1, g1, be1, m1, v1, W2, bc2, g2, be2, m2, v2) = params
    B, Cin, H, W = x_nchw.shape
    Hp, Wp = H // 2, W // 2
    HWp = Hp * Wp
    Cout = W1.shape[0]

    Bblk, vmem_limit = _pick_tiling(B, Hp, Wp, Cin, Cout)
    G = B // Bblk

    # ---- single fused input layout pass (one HBM read+write over x) -------
    # NCHW --(free bitcast reshape)--> (B,Cin,Hp,2,Wp,2) --(one transpose, with
    # the bf16 convert fused into the same copy)--> (2,2,B,Hp,Wp,Cin)
    # --(free reshape)--> (4, B, Hp, Wp, Cin): window axis leads so the
    # in-kernel pool is plain elementwise maxima (no strided loads/relayouts).
    xw = (jnp.transpose(x_nchw.reshape(B, Cin, Hp, 2, Wp, 2),
                        (3, 5, 0, 2, 4, 1))
          .reshape(4, B, Hp, Wp, Cin)
          .astype(jnp.bfloat16))

    # ---- eval-mode BatchNorm folded: scale into weights, rest into bias ---
    s1 = g1 / jnp.sqrt(v1 + EPS)
    b1 = (bc1 - m1) * s1 + be1
    s2 = g2 / jnp.sqrt(v2 + EPS)
    b2 = (bc2 - m2) * s2 + be2

    # torch (Cout, Cin, 3, 3) -> per-tap (9, Cin, Cout), BN-scaled, bf16
    # (MXU-native); accumulation stays f32 in-kernel.
    w1 = (jnp.transpose(W1, (2, 3, 1, 0)).reshape(9, Cin, Cout)
          * s1[None, None, :]).astype(jnp.bfloat16)
    w2 = (jnp.transpose(W2, (2, 3, 1, 0)).reshape(9, Cout, Cout)
          * s2[None, None, :]).astype(jnp.bfloat16)
    b1 = b1.reshape(1, Cout).astype(jnp.float32)
    b2 = b2.reshape(1, Cout).astype(jnp.float32)

    out = pl.pallas_call(
        down_kernel,
        out_shape=jax.ShapeDtypeStruct((G, Bblk, Cout, HWp), jnp.float32),
        grid=(G,),
        in_specs=[
            pl.BlockSpec((4, Bblk, Hp, Wp, Cin),
                         lambda g: (0, g, 0, 0, 0)),
            # Grid-invariant operands (constant index_map -> stay resident).
            pl.BlockSpec((9, Cin, Cout), lambda g: (0, 0, 0)),
            pl.BlockSpec((1, Cout), lambda g: (0, 0)),
            pl.BlockSpec((9, Cout, Cout), lambda g: (0, 0, 0)),
            pl.BlockSpec((1, Cout), lambda g: (0, 0)),
        ],
        out_specs=pl.BlockSpec((1, Bblk, Cout, HWp), lambda g: (g, 0, 0, 0)),
        scratch_shapes=[
            pltpu.VMEM((Bblk, Hp + 2, Wp + 2, Cin), jnp.bfloat16),   # pad1
            pltpu.VMEM((Bblk, Hp + 2, Wp + 2, Cout), jnp.bfloat16),  # pad2
        ],
        compiler_params=pltpu.CompilerParams(
            dimension_semantics=("parallel",),
            vmem_limit_bytes=vmem_limit),
    )(xw, w1, b1, w2, b2)

    # (G, Bblk, Cout, Hp*Wp) -> (B, Cout, Hp, Wp): contiguous merges/splits
    # only, so this is a free reshape (no XLA transpose pass on the output).
    return out.reshape(B, Cout, Hp, Wp)


def down_reference(x_nchw, params):
    """Pure-JAX (XLA, f32) reference of the same eval-mode Down block, NCHW."""
    (W1, bc1, g1, be1, m1, v1, W2, bc2, g2, be2, m2, v2) = params
    y = lax.reduce_window(x_nchw, -jnp.inf, lax.max,
                          (1, 1, 2, 2), (1, 1, 2, 2), "VALID")

    def conv_bn_relu(y, Wc, bc, g, be, m, v):
        y = lax.conv_general_dilated(
            y, Wc, window_strides=(1, 1), padding=((1, 1), (1, 1)),
            dimension_numbers=("NCHW", "OIHW", "NCHW"))
        y = y + bc[None, :, None, None]
        y = (y - m[None, :, None, None]) / jnp.sqrt(v + EPS)[None, :, None, None]
        y = y * g[None, :, None, None] + be[None, :, None, None]
        return jnp.maximum(y, 0.0)

    y = conv_bn_relu(y, W1, bc1, g1, be1, m1, v1)
    y = conv_bn_relu(y, W2, bc2, g2, be2, m2, v2)
    return y


def make_params(key, cin, cout):
    ks = jax.random.split(key, 4)
    W1 = jax.random.normal(ks[0], (cout, cin, 3, 3), jnp.float32) * 0.1
    bc1 = jax.random.normal(ks[1], (cout,), jnp.float32) * 0.1
    g1 = 1.0 + 0.1 * jnp.arange(cout, dtype=jnp.float32)
    be1 = 0.05 * jnp.arange(cout, dtype=jnp.float32)
    m1 = 0.02 * jnp.arange(cout, dtype=jnp.float32)
    v1 = 0.5 + 0.1 * jnp.arange(cout, dtype=jnp.float32)

    W2 = jax.random.normal(ks[2], (cout, cout, 3, 3), jnp.float32) * 0.1
    bc2 = jax.random.normal(ks[3], (cout,), jnp.float32) * 0.1
    g2 = 1.0 - 0.03 * jnp.arange(cout, dtype=jnp.float32)
    be2 = -0.02 * jnp.arange(cout, dtype=jnp.float32)
    m2 = 0.01 * jnp.arange(cout, dtype=jnp.float32)
    v2 = 0.8 + 0.05 * jnp.arange(cout, dtype=jnp.float32)
    return (W1, bc1, g1, be1, m1, v1, W2, bc2, g2, be2, m2, v2)


if __name__ == "__main__":
    B, Cin, H, W = 2, 4, 16, 16
    Cout = 8

    key = jax.random.PRNGKey(0)
    kx, kp = jax.random.split(key)
    x = jax.random.normal(kx, (B, Cin, H, W), jnp.float32)
    params = make_params(kp, Cin, Cout)

    out = jax.block_until_ready(down_pallas(x, params))
    ref = jax.block_until_ready(down_reference(x, params))

    assert out.shape == (B, Cout, H // 2, W // 2), out.shape
    # bf16 matmul operands (f32 accumulation) -> loosen tolerance vs f32 ref.
    max_err = float(jnp.max(jnp.abs(out - ref)))
    ref_max = float(jnp.max(jnp.abs(ref)))
    assert max_err <= 5e-2 * (1.0 + ref_max), \
        f"mismatch vs reference: {max_err} (ref max {ref_max})"
    print("KERNEL_OK")
</pallas_src>

<mosaic_0001>
module attributes {stable_mosaic.version = 11 : i64} {
  func.func @down_kernel(%arg0: i32, %arg1: memref<4x1x8x8x4xbf16, #tpu.memory_space<vmem>>, %arg2: memref<9x4x8xbf16, #tpu.memory_space<vmem>>, %arg3: memref<1x8xf32, #tpu.memory_space<vmem>>, %arg4: memref<9x8x8xbf16, #tpu.memory_space<vmem>>, %arg5: memref<1x8xf32, #tpu.memory_space<vmem>>, %arg6: memref<1x1x8x64xf32, #tpu.memory_space<vmem>>, %arg7: memref<1x10x10x4xbf16, #tpu.memory_space<vmem>>, %arg8: memref<1x10x10x8xbf16, #tpu.memory_space<vmem>>) attributes {dimension_semantics = [#tpu.dimension_semantics<parallel>], iteration_bounds = array<i64: 2>, scalar_prefetch = 0 : i64, scratch_operands = 2 : i64, tpu.core_type = #tpu.core_type<tc>, window_params = [{transform_indices = @transform_0, window_bounds = array<i64: 4, 1, 8, 8, 4>}, {pipeline_mode = #tpu.pipeline_mode<synchronous>, transform_indices = @transform_1, window_bounds = array<i64: 9, 4, 8>}, {pipeline_mode = #tpu.pipeline_mode<synchronous>, transform_indices = @transform_2, window_bounds = array<i64: 1, 8>}, {pipeline_mode = #tpu.pipeline_mode<synchronous>, transform_indices = @transform_3, window_bounds = array<i64: 9, 8, 8>}, {pipeline_mode = #tpu.pipeline_mode<synchronous>, transform_indices = @transform_4, window_bounds = array<i64: 1, 8>}, {transform_indices = @transform_5, window_bounds = array<i64: 1, 1, 8, 64>}]} {
    %c0 = arith.constant 0 : index
    %c0_0 = arith.constant 0 : index
    %c0_1 = arith.constant 0 : index
    %c0_2 = arith.constant 0 : index
    %c0_3 = arith.constant 0 : index
    %0 = vector.load %arg1[%c0, %c0_0, %c0_1, %c0_2, %c0_3] : memref<4x1x8x8x4xbf16, #tpu.memory_space<vmem>>, vector<1x1x8x8x4xbf16>
    %1 = vector.shape_cast %0 : vector<1x1x8x8x4xbf16> to vector<1x8x8x4xbf16>
    %c1 = arith.constant 1 : index
    %c0_4 = arith.constant 0 : index
    %c0_5 = arith.constant 0 : index
    %c0_6 = arith.constant 0 : index
    %c0_7 = arith.constant 0 : index
    %2 = vector.load %arg1[%c1, %c0_4, %c0_5, %c0_6, %c0_7] : memref<4x1x8x8x4xbf16, #tpu.memory_space<vmem>>, vector<1x1x8x8x4xbf16>
    %3 = vector.shape_cast %2 : vector<1x1x8x8x4xbf16> to vector<1x8x8x4xbf16>
    %4 = arith.maximumf %1, %3 : vector<1x8x8x4xbf16>
    %c2 = arith.constant 2 : index
    %c0_8 = arith.constant 0 : index
    %c0_9 = arith.constant 0 : index
    %c0_10 = arith.constant 0 : index
    %c0_11 = arith.constant 0 : index
    %5 = vector.load %arg1[%c2, %c0_8, %c0_9, %c0_10, %c0_11] : memref<4x1x8x8x4xbf16, #tpu.memory_space<vmem>>, vector<1x1x8x8x4xbf16>
    %6 = vector.shape_cast %5 : vector<1x1x8x8x4xbf16> to vector<1x8x8x4xbf16>
    %c3 = arith.constant 3 : index
    %c0_12 = arith.constant 0 : index
    %c0_13 = arith.constant 0 : index
    %c0_14 = arith.constant 0 : index
    %c0_15 = arith.constant 0 : index
    %7 = vector.load %arg1[%c3, %c0_12, %c0_13, %c0_14, %c0_15] : memref<4x1x8x8x4xbf16, #tpu.memory_space<vmem>>, vector<1x1x8x8x4xbf16>
    %8 = vector.shape_cast %7 : vector<1x1x8x8x4xbf16> to vector<1x8x8x4xbf16>
    %9 = arith.maximumf %6, %8 : vector<1x8x8x4xbf16>
    %10 = arith.maximumf %4, %9 : vector<1x8x8x4xbf16>
    %cst = arith.constant 0.000000e+00 : bf16
    %11 = vector.broadcast %cst : bf16 to vector<1x1x10x4xbf16>
    %cst_16 = arith.constant 0.000000e+00 : bf16
    %12 = vector.broadcast %cst_16 : bf16 to vector<1x10x1x4xbf16>
    %c0_17 = arith.constant 0 : index
    %c0_18 = arith.constant 0 : index
    %c0_19 = arith.constant 0 : index
    %c0_20 = arith.constant 0 : index
    %13 = vector.load %arg7[%c0_17, %c0_18, %c0_19, %c0_20] : memref<1x10x10x4xbf16, #tpu.memory_space<vmem>>, vector<1x1x10x4xbf16>
    tpu.vector_store %arg7[%c0_17, %c0_18, %c0_19, %c0_20], %11 {strides = array<i32>} : memref<1x10x10x4xbf16, #tpu.memory_space<vmem>>, vector<1x1x10x4xbf16>,
    %c0_21 = arith.constant 0 : index
    %c9 = arith.constant 9 : index
    %c0_22 = arith.constant 0 : index
    %c0_23 = arith.constant 0 : index
    %14 = vector.load %arg7[%c0_21, %c9, %c0_22, %c0_23] : memref<1x10x10x4xbf16, #tpu.memory_space<vmem>>, vector<1x1x10x4xbf16>
    tpu.vector_store %arg7[%c0_21, %c9, %c0_22, %c0_23], %11 {strides = array<i32>} : memref<1x10x10x4xbf16, #tpu.memory_space<vmem>>, vector<1x1x10x4xbf16>,
    %c0_24 = arith.constant 0 : index
    %c0_25 = arith.constant 0 : index
    %c0_26 = arith.constant 0 : index
    %c0_27 = arith.constant 0 : index
    %15 = vector.load %arg7[%c0_24, %c0_25, %c0_26, %c0_27] : memref<1x10x10x4xbf16, #tpu.memory_space<vmem>>, vector<1x10x1x4xbf16>
    tpu.vector_store %arg7[%c0_24, %c0_25, %c0_26, %c0_27], %12 {strides = array<i32>} : memref<1x10x10x4xbf16, #tpu.memory_space<vmem>>, vector<1x10x1x4xbf16>,
    %c0_28 = arith.constant 0 : index
    %c0_29 = arith.constant 0 : index
    %c9_30 = arith.constant 9 : index
    %c0_31 = arith.constant 0 : index
    %16 = vector.load %arg7[%c0_28, %c0_29, %c9_30, %c0_31] : memref<1x10x10x4xbf16, #tpu.memory_space<vmem>>, vector<1x10x1x4xbf16>
    tpu.vector_store %arg7[%c0_28, %c0_29, %c9_30, %c0_31], %12 {strides = array<i32>} : memref<1x10x10x4xbf16, #tpu.memory_space<vmem>>, vector<1x10x1x4xbf16>,
    %c0_32 = arith.constant 0 : index
    %c1_33 = arith.constant 1 : index
    %c1_34 = arith.constant 1 : index
    %c0_35 = arith.constant 0 : index
    %17 = vector.load %arg7[%c0_32, %c1_33, %c1_34, %c0_35] : memref<1x10x10x4xbf16, #tpu.memory_space<vmem>>, vector<1x8x8x4xbf16>
    tpu.vector_store %arg7[%c0_32, %c1_33, %c1_34, %c0_35], %10 {strides = array<i32>} : memref<1x10x10x4xbf16, #tpu.memory_space<vmem>>, vector<1x8x8x4xbf16>,
    %c0_36 = arith.constant 0 : index
    %c0_37 = arith.constant 0 : index
    %c0_38 = arith.constant 0 : index
    %c0_39 = arith.constant 0 : index
    %18 = vector.load %arg7[%c0_36, %c0_37, %c0_38, %c0_39] : memref<1x10x10x4xbf16, #tpu.memory_space<vmem>>, vector<1x8x8x4xbf16>
    %19 = vector.shape_cast %18 : vector<1x8x8x4xbf16> to vector<64x4xbf16>
    %c0_40 = arith.constant 0 : index
    %c0_41 = arith.constant 0 : index
    %c0_42 = arith.constant 0 : index
    %20 = vector.load %arg2[%c0_40, %c0_41, %c0_42] : memref<9x4x8xbf16, #tpu.memory_space<vmem>>, vector<1x4x8xbf16>
    %21 = vector.shape_cast %20 : vector<1x4x8xbf16> to vector<4x8xbf16>
    %cst_43 = arith.constant dense<0.000000e+00> : vector<64x8xf32>
    %22 = tpu.matmul %19, %21, %cst_43 {dimension_numbers = #tpu.dot_dimension_numbers<[1], [0], [0], [1], [0, 0, 1, 1], [], []>} : vector<64x4xbf16>, vector<4x8xbf16>, vector<64x8xf32> -> vector<64x8xf32>
    %c0_44 = arith.constant 0 : index
    %c0_45 = arith.constant 0 : index
    %c1_46 = arith.constant 1 : index
    %c0_47 = arith.constant 0 : index
    %23 = vector.load %arg7[%c0_44, %c0_45, %c1_46, %c0_47] : memref<1x10x10x4xbf16, #tpu.memory_space<vmem>>, vector<1x8x8x4xbf16>
    %24 = vector.shape_cast %23 : vector<1x8x8x4xbf16> to vector<64x4xbf16>
    %c1_48 = arith.constant 1 : index
    %c0_49 = arith.constant 0 : index
    %c0_50 = arith.constant 0 : index
    %25 = vector.load %arg2[%c1_48, %c0_49, %c0_50] : memref<9x4x8xbf16, #tpu.memory_space<vmem>>, vector<1x4x8xbf16>
    %26 = vector.shape_cast %25 : vector<1x4x8xbf16> to vector<4x8xbf16>
    %cst_51 = arith.constant dense<0.000000e+00> : vector<64x8xf32>
    %27 = tpu.matmul %24, %26, %cst_51 {dimension_numbers = #tpu.dot_dimension_numbers<[1], [0], [0], [1], [0, 0, 1, 1], [], []>} : vector<64x4xbf16>, vector<4x8xbf16>, vector<64x8xf32> -> vector<64x8xf32>
    %28 = arith.addf %22, %27 : vector<64x8xf32>
    %c0_52 = arith.constant 0 : index
    %c0_53 = arith.constant 0 : index
    %c2_54 = arith.constant 2 : index
    %c0_55 = arith.constant 0 : index
    %29 = vector.load %arg7[%c0_52, %c0_53, %c2_54, %c0_55] : memref<1x10x10x4xbf16, #tpu.memory_space<vmem>>, vector<1x8x8x4xbf16>
    %30 = vector.shape_cast %29 : vector<1x8x8x4xbf16> to vector<64x4xbf16>
    %c2_56 = arith.constant 2 : index
    %c0_57 = arith.constant 0 : index
    %c0_58 = arith.constant 0 : index
    %31 = vector.load %arg2[%c2_56, %c0_57, %c0_58] : memref<9x4x8xbf16, #tpu.memory_space<vmem>>, vector<1x4x8xbf16>
    %32 = vector.shape_cast %31 : vector<1x4x8xbf16> to vector<4x8xbf16>
    %cst_59 = arith.constant dense<0.000000e+00> : vector<64x8xf32>
    %33 = tpu.matmul %30, %32, %cst_59 {dimension_numbers = #tpu.dot_dimension_numbers<[1], [0], [0], [1], [0, 0, 1, 1], [], []>} : vector<64x4xbf16>, vector<4x8xbf16>, vector<64x8xf32> -> vector<64x8xf32>
    %34 = arith.addf %28, %33 : vector<64x8xf32>
    %c0_60 = arith.constant 0 : index
    %c1_61 = arith.constant 1 : index
    %c0_62 = arith.constant 0 : index
    %c0_63 = arith.constant 0 : index
    %35 = vector.load %arg7[%c0_60, %c1_61, %c0_62, %c0_63] : memref<1x10x10x4xbf16, #tpu.memory_space<vmem>>, vector<1x8x8x4xbf16>
    %36 = vector.shape_cast %35 : vector<1x8x8x4xbf16> to vector<64x4xbf16>
    %c3_64 = arith.constant 3 : index
    %c0_65 = arith.constant 0 : index
    %c0_66 = arith.constant 0 : index
    %37 = vector.load %arg2[%c3_64, %c0_65, %c0_66] : memref<9x4x8xbf16, #tpu.memory_space<vmem>>, vector<1x4x8xbf16>
    %38 = vector.shape_cast %37 : vector<1x4x8xbf16> to vector<4x8xbf16>
    %cst_67 = arith.constant dense<0.000000e+00> : vector<64x8xf32>
    %39 = tpu.matmul %36, %38, %cst_67 {dimension_numbers = #tpu.dot_dimension_numbers<[1], [0], [0], [1], [0, 0, 1, 1], [], []>} : vector<64x4xbf16>, vector<4x8xbf16>, vector<64x8xf32> -> vector<64x8xf32>
    %40 = arith.addf %34, %39 : vector<64x8xf32>
    %c0_68 = arith.constant 0 : index
    %c1_69 = arith.constant 1 : index
    %c1_70 = arith.constant 1 : index
    %c0_71 = arith.constant 0 : index
    %41 = vector.load %arg7[%c0_68, %c1_69, %c1_70, %c0_71] : memref<1x10x10x4xbf16, #tpu.memory_space<vmem>>, vector<1x8x8x4xbf16>
    %42 = vector.shape_cast %41 : vector<1x8x8x4xbf16> to vector<64x4xbf16>
    %c4 = arith.constant 4 : index
    %c0_72 = arith.constant 0 : index
    %c0_73 = arith.constant 0 : index
    %43 = vector.load %arg2[%c4, %c0_72, %c0_73] : memref<9x4x8xbf16, #tpu.memory_space<vmem>>, vector<1x4x8xbf16>
    %44 = vector.shape_cast %43 : vector<1x4x8xbf16> to vector<4x8xbf16>
    %cst_74 = arith.constant dense<0.000000e+00> : vector<64x8xf32>
    %45 = tpu.matmul %42, %44, %cst_74 {dimension_numbers = #tpu.dot_dimension_numbers<[1], [0], [0], [1], [0, 0, 1, 1], [], []>} : vector<64x4xbf16>, vector<4x8xbf16>, vector<64x8xf32> -> vector<64x8xf32>
    %46 = arith.addf %40, %45 : vector<64x8xf32>
    %c0_75 = arith.constant 0 : index
    %c1_76 = arith.constant 1 : index
    %c2_77 = arith.constant 2 : index
    %c0_78 = arith.constant 0 : index
    %47 = vector.load %arg7[%c0_75, %c1_76, %c2_77, %c0_78] : memref<1x10x10x4xbf16, #tpu.memory_space<vmem>>, vector<1x8x8x4xbf16>
    %48 = vector.shape_cast %47 : vector<1x8x8x4xbf16> to vector<64x4xbf16>
    %c5 = arith.constant 5 : index
    %c0_79 = arith.constant 0 : index
    %c0_80 = arith.constant 0 : index
    %49 = vector.load %arg2[%c5, %c0_79, %c0_80] : memref<9x4x8xbf16, #tpu.memory_space<vmem>>, vector<1x4x8xbf16>
    %50 = vector.shape_cast %49 : vector<1x4x8xbf16> to vector<4x8xbf16>
    %cst_81 = arith.constant dense<0.000000e+00> : vector<64x8xf32>
    %51 = tpu.matmul %48, %50, %cst_81 {dimension_numbers = #tpu.dot_dimension_numbers<[1], [0], [0], [1], [0, 0, 1, 1], [], []>} : vector<64x4xbf16>, vector<4x8xbf16>, vector<64x8xf32> -> vector<64x8xf32>
    %52 = arith.addf %46, %51 : vector<64x8xf32>
    %c0_82 = arith.constant 0 : index
    %c2_83 = arith.constant 2 : index
    %c0_84 = arith.constant 0 : index
    %c0_85 = arith.constant 0 : index
    %53 = vector.load %arg7[%c0_82, %c2_83, %c0_84, %c0_85] : memref<1x10x10x4xbf16, #tpu.memory_space<vmem>>, vector<1x8x8x4xbf16>
    %54 = vector.shape_cast %53 : vector<1x8x8x4xbf16> to vector<64x4xbf16>
    %c6 = arith.constant 6 : index
    %c0_86 = arith.constant 0 : index
    %c0_87 = arith.constant 0 : index
    %55 = vector.load %arg2[%c6, %c0_86, %c0_87] : memref<9x4x8xbf16, #tpu.memory_space<vmem>>, vector<1x4x8xbf16>
    %56 = vector.shape_cast %55 : vector<1x4x8xbf16> to vector<4x8xbf16>
    %cst_88 = arith.constant dense<0.000000e+00> : vector<64x8xf32>
    %57 = tpu.matmul %54, %56, %cst_88 {dimension_numbers = #tpu.dot_dimension_numbers<[1], [0], [0], [1], [0, 0, 1, 1], [], []>} : vector<64x4xbf16>, vector<4x8xbf16>, vector<64x8xf32> -> vector<64x8xf32>
    %58 = arith.addf %52, %57 : vector<64x8xf32>
    %c0_89 = arith.constant 0 : index
    %c2_90 = arith.constant 2 : index
    %c1_91 = arith.constant 1 : index
    %c0_92 = arith.constant 0 : index
    %59 = vector.load %arg7[%c0_89, %c2_90, %c1_91, %c0_92] : memref<1x10x10x4xbf16, #tpu.memory_space<vmem>>, vector<1x8x8x4xbf16>
    %60 = vector.shape_cast %59 : vector<1x8x8x4xbf16> to vector<64x4xbf16>
    %c7 = arith.constant 7 : index
    %c0_93 = arith.constant 0 : index
    %c0_94 = arith.constant 0 : index
    %61 = vector.load %arg2[%c7, %c0_93, %c0_94] : memref<9x4x8xbf16, #tpu.memory_space<vmem>>, vector<1x4x8xbf16>
    %62 = vector.shape_cast %61 : vector<1x4x8xbf16> to vector<4x8xbf16>
    %cst_95 = arith.constant dense<0.000000e+00> : vector<64x8xf32>
    %63 = tpu.matmul %60, %62, %cst_95 {dimension_numbers = #tpu.dot_dimension_numbers<[1], [0], [0], [1], [0, 0, 1, 1], [], []>} : vector<64x4xbf16>, vector<4x8xbf16>, vector<64x8xf32> -> vector<64x8xf32>
    %64 = arith.addf %58, %63 : vector<64x8xf32>
    %c0_96 = arith.constant 0 : index
    %c2_97 = arith.constant 2 : index
    %c2_98 = arith.constant 2 : index
    %c0_99 = arith.constant 0 : index
    %65 = vector.load %arg7[%c0_96, %c2_97, %c2_98, %c0_99] : memref<1x10x10x4xbf16, #tpu.memory_space<vmem>>, vector<1x8x8x4xbf16>
    %66 = vector.shape_cast %65 : vector<1x8x8x4xbf16> to vector<64x4xbf16>
    %c8 = arith.constant 8 : index
    %c0_100 = arith.constant 0 : index
    %c0_101 = arith.constant 0 : index
    %67 = vector.load %arg2[%c8, %c0_100, %c0_101] : memref<9x4x8xbf16, #tpu.memory_space<vmem>>, vector<1x4x8xbf16>
    %68 = vector.shape_cast %67 : vector<1x4x8xbf16> to vector<4x8xbf16>
    %cst_102 = arith.constant dense<0.000000e+00> : vector<64x8xf32>
    %69 = tpu.matmul %66, %68, %cst_102 {dimension_numbers = #tpu.dot_dimension_numbers<[1], [0], [0], [1], [0, 0, 1, 1], [], []>} : vector<64x4xbf16>, vector<4x8xbf16>, vector<64x8xf32> -> vector<64x8xf32>
    %70 = arith.addf %64, %69 : vector<64x8xf32>
    %c0_103 = arith.constant 0 : index
    %c0_104 = arith.constant 0 : index
    %71 = vector.load %arg3[%c0_103, %c0_104] : memref<1x8xf32, #tpu.memory_space<vmem>>, vector<1x8xf32>
    %72 = vector.broadcast %71 : vector<1x8xf32> to vector<64x8xf32>
    %73 = arith.addf %70, %72 : vector<64x8xf32>
    %cst_105 = arith.constant 0.000000e+00 : f32
    %74 = vector.broadcast %cst_105 : f32 to vector<64x8xf32>
    %75 = arith.maximumf %73, %74 : vector<64x8xf32>
    %cst_106 = arith.constant 0.000000e+00 : bf16
    %76 = vector.broadcast %cst_106 : bf16 to vector<1x1x10x8xbf16>
    %cst_107 = arith.constant 0.000000e+00 : bf16
    %77 = vector.broadcast %cst_107 : bf16 to vector<1x10x1x8xbf16>
    %c0_108 = arith.constant 0 : index
    %c0_109 = arith.constant 0 : index
    %c0_110 = arith.constant 0 : index
    %c0_111 = arith.constant 0 : index
    %78 = vector.load %arg8[%c0_108, %c0_109, %c0_110, %c0_111] : memref<1x10x10x8xbf16, #tpu.memory_space<vmem>>, vector<1x1x10x8xbf16>
    tpu.vector_store %arg8[%c0_108, %c0_109, %c0_110, %c0_111], %76 {strides = array<i32>} : memref<1x10x10x8xbf16, #tpu.memory_space<vmem>>, vector<1x1x10x8xbf16>,
    %c0_112 = arith.constant 0 : index
    %c9_113 = arith.constant 9 : index
    %c0_114 = arith.constant 0 : index
    %c0_115 = arith.constant 0 : index
    %79 = vector.load %arg8[%c0_112, %c9_113, %c0_114, %c0_115] : memref<1x10x10x8xbf16, #tpu.memory_space<vmem>>, vector<1x1x10x8xbf16>
    tpu.vector_store %arg8[%c0_112, %c9_113, %c0_114, %c0_115], %76 {strides = array<i32>} : memref<1x10x10x8xbf16, #tpu.memory_space<vmem>>, vector<1x1x10x8xbf16>,
    %c0_116 = arith.constant 0 : index
    %c0_117 = arith.constant 0 : index
    %c0_118 = arith.constant 0 : index
    %c0_119 = arith.constant 0 : index
    %80 = vector.load %arg8[%c0_116, %c0_117, %c0_118, %c0_119] : memref<1x10x10x8xbf16, #tpu.memory_space<vmem>>, vector<1x10x1x8xbf16>
    tpu.vector_store %arg8[%c0_116, %c0_117, %c0_118, %c0_119], %77 {strides = array<i32>} : memref<1x10x10x8xbf16, #tpu.memory_space<vmem>>, vector<1x10x1x8xbf16>,
    %c0_120 = arith.constant 0 : index
    %c0_121 = arith.constant 0 : index
    %c9_122 = arith.constant 9 : index
    %c0_123 = arith.constant 0 : index
    %81 = vector.load %arg8[%c0_120, %c0_121, %c9_122, %c0_123] : memref<1x10x10x8xbf16, #tpu.memory_space<vmem>>, vector<1x10x1x8xbf16>
    tpu.vector_store %arg8[%c0_120, %c0_121, %c9_122, %c0_123], %77 {strides = array<i32>} : memref<1x10x10x8xbf16, #tpu.memory_space<vmem>>, vector<1x10x1x8xbf16>,
    %82 = vector.shape_cast %75 : vector<64x8xf32> to vector<1x8x8x8xf32>
    %83 = arith.truncf %82 : vector<1x8x8x8xf32> to vector<1x8x8x8xbf16>
    %c0_124 = arith.constant 0 : index
    %c1_125 = arith.constant 1 : index
    %c1_126 = arith.constant 1 : index
    %c0_127 = arith.constant 0 : index
    %84 = vector.load %arg8[%c0_124, %c1_125, %c1_126, %c0_127] : memref<1x10x10x8xbf16, #tpu.memory_space<vmem>>, vector<1x8x8x8xbf16>
    tpu.vector_store %arg8[%c0_124, %c1_125, %c1_126, %c0_127], %83 {strides = array<i32>} : memref<1x10x10x8xbf16, #tpu.memory_space<vmem>>, vector<1x8x8x8xbf16>,
    %c0_128 = arith.constant 0 : index
    %c0_129 = arith.constant 0 : index
    %c0_130 = arith.constant 0 : index
    %c0_131 = arith.constant 0 : index
    %85 = vector.load %arg8[%c0_128, %c0_129, %c0_130, %c0_131] : memref<1x10x10x8xbf16, #tpu.memory_space<vmem>>, vector<1x8x8x8xbf16>
    %86 = vector.shape_cast %85 : vector<1x8x8x8xbf16> to vector<64x8xbf16>
    %c0_132 = arith.constant 0 : index
    %c0_133 = arith.constant 0 : index
    %c0_134 = arith.constant 0 : index
    %87 = vector.load %arg4[%c0_132, %c0_133, %c0_134] : memref<9x8x8xbf16, #tpu.memory_space<vmem>>, vector<1x8x8xbf16>
    %88 = vector.shape_cast %87 : vector<1x8x8xbf16> to vector<8x8xbf16>
    %cst_135 = arith.constant dense<0.000000e+00> : vector<64x8xf32>
    %89 = tpu.matmul %86, %88, %cst_135 {dimension_numbers = #tpu.dot_dimension_numbers<[1], [0], [0], [1], [0, 0, 1, 1], [], []>} : vector<64x8xbf16>, vector<8x8xbf16>, vector<64x8xf32> -> vector<64x8xf32>
    %c0_136 = arith.constant 0 : index
    %c0_137 = arith.constant 0 : index
    %c1_138 = arith.constant 1 : index
    %c0_139 = arith.constant 0 : index
    %90 = vector.load %arg8[%c0_136, %c0_137, %c1_138, %c0_139] : memref<1x10x10x8xbf16, #tpu.memory_space<vmem>>, vector<1x8x8x8xbf16>
    %91 = vector.shape_cast %90 : vector<1x8x8x8xbf16> to vector<64x8xbf16>
    %c1_140 = arith.constant 1 : index
    %c0_141 = arith.constant 0 : index
    %c0_142 = arith.constant 0 : index
    %92 = vector.load %arg4[%c1_140, %c0_141, %c0_142] : memref<9x8x8xbf16, #tpu.memory_space<vmem>>, vector<1x8x8xbf16>
    %93 = vector.shape_cast %92 : vector<1x8x8xbf16> to vector<8x8xbf16>
    %cst_143 = arith.constant dense<0.000000e+00> : vector<64x8xf32>
    %94 = tpu.matmul %91, %93, %cst_143 {dimension_numbers = #tpu.dot_dimension_numbers<[1], [0], [0], [1], [0, 0, 1, 1], [], []>} : vector<64x8xbf16>, vector<8x8xbf16>, vector<64x8xf32> -> vector<64x8xf32>
    %95 = arith.addf %89, %94 : vector<64x8xf32>
    %c0_144 = arith.constant 0 : index
    %c0_145 = arith.constant 0 : index
    %c2_146 = arith.constant 2 : index
    %c0_147 = arith.constant 0 : index
    %96 = vector.load %arg8[%c0_144, %c0_145, %c2_146, %c0_147] : memref<1x10x10x8xbf16, #tpu.memory_space<vmem>>, vector<1x8x8x8xbf16>
    %97 = vector.shape_cast %96 : vector<1x8x8x8xbf16> to vector<64x8xbf16>
    %c2_148 = arith.constant 2 : index
    %c0_149 = arith.constant 0 : index
    %c0_150 = arith.constant 0 : index
    %98 = vector.load %arg4[%c2_148, %c0_149, %c0_150] : memref<9x8x8xbf16, #tpu.memory_space<vmem>>, vector<1x8x8xbf16>
    %99 = vector.shape_cast %98 : vector<1x8x8xbf16> to vector<8x8xbf16>
    %cst_151 = arith.constant dense<0.000000e+00> : vector<64x8xf32>
    %100 = tpu.matmul %97, %99, %cst_151 {dimension_numbers = #tpu.dot_dimension_numbers<[1], [0], [0], [1], [0, 0, 1, 1], [], []>} : vector<64x8xbf16>, vector<8x8xbf16>, vector<64x8xf32> -> vector<64x8xf32>
    %101 = arith.addf %95, %100 : vector<64x8xf32>
    %c0_152 = arith.constant 0 : index
    %c1_153 = arith.constant 1 : index
    %c0_154 = arith.constant 0 : index
    %c0_155 = arith.constant 0 : index
    %102 = vector.load %arg8[%c0_152, %c1_153, %c0_154, %c0_155] : memref<1x10x10x8xbf16, #tpu.memory_space<vmem>>, vector<1x8x8x8xbf16>
    %103 = vector.shape_cast %102 : vector<1x8x8x8xbf16> to vector<64x8xbf16>
    %c3_156 = arith.constant 3 : index
    %c0_157 = arith.constant 0 : index
    %c0_158 = arith.constant 0 : index
    %104 = vector.load %arg4[%c3_156, %c0_157, %c0_158] : memref<9x8x8xbf16, #tpu.memory_space<vmem>>, vector<1x8x8xbf16>
    %105 = vector.shape_cast %104 : vector<1x8x8xbf16> to vector<8x8xbf16>
    %cst_159 = arith.constant dense<0.000000e+00> : vector<64x8xf32>
    %106 = tpu.matmul %103, %105, %cst_159 {dimension_numbers = #tpu.dot_dimension_numbers<[1], [0], [0], [1], [0, 0, 1, 1], [], []>} : vector<64x8xbf16>, vector<8x8xbf16>, vector<64x8xf32> -> vector<64x8xf32>
    %107 = arith.addf %101, %106 : vector<64x8xf32>
    %c0_160 = arith.constant 0 : index
    %c1_161 = arith.constant 1 : index
    %c1_162 = arith.constant 1 : index
    %c0_163 = arith.constant 0 : index
    %108 = vector.load %arg8[%c0_160, %c1_161, %c1_162, %c0_163] : memref<1x10x10x8xbf16, #tpu.memory_space<vmem>>, vector<1x8x8x8xbf16>
    %109 = vector.shape_cast %108 : vector<1x8x8x8xbf16> to vector<64x8xbf16>
    %c4_164 = arith.constant 4 : index
    %c0_165 = arith.constant 0 : index
    %c0_166 = arith.constant 0 : index
    %110 = vector.load %arg4[%c4_164, %c0_165, %c0_166] : memref<9x8x8xbf16, #tpu.memory_space<vmem>>, vector<1x8x8xbf16>
    %111 = vector.shape_cast %110 : vector<1x8x8xbf16> to vector<8x8xbf16>
    %cst_167 = arith.constant dense<0.000000e+00> : vector<64x8xf32>
    %112 = tpu.matmul %109, %111, %cst_167 {dimension_numbers = #tpu.dot_dimension_numbers<[1], [0], [0], [1], [0, 0, 1, 1], [], []>} : vector<64x8xbf16>, vector<8x8xbf16>, vector<64x8xf32> -> vector<64x8xf32>
    %113 = arith.addf %107, %112 : vector<64x8xf32>
    %c0_168 = arith.constant 0 : index
    %c1_169 = arith.constant 1 : index
    %c2_170 = arith.constant 2 : index
    %c0_171 = arith.constant 0 : index
    %114 = vector.load %arg8[%c0_168, %c1_169, %c2_170, %c0_171] : memref<1x10x10x8xbf16, #tpu.memory_space<vmem>>, vector<1x8x8x8xbf16>
    %115 = vector.shape_cast %114 : vector<1x8x8x8xbf16> to vector<64x8xbf16>
    %c5_172 = arith.constant 5 : index
    %c0_173 = arith.constant 0 : index
    %c0_174 = arith.constant 0 : index
    %116 = vector.load %arg4[%c5_172, %c0_173, %c0_174] : memref<9x8x8xbf16, #tpu.memory_space<vmem>>, vector<1x8x8xbf16>
    %117 = vector.shape_cast %116 : vector<1x8x8xbf16> to vector<8x8xbf16>
    %cst_175 = arith.constant dense<0.000000e+00> : vector<64x8xf32>
    %118 = tpu.matmul %115, %117, %cst_175 {dimension_numbers = #tpu.dot_dimension_numbers<[1], [0], [0], [1], [0, 0, 1, 1], [], []>} : vector<64x8xbf16>, vector<8x8xbf16>, vector<64x8xf32> -> vector<64x8xf32>
    %119 = arith.addf %113, %118 : vector<64x8xf32>
    %c0_176 = arith.constant 0 : index
    %c2_177 = arith.constant 2 : index
    %c0_178 = arith.constant 0 : index
    %c0_179 = arith.constant 0 : index
    %120 = vector.load %arg8[%c0_176, %c2_177, %c0_178, %c0_179] : memref<1x10x10x8xbf16, #tpu.memory_space<vmem>>, vector<1x8x8x8xbf16>
    %121 = vector.shape_cast %120 : vector<1x8x8x8xbf16> to vector<64x8xbf16>
    %c6_180 = arith.constant 6 : index
    %c0_181 = arith.constant 0 : index
    %c0_182 = arith.constant 0 : index
    %122 = vector.load %arg4[%c6_180, %c0_181, %c0_182] : memref<9x8x8xbf16, #tpu.memory_space<vmem>>, vector<1x8x8xbf16>
    %123 = vector.shape_cast %122 : vector<1x8x8xbf16> to vector<8x8xbf16>
    %cst_183 = arith.constant dense<0.000000e+00> : vector<64x8xf32>
    %124 = tpu.matmul %121, %123, %cst_183 {dimension_numbers = #tpu.dot_dimension_numbers<[1], [0], [0], [1], [0, 0, 1, 1], [], []>} : vector<64x8xbf16>, vector<8x8xbf16>, vector<64x8xf32> -> vector<64x8xf32>
    %125 = arith.addf %119, %124 : vector<64x8xf32>
    %c0_184 = arith.constant 0 : index
    %c2_185 = arith.constant 2 : index
    %c1_186 = arith.constant 1 : index
    %c0_187 = arith.constant 0 : index
    %126 = vector.load %arg8[%c0_184, %c2_185, %c1_186, %c0_187] : memref<1x10x10x8xbf16, #tpu.memory_space<vmem>>, vector<1x8x8x8xbf16>
    %127 = vector.shape_cast %126 : vector<1x8x8x8xbf16> to vector<64x8xbf16>
    %c7_188 = arith.constant 7 : index
    %c0_189 = arith.constant 0 : index
    %c0_190 = arith.constant 0 : index
    %128 = vector.load %arg4[%c7_188, %c0_189, %c0_190] : memref<9x8x8xbf16, #tpu.memory_space<vmem>>, vector<1x8x8xbf16>
    %129 = vector.shape_cast %128 : vector<1x8x8xbf16> to vector<8x8xbf16>
    %cst_191 = arith.constant dense<0.000000e+00> : vector<64x8xf32>
    %130 = tpu.matmul %127, %129, %cst_191 {dimension_numbers = #tpu.dot_dimension_numbers<[1], [0], [0], [1], [0, 0, 1, 1], [], []>} : vector<64x8xbf16>, vector<8x8xbf16>, vector<64x8xf32> -> vector<64x8xf32>
    %131 = arith.addf %125, %130 : vector<64x8xf32>
    %c0_192 = arith.constant 0 : index
    %c2_193 = arith.constant 2 : index
    %c2_194 = arith.constant 2 : index
    %c0_195 = arith.constant 0 : index
    %132 = vector.load %arg8[%c0_192, %c2_193, %c2_194, %c0_195] : memref<1x10x10x8xbf16, #tpu.memory_space<vmem>>, vector<1x8x8x8xbf16>
    %133 = vector.shape_cast %132 : vector<1x8x8x8xbf16> to vector<64x8xbf16>
    %c8_196 = arith.constant 8 : index
    %c0_197 = arith.constant 0 : index
    %c0_198 = arith.constant 0 : index
    %134 = vector.load %arg4[%c8_196, %c0_197, %c0_198] : memref<9x8x8xbf16, #tpu.memory_space<vmem>>, vector<1x8x8xbf16>
    %135 = vector.shape_cast %134 : vector<1x8x8xbf16> to vector<8x8xbf16>
    %cst_199 = arith.constant dense<0.000000e+00> : vector<64x8xf32>
    %136 = tpu.matmul %133, %135, %cst_199 {dimension_numbers = #tpu.dot_dimension_numbers<[1], [0], [0], [1], [0, 0, 1, 1], [], []>} : vector<64x8xbf16>, vector<8x8xbf16>, vector<64x8xf32> -> vector<64x8xf32>
    %137 = arith.addf %131, %136 : vector<64x8xf32>
    %c0_200 = arith.constant 0 : index
    %c0_201 = arith.constant 0 : index
    %138 = vector.load %arg5[%c0_200, %c0_201] : memref<1x8xf32, #tpu.memory_space<vmem>>, vector<1x8xf32>
    %139 = vector.broadcast %138 : vector<1x8xf32> to vector<64x8xf32>
    %140 = arith.addf %137, %139 : vector<64x8xf32>
    %cst_202 = arith.constant 0.000000e+00 : f32
    %141 = vector.broadcast %cst_202 : f32 to vector<64x8xf32>
    %142 = arith.maximumf %140, %141 : vector<64x8xf32>
    %143 = vector.shape_cast %142 : vector<64x8xf32> to vector<1x64x8xf32>
    %144 = vector.shape_cast %143 : vector<1x64x8xf32> to vector<64x8xf32>
    %145 = tpu.transpose %144, [1, 0] : vector<64x8xf32> -> vector<8x64xf32>
    %c0_203 = arith.constant 0 : index
    %c0_204 = arith.constant 0 : index
    %c0_205 = arith.constant 0 : index
    %c0_206 = arith.constant 0 : index
    %146 = vector.load %arg6[%c0_203, %c0_204, %c0_205, %c0_206] : memref<1x1x8x64xf32, #tpu.memory_space<vmem>>, vector<1x1x8x64xf32>
    %147 = vector.shape_cast %146 : vector<1x1x8x64xf32> to vector<8x64xf32>
    %148 = vector.shape_cast %145 : vector<8x64xf32> to vector<1x1x8x64xf32>
    tpu.vector_store %arg6[%c0_203, %c0_204, %c0_205, %c0_206], %148 {strides = array<i32>} : memref<1x1x8x64xf32, #tpu.memory_space<vmem>>, vector<1x1x8x64xf32>,
    return
  }
  func.func @transform_0(%arg0: i32) -> (i32, i32, i32, i32, i32) {
    %c0_i32 = arith.constant 0 : i32
    %c0_i32_0 = arith.constant 0 : i32
    %c0_i32_1 = arith.constant 0 : i32
    %c0_i32_2 = arith.constant 0 : i32
    %c0_i32_3 = arith.constant 0 : i32
    return %c0_i32, %arg0, %c0_i32_0, %c0_i32_1, %c0_i32_2 : i32, i32, i32, i32, i32
  }
  func.func @transform_1(%arg0: i32) -> (i32, i32, i32) {
    %c0_i32 = arith.constant 0 : i32
    %c0_i32_0 = arith.constant 0 : i32
    %c0_i32_1 = arith.constant 0 : i32
    %c0_i32_2 = arith.constant 0 : i32
    return %c0_i32, %c0_i32_0, %c0_i32_1 : i32, i32, i32
  }
  func.func @transform_2(%arg0: i32) -> (i32, i32) {
    %c0_i32 = arith.constant 0 : i32
    %c0_i32_0 = arith.constant 0 : i32
    %c0_i32_1 = arith.constant 0 : i32
    return %c0_i32, %c0_i32_0 : i32, i32
  }
  func.func @transform_3(%arg0: i32) -> (i32, i32, i32) {
    %c0_i32 = arith.constant 0 : i32
    %c0_i32_0 = arith.constant 0 : i32
    %c0_i32_1 = arith.constant 0 : i32
    %c0_i32_2 = arith.constant 0 : i32
    return %c0_i32, %c0_i32_0, %c0_i32_1 : i32, i32, i32
  }
  func.func @transform_4(%arg0: i32) -> (i32, i32) {
    %c0_i32 = arith.constant 0 : i32
    %c0_i32_0 = arith.constant 0 : i32
    %c0_i32_1 = arith.constant 0 : i32
    return %c0_i32, %c0_i32_0 : i32, i32
  }
  func.func @transform_5(%arg0: i32) -> (i32, i32, i32, i32) {
    %c0_i32 = arith.constant 0 : i32
    %c0_i32_0 = arith.constant 0 : i32
    %c0_i32_1 = arith.constant 0 : i32
    %c0_i32_2 = arith.constant 0 : i32
    return %arg0, %c0_i32, %c0_i32_0, %c0_i32_1 : i32, i32, i32, i32
  }
}

</mosaic_0001>

<llo_original>
// kernel: tpu_custom_call.1
$region0: #{tpu_custom_call.1}
  #allocation0 [shape = 'u32[]', space=smem, size = 0x4, offset = 0x4, fixed_abs, tag = 'smem constant byte address 0x4 - core index']
  #allocation1 [shape = 'u32[72,128]{1,0:T(1,128)}', space=vmem, size = 0x9000, scoped, tag = 'internal scratch']
  #allocation2 [shape = 'bf16[1,10,10,4]{3,2,1,0:T(8,128)(2,1)}', space=vmem, size = 0xa000, scoped, tag = 'scratch operand']
  #allocation3 [shape = 'bf16[1,10,10,8]{3,2,1,0:T(8,128)(2,1)}', space=vmem, size = 0xa000, scoped, tag = 'scratch operand']
  %s0 = inlined_call_operand.vmem [shape: bf16[4,2,8,8,4], index: 0, kind: input, shape index: {}]
  %s1 = inlined_call_operand.vmem [shape: bf16[9,4,8], index: 1, kind: input, shape index: {}]
  %s2 = inlined_call_operand.vmem [shape: f32[1,8], index: 2, kind: input, shape index: {}]
  %s3 = inlined_call_operand.vmem [shape: bf16[9,8,8], index: 3, kind: input, shape index: {}]
  %s4 = inlined_call_operand.vmem [shape: f32[1,8], index: 4, kind: input, shape index: {}]
  %s5 = inlined_call_operand.hbm [shape: f32[2,1,8,64], index: 5, kind: output, shape index: {}]
  %s6 = sld [smem:[#allocation0]]
  $region94: #{tpu_custom_call.1} parent=0
    _
  %s8 = ssub.s32 1, %s6
  %s9 = scalar_select 0, %s8, %s6
  $region1: #{tpu_custom_call.1} parent=0
    #allocation4 [shape = 'u8[131072]{0}', space=vmem, size = 0x20000, scoped, tag = 'input window, operand 0']
    #allocation5 [shape = 'u8[8192]{0}', space=vmem, size = 0x2000, scoped, tag = 'output window, operand 0']
    #allocation6 [shape = 's32[2]{0}', space=sflag, size = 0x8, scoped, tag = 'scoped memory for tpu_custom_call.1']
    %10 = vsyncpa [#allocation6], 0
    %s11 = scalar_lea.sflag [#allocation6], 1
    %12 = vsyncpa %s11, 0
    loop: start=0, step=1, limit=4
    $region2: #{tpu_custom_call.1} parent=1 // loop_pre_header
      _
    $region3: #{tpu_custom_call.1} parent=1 // loop_header
      %s14 = sphi 0, %s18
      %p15 = scmp.ge.s32.totalorder %s14, 4
      %s24 = sphi 0, %s26
      %s27 = sphi 0, %s24
      %s28 = sphi 0, %s27
      %s44 = sphi 0, %s28
      %s48 = sphi 0, %s48
      %s50 = sphi 0, %s48
      %s51 = sphi 0, %s50
      %s65 = sphi 0, %s51
      %s69 = sphi 0, %s69
      %s71 = sphi 0, %s69
      %s72 = sphi 0, %s71
      %s86 = sphi 0, %s72
      %s90 = sphi 0, %s90
      %s92 = sphi 0, %s90
      %s93 = sphi 0, %s92
      %s107 = sphi 0, %s93
      %s111 = sphi 0, %s111
      %s113 = sphi 0, %s111
      %s114 = sphi 0, %s113
      %s128 = sphi 0, %s114
      %s134 = sphi 0, %s136
      %s137 = sphi 0, %s134
      %s138 = sphi 0, %s137
      %s154 = sphi 0, %s138
    $region4: #{tpu_custom_call.1} parent=1 // loop_header_branch
      %17 = sbr.rel (%p15) target = $region8
    $region5: #{tpu_custom_call.1} parent=1 // loop_body
      %s19 = ssub.s32 %s14, 1
      %s20 = ssub.s32 %s14, 2
      %s21 = sadd.s32 %s14, 1
      %s22 = ssub.s32 %s14, %s21
      %p23 = scmp.eq.s32.totalorder %s22, 0
      %s25 = sadd.s32 %s24, 1
      %s26 = scalar_select %p23, %s24, %s25
      %p29 = pneg %p23
      %p30 = scmp.eq.s32.totalorder %s14, 1
      %p31 = por %p29, %p30
      %p32 = scmp.ne.s32.totalorder %s24, %s27
      %p33 = scmp.eq.s32.totalorder %s14, 0
      %p34 = por %p32, %p33
      %p35 = scmp.ne.s32.totalorder %s24, %s27
      %p36 = scmp.eq.s32.totalorder %s19, 1
      %p37 = por %p35, %p36
      %p38 = scmp.ne.s32.totalorder %s27, %s28
      %p39 = scmp.eq.s32.totalorder %s19, 0
      %p40 = por %p38, %p39
      %p41 = scmp.ne.s32.totalorder %s27, %s28
      %p42 = scmp.eq.s32.totalorder %s20, 1
      %p43 = por %p41, %p42
      %p45 = scmp.ne.s32.totalorder %s28, %s44
      %p46 = scmp.eq.s32.totalorder %s20, 0
      %p47 = por %p45, %p46
      %s49 = sadd.s32 %s48, 1
      %p52 = scmp.eq.s32.totalorder %s14, 1
      %p53 = scmp.ne.s32.totalorder %s48, %s50
      %p54 = scmp.eq.s32.totalorder %s14, 0
      %p55 = por %p53, %p54
      %p56 = scmp.ne.s32.totalorder %s48, %s50
      %p57 = scmp.eq.s32.totalorder %s19, 1
      %p58 = por %p56, %p57
      %p59 = scmp.ne.s32.totalorder %s50, %s51
      %p60 = scmp.eq.s32.totalorder %s19, 0
      %p61 = por %p59, %p60
      %p62 = scmp.ne.s32.totalorder %s50, %s51
      %p63 = scmp.eq.s32.totalorder %s20, 1
      %p64 = por %p62, %p63
      %p66 = scmp.ne.s32.totalorder %s51, %s65
      %p67 = scmp.eq.s32.totalorder %s20, 0
      %p68 = por %p66, %p67
      %s70 = sadd.s32 %s69, 1
      %p73 = scmp.eq.s32.totalorder %s14, 1
      %p74 = scmp.ne.s32.totalorder %s69, %s71
      %p75 = scmp.eq.s32.totalorder %s14, 0
      %p76 = por %p74, %p75
      %p77 = scmp.ne.s32.totalorder %s69, %s71
      %p78 = scmp.eq.s32.totalorder %s19, 1
      %p79 = por %p77, %p78
      %p80 = scmp.ne.s32.totalorder %s71, %s72
      %p81 = scmp.eq.s32.totalorder %s19, 0
      %p82 = por %p80, %p81
      %p83 = scmp.ne.s32.totalorder %s71, %s72
      %p84 = scmp.eq.s32.totalorder %s20, 1
      %p85 = por %p83, %p84
      %p87 = scmp.ne.s32.totalorder %s72, %s86
      %p88 = scmp.eq.s32.totalorder %s20, 0
      %p89 = por %p87, %p88
      %s91 = sadd.s32 %s90, 1
      %p94 = scmp.eq.s32.totalorder %s14, 1
      %p95 = scmp.ne.s32.totalorder %s90, %s92
      %p96 = scmp.eq.s32.totalorder %s14, 0
      %p97 = por %p95, %p96
      %p98 = scmp.ne.s32.totalorder %s90, %s92
      %p99 = scmp.eq.s32.totalorder %s19, 1
      %p100 = por %p98, %p99
      %p101 = scmp.ne.s32.totalorder %s92, %s93
      %p102 = scmp.eq.s32.totalorder %s19, 0
      %p103 = por %p101, %p102
      %p104 = scmp.ne.s32.totalorder %s92, %s93
      %p105 = scmp.eq.s32.totalorder %s20, 1
      %p106 = por %p104, %p105
      %p108 = scmp.ne.s32.totalorder %s93, %s107
      %p109 = scmp.eq.s32.totalorder %s20, 0
      %p110 = por %p108, %p109
      %s112 = sadd.s32 %s111, 1
      %p115 = scmp.eq.s32.totalorder %s14, 1
      %p116 = scmp.ne.s32.totalorder %s111, %s113
      %p117 = scmp.eq.s32.totalorder %s14, 0
      %p118 = por %p116, %p117
      %p119 = scmp.ne.s32.totalorder %s111, %s113
      %p120 = scmp.eq.s32.totalorder %s19, 1
      %p121 = por %p119, %p120
      %p122 = scmp.ne.s32.totalorder %s113, %s114
      %p123 = scmp.eq.s32.totalorder %s19, 0
      %p124 = por %p122, %p123
      %p125 = scmp.ne.s32.totalorder %s113, %s114
      %p126 = scmp.eq.s32.totalorder %s20, 1
      %p127 = por %p125, %p126
      %p129 = scmp.ne.s32.totalorder %s114, %s128
      %p130 = scmp.eq.s32.totalorder %s20, 0
      %p131 = por %p129, %p130
      %s132 = ssub.s32 %s14, %s21
      %p133 = scmp.eq.s32.totalorder %s132, 0
      %s135 = sadd.s32 %s134, 1
      %s136 = scalar_select %p133, %s134, %s135
      %p139 = pneg %p133
      %p140 = scmp.eq.s32.totalorder %s14, 1
      %p141 = por %p139, %p140
      %p142 = scmp.ne.s32.totalorder %s134, %s137
      %p143 = scmp.eq.s32.totalorder %s14, 0
      %p144 = por %p142, %p143
      %p145 = scmp.ne.s32.totalorder %s134, %s137
      %p146 = scmp.eq.s32.totalorder %s19, 1
      %p147 = por %p145, %p146
      %p148 = scmp.ne.s32.totalorder %s137, %s138
      %p149 = scmp.eq.s32.totalorder %s19, 0
      %p150 = por %p148, %p149
      %p151 = scmp.ne.s32.totalorder %s137, %s138
      %p152 = scmp.eq.s32.totalorder %s20, 1
      %p153 = por %p151, %p152
      %p155 = scmp.ne.s32.totalorder %s138, %s154
      %p156 = scmp.eq.s32.totalorder %s20, 0
      %p157 = por %p155, %p156
      %p158 = scmp.le.s32.totalorder 1, %s14
      %p159 = scmp.lt.s32.totalorder %s14, 3
      %p160 = pnand %p158, %p159
      %p161 = pneg %p160
      // Predicated region
      $region9: #{tpu_custom_call.1} parent=5 // pred_check
        _
      $region10: #{tpu_custom_call.1} parent=5 // pred_check_branch
        %163 = sbr.rel (%p160) target = $region12
      $region11: #{tpu_custom_call.1} parent=5 // pred_region
        %s164 = ssub.s32 %s14, 1
        // Predicated region
        $region13: #{tpu_custom_call.1} parent=11 // pred_check
          %p165 = pneg %p61
        $region14: #{tpu_custom_call.1} parent=11 // pred_check_branch
          %167 = sbr.rel (%p165) target = $region16
        $region15: #{tpu_custom_call.1} parent=11 // pred_region
          _
        $region16: #{tpu_custom_call.1} parent=11 // pred_fallthru
          _
        // Predicated region
        $region17: #{tpu_custom_call.1} parent=11 // pred_check
          %p168 = pneg %p82
        $region18: #{tpu_custom_call.1} parent=11 // pred_check_branch
          %170 = sbr.rel (%p168) target = $region20
        $region19: #{tpu_custom_call.1} parent=11 // pred_region
          _
        $region20: #{tpu_custom_call.1} parent=11 // pred_fallthru
          _
        // Predicated region
        $region21: #{tpu_custom_call.1} parent=11 // pred_check
          %p171 = pneg %p103
        $region22: #{tpu_custom_call.1} parent=11 // pred_check_branch
          %173 = sbr.rel (%p171) target = $region24
        $region23: #{tpu_custom_call.1} parent=11 // pred_region
          _
        $region24: #{tpu_custom_call.1} parent=11 // pred_fallthru
          _
        // Predicated region
        $region25: #{tpu_custom_call.1} parent=11 // pred_check
          %p174 = pneg %p124
        $region26: #{tpu_custom_call.1} parent=11 // pred_check_branch
          %176 = sbr.rel (%p174) target = $region28
        $region27: #{tpu_custom_call.1} parent=11 // pred_region
          _
        $region28: #{tpu_custom_call.1} parent=11 // pred_fallthru
          _
      $region12: #{tpu_custom_call.1} parent=5 // pred_fallthru
        _
      %p177 = scmp.lt.s32.totalorder %s14, 2
      // Predicated region
      $region29: #{tpu_custom_call.1} parent=5 // pred_check
        %p178 = pneg %p177
      $region30: #{tpu_custom_call.1} parent=5 // pred_check_branch
        %180 = sbr.rel (%p178) target = $region32
      $region31: #{tpu_custom_call.1} parent=5 // pred_region
        // Predicated region
        $region33: #{tpu_custom_call.1} parent=31 // pred_check
          %p181 = pneg %p34
        $region34: #{tpu_custom_call.1} parent=31 // pred_check_branch
          %183 = sbr.rel (%p181) target = $region36
        $region35: #{tpu_custom_call.1} parent=31 // pred_region
          %s184 = sand.u32 %s24, 1
          %s185 = sand.u32 %s24, 1
          %s186 = smul.addr %s185, 128
          %s187 = scalar_lea.vmem [#allocation4], %s186
          %s188 = smul.addr %s14, 8
          %s189 = smul.addr %s188, 4
          %s190 = scalar_lea.vmem %s0, %s189
          // Predicated region
          $region37: #{tpu_custom_call.1} parent=35 // pred_check
            _
          $region38: #{tpu_custom_call.1} parent=35 // pred_check_branch
            %192 = sbr.rel (0) target = $region40
          $region39: #{tpu_custom_call.1} parent=35 // pred_region
            // Predicated region
            $region41: #{tpu_custom_call.1} parent=39 // pred_check
              _
            $region42: #{tpu_custom_call.1} parent=39 // pred_check_branch
              %194 = sbr.rel target = $region44
            $region43: #{tpu_custom_call.1} parent=39 // pred_region
              // Predicated region
              $region56: #{tpu_custom_call.1} parent=43 // pred_check
                _
              $region57: #{tpu_custom_call.1} parent=43 // pred_check_branch
                %272 = sbr.rel (0) target = $region59
              $region58: #{tpu_custom_call.1} parent=43 // pred_region
                loop: start=0, step=1, limit=1
                $region60: #{tpu_custom_call.1} parent=58 // loop_pre_header
                  _
                $region61: #{tpu_custom_call.1} parent=58 // loop_header
                  %s274 = sphi 0, %s278
                  %p275 = scmp.ge.s32.totalorder %s274, 1
                  %s279 = sphi %s190, %s190
                  %s280 = sphi %s187, %s187
                $region62: #{tpu_custom_call.1} parent=58 // loop_header_branch
                  %277 = sbr.rel (%p275) target = $region66
                $region63: #{tpu_custom_call.1} parent=58 // loop_body
                  _
                $region64: #{tpu_custom_call.1} parent=58 // loop_footer
                  %s278 = sadd.s32 1, %s274
                $region65: #{tpu_custom_call.1} parent=58 // loop_footer_branch
                  %273 = sbr.rel target = $region61
                $region66: #{tpu_custom_call.1} parent=58 // loop_exit
                  _
                %s282 = ssub.s32 16, 1
                loop: start=0, step=1, limit=1
                $region67: #{tpu_custom_call.1} parent=58 // loop_pre_header
                  _
                $region68: #{tpu_custom_call.1} parent=58 // loop_header
                  %s284 = sphi 0, %s288
                  %p285 = scmp.ge.s32.totalorder %s284, 1
                  %s289 = sphi %s190, %s190
                  %s290 = sphi %s187, %s187
                $region69: #{tpu_custom_call.1} parent=58 // loop_header_branch
                  %287 = sbr.rel (%p285) target = $region73
                $region70: #{tpu_custom_call.1} parent=58 // loop_body
                  %v291 = vld [vmem:[%s289] sm:%s282]
                  %292 = vst [vmem:[%s290] sm:%s282] %v291
                  %v293 = vld [vmem:[%s289 + $0x4] sm:%s282]
                  %294 = vst [vmem:[%s290 + $0x4] sm:%s282] %v293
                  %v295 = vld [vmem:[%s289 + $0x8] sm:%s282]
                  %296 = vst [vmem:[%s290 + $0x8] sm:%s282] %v295
                  %v297 = vld [vmem:[%s289 + $0xc] sm:%s282]
                  %298 = vst [vmem:[%s290 + $0xc] sm:%s282] %v297
                  %v299 = vld [vmem:[%s289 + $0x10] sm:%s282]
                  %300 = vst [vmem:[%s290 + $0x10] sm:%s282] %v299
                  %v301 = vld [vmem:[%s289 + $0x14] sm:%s282]
                  %302 = vst [vmem:[%s290 + $0x14] sm:%s282] %v301
                  %v303 = vld [vmem:[%s289 + $0x18] sm:%s282]
                  %304 = vst [vmem:[%s290 + $0x18] sm:%s282] %v303
                  %v305 = vld [vmem:[%s289 + $0x1c] sm:%s282]
                  %306 = vst [vmem:[%s290 + $0x1c] sm:%s282] %v305
                  %v307 = vld [vmem:[%s289 + $0x40] sm:%s282]
                  %308 = vst [vmem:[%s290 + $0x20] sm:%s282] %v307
                  %v309 = vld [vmem:[%s289 + $0x44] sm:%s282]
                  %310 = vst [vmem:[%s290 + $0x24] sm:%s282] %v309
                  %v311 = vld [vmem:[%s289 + $0x48] sm:%s282]
                  %312 = vst [vmem:[%s290 + $0x28] sm:%s282] %v311
                  %v313 = vld [vmem:[%s289 + $0x4c] sm:%s282]
                  %314 = vst [vmem:[%s290 + $0x2c] sm:%s282] %v313
                  %v315 = vld [vmem:[%s289 + $0x50] sm:%s282]
                  %316 = vst [vmem:[%s290 + $0x30] sm:%s282] %v315
                  %v317 = vld [vmem:[%s289 + $0x54] sm:%s282]
                  %318 = vst [vmem:[%s290 + $0x34] sm:%s282] %v317
                  %v319 = vld [vmem:[%s289 + $0x58] sm:%s282]
                  %320 = vst [vmem:[%s290 + $0x38] sm:%s282] %v319
                  %v321 = vld [vmem:[%s289 + $0x5c] sm:%s282]
                  %322 = vst [vmem:[%s290 + $0x3c] sm:%s282] %v321
                  %v323 = vld [vmem:[%s289 + $0x80] sm:%s282]
                  %324 = vst [vmem:[%s290 + $0x40] sm:%s282] %v323
                  %v325 = vld [vmem:[%s289 + $0x84] sm:%s282]
                  %326 = vst [vmem:[%s290 + $0x44] sm:%s282] %v325
                  %v327 = vld [vmem:[%s289 + $0x88] sm:%s282]
                  %328 = vst [vmem:[%s290 + $0x48] sm:%s282] %v327
                  %v329 = vld [vmem:[%s289 + $0x8c] sm:%s282]
                  %330 = vst [vmem:[%s290 + $0x4c] sm:%s282] %v329
                  %v331 = vld [vmem:[%s289 + $0x90] sm:%s282]
                  %332 = vst [vmem:[%s290 + $0x50] sm:%s282] %v331
                  %v333 = vld [vmem:[%s289 + $0x94] sm:%s282]
                  %334 = vst [vmem:[%s290 + $0x54] sm:%s282] %v333
                  %v335 = vld [vmem:[%s289 + $0x98] sm:%s282]
                  %336 = vst [vmem:[%s290 + $0x58] sm:%s282] %v335
                  %v337 = vld [vmem:[%s289 + $0x9c] sm:%s282]
                  %338 = vst [vmem:[%s290 + $0x5c] sm:%s282] %v337
                  %v339 = vld [vmem:[%s289 + $0xc0] sm:%s282]
                  %340 = vst [vmem:[%s290 + $0x60] sm:%s282] %v339
                  %v341 = vld [vmem:[%s289 + $0xc4] sm:%s282]
                  %342 = vst [vmem:[%s290 + $0x64] sm:%s282] %v341
                  %v343 = vld [vmem:[%s289 + $0xc8] sm:%s282]
                  %344 = vst [vmem:[%s290 + $0x68] sm:%s282] %v343
                  %v345 = vld [vmem:[%s289 + $0xcc] sm:%s282]
                  %346 = vst [vmem:[%s290 + $0x6c] sm:%s282] %v345
                  %v347 = vld [vmem:[%s289 + $0xd0] sm:%s282]
                  %348 = vst [vmem:[%s290 + $0x70] sm:%s282] %v347
                  %v349 = vld [vmem:[%s289 + $0xd4] sm:%s282]
                  %350 = vst [vmem:[%s290 + $0x74] sm:%s282] %v349
                  %v351 = vld [vmem:[%s289 + $0xd8] sm:%s282]
                  %352 = vst [vmem:[%s290 + $0x78] sm:%s282] %v351
                  %v353 = vld [vmem:[%s289 + $0xdc] sm:%s282]
                  %354 = vst [vmem:[%s290 + $0x7c] sm:%s282] %v353
                $region71: #{tpu_custom_call.1} parent=58 // loop_footer
                  %s288 = sadd.s32 1, %s284
                $region72: #{tpu_custom_call.1} parent=58 // loop_footer_branch
                  %283 = sbr.rel target = $region68
                $region73: #{tpu_custom_call.1} parent=58 // loop_exit
                  _
              $region59: #{tpu_custom_call.1} parent=43 // pred_fallthru
                _
            $region44: #{tpu_custom_call.1} parent=39 // pred_fallthru
              _
            // Predicated region
            $region45: #{tpu_custom_call.1} parent=39 // pred_check
              _
            $region46: #{tpu_custom_call.1} parent=39 // pred_check_branch
              %196 = sbr.rel (0) target = $region48
            $region47: #{tpu_custom_call.1} parent=39 // pred_region
              %s198 = ssub.s32 16, 1
              loop: start=0, step=1, limit=1
              $region49: #{tpu_custom_call.1} parent=47 // loop_pre_header
                _
              $region50: #{tpu_custom_call.1} parent=47 // loop_header
                %s200 = sphi 0, %s204
                %p201 = scmp.ge.s32.totalorder %s200, 1
                %s205 = sphi %s190, %s190
                %s206 = sphi %s187, %s187
              $region51: #{tpu_custom_call.1} parent=47 // loop_header_branch
                %203 = sbr.rel (%p201) target = $region55
              $region52: #{tpu_custom_call.1} parent=47 // loop_body
                %v207 = vld [vmem:[%s205] sm:%s198]
                %208 = vst [vmem:[%s206] sm:%s198] %v207
                %v209 = vld [vmem:[%s205 + $0x4] sm:%s198]
                %210 = vst [vmem:[%s206 + $0x4] sm:%s198] %v209
                %v211 = vld [vmem:[%s205 + $0x8] sm:%s198]
                %212 = vst [vmem:[%s206 + $0x8] sm:%s198] %v211
                %v213 = vld [vmem:[%s205 + $0xc] sm:%s198]
                %214 = vst [vmem:[%s206 + $0xc] sm:%s198] %v213
                %v215 = vld [vmem:[%s205 + $0x10] sm:%s198]
                %216 = vst [vmem:[%s206 + $0x10] sm:%s198] %v215
                %v217 = vld [vmem:[%s205 + $0x14] sm:%s198]
                %218 = vst [vmem:[%s206 + $0x14] sm:%s198] %v217
                %v219 = vld [vmem:[%s205 + $0x18] sm:%s198]
                %220 = vst [vmem:[%s206 + $0x18] sm:%s198] %v219
                %v221 = vld [vmem:[%s205 + $0x1c] sm:%s198]
                %222 = vst [vmem:[%s206 + $0x1c] sm:%s198] %v221
                %v223 = vld [vmem:[%s205 + $0x40] sm:%s198]
                %224 = vst [vmem:[%s206 + $0x20] sm:%s198] %v223
                %v225 = vld [vmem:[%s205 + $0x44] sm:%s198]
                %226 = vst [vmem:[%s206 + $0x24] sm:%s198] %v225
                %v227 = vld [vmem:[%s205 + $0x48] sm:%s198]
                %228 = vst [vmem:[%s206 + $0x28] sm:%s198] %v227
                %v229 = vld [vmem:[%s205 + $0x4c] sm:%s198]
                %230 = vst [vmem:[%s206 + $0x2c] sm:%s198] %v229
                %v231 = vld [vmem:[%s205 + $0x50] sm:%s198]
                %232 = vst [vmem:[%s206 + $0x30] sm:%s198] %v231
                %v233 = vld [vmem:[%s205 + $0x54] sm:%s198]
                %234 = vst [vmem:[%s206 + $0x34] sm:%s198] %v233
                %v235 = vld [vmem:[%s205 + $0x58] sm:%s198]
                %236 = vst [vmem:[%s206 + $0x38] sm:%s198] %v235
                %v237 = vld [vmem:[%s205 + $0x5c] sm:%s198]
                %238 = vst [vmem:[%s206 + $0x3c] sm:%s198] %v237
                %v239 = vld [vmem:[%s205 + $0x80] sm:%s198]
                %240 = vst [vmem:[%s206 + $0x40] sm:%s198] %v239
                %v241 = vld [vmem:[%s205 + $0x84] sm:%s198]
                %242 = vst [vmem:[%s206 + $0x44] sm:%s198] %v241
                %v243 = vld [vmem:[%s205 + $0x88] sm:%s198]
                %244 = vst [vmem:[%s206 + $0x48] sm:%s198] %v243
                %v245 = vld [vmem:[%s205 + $0x8c] sm:%s198]
                %246 = vst [vmem:[%s206 + $0x4c] sm:%s198] %v245
                %v247 = vld [vmem:[%s205 + $0x90] sm:%s198]
                %248 = vst [vmem:[%s206 + $0x50] sm:%s198] %v247
                %v249 = vld [vmem:[%s205 + $0x94] sm:%s198]
                %250 = vst [vmem:[%s206 + $0x54] sm:%s198] %v249
                %v251 = vld [vmem:[%s205 + $0x98] sm:%s198]
                %252 = vst [vmem:[%s206 + $0x58] sm:%s198] %v251
                %v253 = vld [vmem:[%s205 + $0x9c] sm:%s198]
                %254 = vst [vmem:[%s206 + $0x5c] sm:%s198] %v253
                %v255 = vld [vmem:[%s205 + $0xc0] sm:%s198]
                %256 = vst [vmem:[%s206 + $0x60] sm:%s198] %v255
                %v257 = vld [vmem:[%s205 + $0xc4] sm:%s198]
                %258 = vst [vmem:[%s206 + $0x64] sm:%s198] %v257
                %v259 = vld [vmem:[%s205 + $0xc8] sm:%s198]
                %260 = vst [vmem:[%s206 + $0x68] sm:%s198] %v259
                %v261 = vld [vmem:[%s205 + $0xcc] sm:%s198]
                %262 = vst [vmem:[%s206 + $0x6c] sm:%s198] %v261
                %v263 = vld [vmem:[%s205 + $0xd0] sm:%s198]
                %264 = vst [vmem:[%s206 + $0x70] sm:%s198] %v263
                %v265 = vld [vmem:[%s205 + $0xd4] sm:%s198]
                %266 = vst [vmem:[%s206 + $0x74] sm:%s198] %v265
                %v267 = vld [vmem:[%s205 + $0xd8] sm:%s198]
                %268 = vst [vmem:[%s206 + $0x78] sm:%s198] %v267
                %v269 = vld [vmem:[%s205 + $0xdc] sm:%s198]
                %270 = vst [vmem:[%s206 + $0x7c] sm:%s198] %v269
              $region53: #{tpu_custom_call.1} parent=47 // loop_footer
                %s204 = sadd.s32 1, %s200
              $region54: #{tpu_custom_call.1} parent=47 // loop_footer_branch
                %199 = sbr.rel target = $region50
              $region55: #{tpu_custom_call.1} parent=47 // loop_exit
                _
            $region48: #{tpu_custom_call.1} parent=39 // pred_fallthru
              _
          $region40: #{tpu_custom_call.1} parent=35 // pred_fallthru
            _
          %355 = vnop
        $region36: #{tpu_custom_call.1} parent=31 // pred_fallthru
          _
      $region32: #{tpu_custom_call.1} parent=5 // pred_fallthru
        _
      %p356 = scmp.le.s32.totalorder 1, %s14
      %p357 = scmp.lt.s32.totalorder %s14, 3
      %p358 = pnand %p356, %p357
      %p359 = pneg %p358
      // Predicated region
      $region74: #{tpu_custom_call.1} parent=5 // pred_check
        _
      $region75: #{tpu_custom_call.1} parent=5 // pred_check_branch
        %361 = sbr.rel (%p358) target = $region77
      $region76: #{tpu_custom_call.1} parent=5 // pred_region
        %s362 = ssub.s32 %s14, 1
        %s363 = sand.u32 %s27, 1
        %s364 = sand.u32 %s27, 1
        %s365 = smul.addr %s364, 128
        %s366 = scalar_lea.vmem [#allocation4], %s365
        // Predicated region
        $region78: #{tpu_custom_call.1} parent=76 // pred_check
          %p367 = pneg %p40
        $region79: #{tpu_custom_call.1} parent=76 // pred_check_branch
          %369 = sbr.rel (%p367) target = $region81
        $region80: #{tpu_custom_call.1} parent=76 // pred_region
          _
        $region81: #{tpu_custom_call.1} parent=76 // pred_fallthru
          _
        %s370 = sand.u32 %s27, 1
        %s371 = sand.u32 %s27, 1
        %s372 = smul.addr %s371, 128
        %s373 = scalar_lea.vmem [#allocation4], %s372
        %p374 = pneg %p40
        %p375 = pneg %p37
        %p376 = pneg %p61
        %p377 = pneg %p58
        %p378 = pneg %p82
        %p379 = pneg %p79
        %p380 = pneg %p103
        %p381 = pneg %p100
        %p382 = pneg %p124
        %p383 = pneg %p121
        %p384 = pneg %p150
        %p385 = pneg %p147
        %s386 = sand.u32 %s137, 1
        %s387 = scalar_lea.sflag [#allocation6], %s386
        %s388 = sand.u32 %s137, 1
        %s389 = smul.addr %s388, 8
        %s390 = scalar_lea.vmem [#allocation5], %s389
        %v392 = vld [vmem:[%s366] sm:$0xf]
        %v393 = vld [vmem:[%s366 + $0x4] sm:$0xf]
        %v394 = vld [vmem:[%s366 + $0x8] sm:$0xf]
        %v395 = vld [vmem:[%s366 + $0xc] sm:$0xf]
        %v396 = vld [vmem:[%s366 + $0x10] sm:$0xf]
        %v397 = vld [vmem:[%s366 + $0x14] sm:$0xf]
        %v398 = vld [vmem:[%s366 + $0x18] sm:$0xf]
        %v399 = vld [vmem:[%s366 + $0x1c] sm:$0xf]
        %s400 = scalar_lea.vmem %s366, 32 [#allocation4]
        %v401 = vld [vmem:[%s400] sm:$0xf]
        %v402 = vld [vmem:[%s400 + $0x4] sm:$0xf]
        %v403 = vld [vmem:[%s400 + $0x8] sm:$0xf]
        %v404 = vld [vmem:[%s400 + $0xc] sm:$0xf]
        %v405 = vld [vmem:[%s400 + $0x10] sm:$0xf]
        %v406 = vld [vmem:[%s400 + $0x14] sm:$0xf]
        %v407 = vld [vmem:[%s400 + $0x18] sm:$0xf]
        %v408 = vld [vmem:[%s400 + $0x1c] sm:$0xf]
        %v409 = vunpack.c.l.bf16 %v392
        %v410 = vunpack.c.l.bf16 %v393
        %v411 = vunpack.c.l.bf16 %v394
        %v412 = vunpack.c.l.bf16 %v395
        %v413 = vunpack.c.l.bf16 %v396
        %v414 = vunpack.c.l.bf16 %v397
        %v415 = vunpack.c.l.bf16 %v398
        %v416 = vunpack.c.l.bf16 %v399
        %v417 = vunpack.c.l.bf16 %v401
        %v418 = vunpack.c.l.bf16 %v402
        %v419 = vunpack.c.l.bf16 %v403
        %v420 = vunpack.c.l.bf16 %v404
        %v421 = vunpack.c.l.bf16 %v405
        %v422 = vunpack.c.l.bf16 %v406
        %v423 = vunpack.c.l.bf16 %v407
        %v424 = vunpack.c.l.bf16 %v408
        %v425 = vmax.f32 %v409, %v417
        %v426 = vmax.f32 %v410, %v418
        %v427 = vmax.f32 %v411, %v419
        %v428 = vmax.f32 %v412, %v420
        %v429 = vmax.f32 %v413, %v421
        %v430 = vmax.f32 %v414, %v422
        %v431 = vmax.f32 %v415, %v423
        %v432 = vmax.f32 %v416, %v424
        %v433 = vpack.c.bf16 %v425, %v425
        %v434 = vpack.c.bf16 %v426, %v426
        %v435 = vpack.c.bf16 %v427, %v427
        %v436 = vpack.c.bf16 %v428, %v428
        %v437 = vpack.c.bf16 %v429, %v429
        %v438 = vpack.c.bf16 %v430, %v430
        %v439 = vpack.c.bf16 %v431, %v431
        %v440 = vpack.c.bf16 %v432, %v432
        %s441 = scalar_lea.vmem %s366, 64 [#allocation4]
        %v442 = vld [vmem:[%s441] sm:$0xf]
        %v443 = vld [vmem:[%s441 + $0x4] sm:$0xf]
        %v444 = vld [vmem:[%s441 + $0x8] sm:$0xf]
        %v445 = vld [vmem:[%s441 + $0xc] sm:$0xf]
        %v446 = vld [vmem:[%s441 + $0x10] sm:$0xf]
        %v447 = vld [vmem:[%s441 + $0x14] sm:$0xf]
        %v448 = vld [vmem:[%s441 + $0x18] sm:$0xf]
        %v449 = vld [vmem:[%s441 + $0x1c] sm:$0xf]
        %s450 = scalar_lea.vmem %s366, 96 [#allocation4]
        %v451 = vld [vmem:[%s450] sm:$0xf]
        %v452 = vld [vmem:[%s450 + $0x4] sm:$0xf]
        %v453 = vld [vmem:[%s450 + $0x8] sm:$0xf]
        %v454 = vld [vmem:[%s450 + $0xc] sm:$0xf]
        %v455 = vld [vmem:[%s450 + $0x10] sm:$0xf]
        %v456 = vld [vmem:[%s450 + $0x14] sm:$0xf]
        %v457 = vld [vmem:[%s450 + $0x18] sm:$0xf]
        %v458 = vld [vmem:[%s450 + $0x1c] sm:$0xf]
        %v459 = vunpack.c.l.bf16 %v442
        %v460 = vunpack.c.l.bf16 %v443
        %v461 = vunpack.c.l.bf16 %v444
        %v462 = vunpack.c.l.bf16 %v445
        %v463 = vunpack.c.l.bf16 %v446
        %v464 = vunpack.c.l.bf16 %v447
        %v465 = vunpack.c.l.bf16 %v448
        %v466 = vunpack.c.l.bf16 %v449
        %v467 = vunpack.c.l.bf16 %v451
        %v468 = vunpack.c.l.bf16 %v452
        %v469 = vunpack.c.l.bf16 %v453
        %v470 = vunpack.c.l.bf16 %v454
        %v471 = vunpack.c.l.bf16 %v455
        %v472 = vunpack.c.l.bf16 %v456
        %v473 = vunpack.c.l.bf16 %v457
        %v474 = vunpack.c.l.bf16 %v458
        %v475 = vmax.f32 %v459, %v467
        %v476 = vmax.f32 %v460, %v468
        %v477 = vmax.f32 %v461, %v469
        %v478 = vmax.f32 %v462, %v470
        %v479 = vmax.f32 %v463, %v471
        %v480 = vmax.f32 %v464, %v472
        %v481 = vmax.f32 %v465, %v473
        %v482 = vmax.f32 %v466, %v474
        %v483 = vpack.c.bf16 %v475, %v475
        %v484 = vpack.c.bf16 %v476, %v476
        %v485 = vpack.c.bf16 %v477, %v477
        %v486 = vpack.c.bf16 %v478, %v478
        %v487 = vpack.c.bf16 %v479, %v479
        %v488 = vpack.c.bf16 %v480, %v480
        %v489 = vpack.c.bf16 %v481, %v481
        %v490 = vpack.c.bf16 %v482, %v482
        %v491 = vunpack.c.l.bf16 %v433
        %v492 = vunpack.c.l.bf16 %v434
        %v493 = vunpack.c.l.bf16 %v435
        %v494 = vunpack.c.l.bf16 %v436
        %v495 = vunpack.c.l.bf16 %v437
        %v496 = vunpack.c.l.bf16 %v438
        %v497 = vunpack.c.l.bf16 %v439
        %v498 = vunpack.c.l.bf16 %v440
        %v499 = vunpack.c.l.bf16 %v483
        %v500 = vunpack.c.l.bf16 %v484
        %v501 = vunpack.c.l.bf16 %v485
        %v502 = vunpack.c.l.bf16 %v486
        %v503 = vunpack.c.l.bf16 %v487
        %v504 = vunpack.c.l.bf16 %v488
        %v505 = vunpack.c.l.bf16 %v489
        %v506 = vunpack.c.l.bf16 %v490
        %v507 = vmax.f32 %v491, %v499
        %v508 = vmax.f32 %v492, %v500
        %v509 = vmax.f32 %v493, %v501
        %v510 = vmax.f32 %v494, %v502
        %v511 = vmax.f32 %v495, %v503
        %v512 = vmax.f32 %v496, %v504
        %v513 = vmax.f32 %v497, %v505
        %v514 = vmax.f32 %v498, %v506
        %v515 = vpack.c.bf16 %v507, %v507
        %v516 = vpack.c.bf16 %v508, %v508
        %v517 = vpack.c.bf16 %v509, %v509
        %v518 = vpack.c.bf16 %v510, %v510
        %v519 = vpack.c.bf16 %v511, %v511
        %v520 = vpack.c.bf16 %v512, %v512
        %v521 = vpack.c.bf16 %v513, %v513
        %v522 = vpack.c.bf16 %v514, %v514
        %vm523 = vcmask 27648
        %524 = vst.msk [vmem:[#allocation2] sm:$0xf] %vm523, 0
        %vm525 = vcmask 24576
        %526 = vst.msk [vmem:[#allocation2 + $0x4] sm:$0x1] %vm525, 0
        %s527 = scalar_lea.vmem [#allocation2], 72
        %528 = vst.msk [vmem:[%s527] sm:$0xf] %vm523, 0
        %529 = vst.msk [vmem:[%s527 + $0x4] sm:$0x1] %vm525, 0
        %vm530 = vcmask 24576
        %vm531 = vsmask.f32 256
        %vm532 = vmand %vm530, %vm531
        %v533 = vld [vmem:[#allocation2] sm:$0x1]
        %v534 = vsel %vm532, 0, %v533
        %535 = vst [vmem:[#allocation2] sm:$0x1] %v534
        %v536 = vld [vmem:[#allocation2 + $0x8] sm:$0x1]
        %v537 = vsel %vm532, 0, %v536
        %538 = vst [vmem:[#allocation2 + $0x8] sm:$0x1] %v537
        %v539 = vld [vmem:[#allocation2 + $0x10] sm:$0x1]
        %v540 = vsel %vm532, 0, %v539
        %541 = vst [vmem:[#allocation2 + $0x10] sm:$0x1] %v540
        %v542 = vld [vmem:[#allocation2 + $0x18] sm:$0x1]
        %v543 = vsel %vm532, 0, %v542
        %544 = vst [vmem:[#allocation2 + $0x18] sm:$0x1] %v543
        %v545 = vld [vmem:[#allocation2 + $0x20] sm:$0x1]
        %v546 = vsel %vm532, 0, %v545
        %547 = vst [vmem:[#allocation2 + $0x20] sm:$0x1] %v546
        %v548 = vld [vmem:[#allocation2 + $0x28] sm:$0x1]
        %v549 = vsel %vm532, 0, %v548
        %550 = vst [vmem:[#allocation2 + $0x28] sm:$0x1] %v549
        %v551 = vld [vmem:[#allocation2 + $0x30] sm:$0x1]
        %v552 = vsel %vm532, 0, %v551
        %553 = vst [vmem:[#allocation2 + $0x30] sm:$0x1] %v552
        %v554 = vld [vmem:[#allocation2 + $0x38] sm:$0x1]
        %v555 = vsel %vm532, 0, %v554
        %556 = vst [vmem:[#allocation2 + $0x38] sm:$0x1] %v555
        %v557 = vld [vmem:[#allocation2 + $0x40] sm:$0x1]
        %v558 = vsel %vm532, 0, %v557
        %559 = vst [vmem:[#allocation2 + $0x40] sm:$0x1] %v558
        %v560 = vld [vmem:[#allocation2 + $0x48] sm:$0x1]
        %v561 = vsel %vm532, 0, %v560
        %562 = vst [vmem:[#allocation2 + $0x48] sm:$0x1] %v561
        %vm563 = vsmask.f32 7938
        %vm564 = vmand %vm530, %vm563
        %v565 = vld [vmem:[#allocation2 + $0x4] sm:$0x1]
        %v566 = vsel %vm564, 0, %v565
        %567 = vst [vmem:[#allocation2 + $0x4] sm:$0x1] %v566
        %v568 = vld [vmem:[#allocation2 + $0xc] sm:$0x1]
        %v569 = vsel %vm564, 0, %v568
        %570 = vst [vmem:[#allocation2 + $0xc] sm:$0x1] %v569
        %v571 = vld [vmem:[#allocation2 + $0x14] sm:$0x1]
        %v572 = vsel %vm564, 0, %v571
        %573 = vst [vmem:[#allocation2 + $0x14] sm:$0x1] %v572
        %v574 = vld [vmem:[#allocation2 + $0x1c] sm:$0x1]
        %v575 = vsel %vm564, 0, %v574
        %576 = vst [vmem:[#allocation2 + $0x1c] sm:$0x1] %v575
        %v577 = vld [vmem:[#allocation2 + $0x24] sm:$0x1]
        %v578 = vsel %vm564, 0, %v577
        %579 = vst [vmem:[#allocation2 + $0x24] sm:$0x1] %v578
        %v580 = vld [vmem:[#allocation2 + $0x2c] sm:$0x1]
        %v581 = vsel %vm564, 0, %v580
        %582 = vst [vmem:[#allocation2 + $0x2c] sm:$0x1] %v581
        %v583 = vld [vmem:[#allocation2 + $0x34] sm:$0x1]
        %v584 = vsel %vm564, 0, %v583
        %585 = vst [vmem:[#allocation2 + $0x34] sm:$0x1] %v584
        %v586 = vld [vmem:[#allocation2 + $0x3c] sm:$0x1]
        %v587 = vsel %vm564, 0, %v586
        %588 = vst [vmem:[#allocation2 + $0x3c] sm:$0x1] %v587
        %v589 = vld [vmem:[#allocation2 + $0x44] sm:$0x1]
        %v590 = vsel %vm564, 0, %v589
        %591 = vst [vmem:[#allocation2 + $0x44] sm:$0x1] %v590
        %v592 = vld [vmem:[#allocation2 + $0x4c] sm:$0x1]
        %v593 = vsel %vm564, 0, %v592
        %594 = vst [vmem:[#allocation2 + $0x4c] sm:$0x1] %v593
        %v596 = vshrl.u32 %v515, 16
        %v598 = vrot.slane %v596, 7
        %v599 = vshll.u32 %v515, 16
        %v601 = vor.u32 %v598, %v599
        %v602 = vrot.slane %v598, 4
        %v604 = vshrl.u32 %v516, 16
        %v606 = vrot.slane %v604, 7
        %v607 = vshll.u32 %v516, 16
        %v609 = vor.u32 %v606, %v607
        %v610 = vrot.slane %v606, 4
        %v612 = vshrl.u32 %v517, 16
        %v614 = vrot.slane %v612, 7
        %v615 = vshll.u32 %v517, 16
        %v617 = vor.u32 %v614, %v615
        %v618 = vrot.slane %v614, 4
        %v620 = vshrl.u32 %v518, 16
        %v622 = vrot.slane %v620, 7
        %v623 = vshll.u32 %v518, 16
        %v625 = vor.u32 %v622, %v623
        %v626 = vrot.slane %v622, 4
        %v628 = vshrl.u32 %v519, 16
        %v630 = vrot.slane %v628, 7
        %v631 = vshll.u32 %v519, 16
        %v633 = vor.u32 %v630, %v631
        %v634 = vrot.slane %v630, 4
        %v636 = vshrl.u32 %v520, 16
        %v638 = vrot.slane %v636, 7
        %v639 = vshll.u32 %v520, 16
        %v641 = vor.u32 %v638, %v639
        %v642 = vrot.slane %v638, 4
        %v644 = vshrl.u32 %v521, 16
        %v646 = vrot.slane %v644, 7
        %v647 = vshll.u32 %v521, 16
        %v649 = vor.u32 %v646, %v647
        %v650 = vrot.slane %v646, 4
        %v652 = vshrl.u32 %v522, 16
        %v654 = vrot.slane %v652, 7
        %v655 = vshll.u32 %v522, 16
        %v657 = vor.u32 %v654, %v655
        %v658 = vrot.slane %v654, 4
        %s675 = scalar_lea.vmem [#allocation2], 8
        %vm676 = vcmask 27648
        %vm677 = vmand %vm676, %vm563
        %v678 = vld [vmem:[%s675] sm:$0xf]
        %v679 = vsel %vm677, %v601, %v678
        %680 = vst [vmem:[%s675] sm:$0xf] %v679
        %v681 = vld [vmem:[%s675 + $0x4] sm:$0x1]
        %v682 = vsel %vm532, %v602, %v681
        %683 = vst [vmem:[%s675 + $0x4] sm:$0x1] %v682
        %v684 = vld [vmem:[%s675 + $0x8] sm:$0xf]
        %v685 = vsel %vm677, %v609, %v684
        %686 = vst [vmem:[%s675 + $0x8] sm:$0xf] %v685
        %v687 = vld [vmem:[%s675 + $0xc] sm:$0x1]
        %v688 = vsel %vm532, %v610, %v687
        %689 = vst [vmem:[%s675 + $0xc] sm:$0x1] %v688
        %v690 = vld [vmem:[%s675 + $0x10] sm:$0xf]
        %v691 = vsel %vm677, %v617, %v690
        %692 = vst [vmem:[%s675 + $0x10] sm:$0xf] %v691
        %v693 = vld [vmem:[%s675 + $0x14] sm:$0x1]
        %v694 = vsel %vm532, %v618, %v693
        %695 = vst [vmem:[%s675 + $0x14] sm:$0x1] %v694
        %v696 = vld [vmem:[%s675 + $0x18] sm:$0xf]
        %v697 = vsel %vm677, %v625, %v696
        %698 = vst [vmem:[%s675 + $0x18] sm:$0xf] %v697
        %v699 = vld [vmem:[%s675 + $0x1c] sm:$0x1]
        %v700 = vsel %vm532, %v626, %v699
        %701 = vst [vmem:[%s675 + $0x1c] sm:$0x1] %v700
        %v702 = vld [vmem:[%s675 + $0x20] sm:$0xf]
        %v703 = vsel %vm677, %v633, %v702
        %704 = vst [vmem:[%s675 + $0x20] sm:$0xf] %v703
        %v705 = vld [vmem:[%s675 + $0x24] sm:$0x1]
        %v706 = vsel %vm532, %v634, %v705
        %707 = vst [vmem:[%s675 + $0x24] sm:$0x1] %v706
        %v708 = vld [vmem:[%s675 + $0x28] sm:$0xf]
        %v709 = vsel %vm677, %v641, %v708
        %710 = vst [vmem:[%s675 + $0x28] sm:$0xf] %v709
        %v711 = vld [vmem:[%s675 + $0x2c] sm:$0x1]
        %v712 = vsel %vm532, %v642, %v711
        %713 = vst [vmem:[%s675 + $0x2c] sm:$0x1] %v712
        %v714 = vld [vmem:[%s675 + $0x30] sm:$0xf]
        %v715 = vsel %vm677, %v649, %v714
        %716 = vst [vmem:[%s675 + $0x30] sm:$0xf] %v715
        %v717 = vld [vmem:[%s675 + $0x34] sm:$0x1]
        %v718 = vsel %vm532, %v650, %v717
        %719 = vst [vmem:[%s675 + $0x34] sm:$0x1] %v718
        %v720 = vld [vmem:[%s675 + $0x38] sm:$0xf]
        %v721 = vsel %vm677, %v657, %v720
        %722 = vst [vmem:[%s675 + $0x38] sm:$0xf] %v721
        %v723 = vld [vmem:[%s675 + $0x3c] sm:$0x1]
        %v724 = vsel %vm532, %v658, %v723
        %725 = vst [vmem:[%s675 + $0x3c] sm:$0x1] %v724
        %v726 = vld [vmem:[#allocation2] sm:$0xf]
        %v727 = vld [vmem:[#allocation2 + $0x8] sm:$0xf]
        %v728 = vld [vmem:[#allocation2 + $0x10] sm:$0xf]
        %v729 = vld [vmem:[#allocation2 + $0x18] sm:$0xf]
        %v730 = vld [vmem:[#allocation2 + $0x20] sm:$0xf]
        %v731 = vld [vmem:[#allocation2 + $0x28] sm:$0xf]
        %v732 = vld [vmem:[#allocation2 + $0x30] sm:$0xf]
        %v733 = vld [vmem:[#allocation2 + $0x38] sm:$0xf]
        %v734 = vld [vmem:[%s1] sm:$0x3]
        %v735 = vld [vmem:[#allocation2 + $0x4] sm:$0x1]
        %v736 = vld [vmem:[#allocation2 + $0xc] sm:$0x1]
        %v737 = vld [vmem:[#allocation2 + $0x14] sm:$0x1]
        %v738 = vld [vmem:[#allocation2 + $0x1c] sm:$0x1]
        %v739 = vld [vmem:[#allocation2 + $0x24] sm:$0x1]
        %v740 = vld [vmem:[#allocation2 + $0x2c] sm:$0x1]
        %v741 = vld [vmem:[#allocation2 + $0x34] sm:$0x1]
        %v742 = vld [vmem:[#allocation2 + $0x3c] sm:$0x1]
        %vm743 = vsmask.f32 3328
        %vm744 = vsmask.f32 7440
        %vm745 = vmor %vm743, %vm744
        %v747 = vshrl.u32 %v726, 16
        %v749 = vrot.slane %v747, 4
        %v750 = vshll.u32 %v726, 16
        %v752 = vrot.slane %v750, 5
        %v753 = vor.u32 %v749, %v752
        %v754 = vrot.slane %v753, 4
        %v756 = vshll.u32 %v735, 16
        %v758 = vrot.slane %v756, 5
        %v759 = vsel %vm745, %v754, %v758
        %v761 = vshrl.u32 %v727, 16
        %v763 = vrot.slane %v761, 4
        %v764 = vshll.u32 %v727, 16
        %v766 = vrot.slane %v764, 5
        %v767 = vor.u32 %v763, %v766
        %v768 = vrot.slane %v767, 4
        %v770 = vshll.u32 %v736, 16
        %v772 = vrot.slane %v770, 5
        %v773 = vsel %vm745, %v768, %v772
        %v775 = vshrl.u32 %v728, 16
        %v777 = vrot.slane %v775, 4
        %v778 = vshll.u32 %v728, 16
        %v780 = vrot.slane %v778, 5
        %v781 = vor.u32 %v777, %v780
        %v782 = vrot.slane %v781, 4
        %v784 = vshll.u32 %v737, 16
        %v786 = vrot.slane %v784, 5
        %v787 = vsel %vm745, %v782, %v786
        %v789 = vshrl.u32 %v729, 16
        %v791 = vrot.slane %v789, 4
        %v792 = vshll.u32 %v729, 16
        %v794 = vrot.slane %v792, 5
        %v795 = vor.u32 %v791, %v794
        %v796 = vrot.slane %v795, 4
        %v798 = vshll.u32 %v738, 16
        %v800 = vrot.slane %v798, 5
        %v801 = vsel %vm745, %v796, %v800
        %v803 = vshrl.u32 %v730, 16
        %v805 = vrot.slane %v803, 4
        %v806 = vshll.u32 %v730, 16
        %v808 = vrot.slane %v806, 5
        %v809 = vor.u32 %v805, %v808
        %v810 = vrot.slane %v809, 4
        %v812 = vshll.u32 %v739, 16
        %v814 = vrot.slane %v812, 5
        %v815 = vsel %vm745, %v810, %v814
        %v817 = vshrl.u32 %v731, 16
        %v819 = vrot.slane %v817, 4
        %v820 = vshll.u32 %v731, 16
        %v822 = vrot.slane %v820, 5
        %v823 = vor.u32 %v819, %v822
        %v824 = vrot.slane %v823, 4
        %v826 = vshll.u32 %v740, 16
        %v828 = vrot.slane %v826, 5
        %v829 = vsel %vm745, %v824, %v828
        %v831 = vshrl.u32 %v732, 16
        %v833 = vrot.slane %v831, 4
        %v834 = vshll.u32 %v732, 16
        %v836 = vrot.slane %v834, 5
        %v837 = vor.u32 %v833, %v836
        %v838 = vrot.slane %v837, 4
        %v840 = vshll.u32 %v741, 16
        %v842 = vrot.slane %v840, 5
        %v843 = vsel %vm745, %v838, %v842
        %v845 = vshrl.u32 %v733, 16
        %v847 = vrot.slane %v845, 4
        %v848 = vshll.u32 %v733, 16
        %v850 = vrot.slane %v848, 5
        %v851 = vor.u32 %v847, %v850
        %v852 = vrot.slane %v851, 4
        %v854 = vshll.u32 %v742, 16
        %v856 = vrot.slane %v854, 5
        %v857 = vsel %vm745, %v852, %v856
        %s858 = scalar_lea.vmem %s1, 2
        %v859 = vld [vmem:[%s858] sm:$0x3]
        %v860 = vunpack.c.l.b16 %v759
        %v861 = vunpack.c.l.b16 %v773
        %v862 = vunpack.c.l.b16 %v787
        %v863 = vunpack.c.l.b16 %v801
        %v864 = vunpack.c.l.b16 %v815
        %v865 = vunpack.c.l.b16 %v829
        %v866 = vunpack.c.l.b16 %v843
        %v867 = vunpack.c.l.b16 %v857
        %v868 = vpack.c.b16 %v861, %v860
        %v869 = vpack.c.b16 %v863, %v862
        %v870 = vpack.c.b16 %v865, %v864
        %v871 = vpack.c.b16 %v867, %v866
        %vm872 = vcmask 31744
        %v874 = vsel %vm872, %v868, 0
        %v877 = vsel %vm872, %v869, 0
        %v880 = vsel %vm872, %v870, 0
        %v883 = vsel %vm872, %v871, 0
        %vm885 = vcmask 1041408
        %v887 = vsel %vm885, %v859, 0
        %889 = vmatpush.bf16.msra.mxu0 0
        %890 = vmatpush.bf16.msra.mxu0 0
        %891 = vmatpush.bf16.msra.mxu0 0
        %892 = vmatpush.bf16.msra.mxu0 0
        %893 = vmatpush.bf16.msra.mxu0 0
        %894 = vmatpush.bf16.msra.mxu0 0
        %895 = vmatpush.bf16.msra.mxu0 0
        %896 = vmatpush.bf16.msra.mxu0 %v887
        %897 = vmatmul.bf16.gmra.mxu0 %v874
        %v898 = vpop.f32.mrf.mxu0
        %v899 = vadd.f32 0.0, %v898
        %v900 = vpop.f32.mrf.mxu0
        %v901 = vadd.f32 0.0, %v900
        %902 = vmatmul.bf16.gmra.mxu0 %v877
        %v903 = vpop.f32.mrf.mxu0
        %v904 = vadd.f32 0.0, %v903
        %v905 = vpop.f32.mrf.mxu0
        %v906 = vadd.f32 0.0, %v905
        %907 = vmatmul.bf16.gmra.mxu0 %v880
        %v908 = vpop.f32.mrf.mxu0
        %v909 = vadd.f32 0.0, %v908
        %v910 = vpop.f32.mrf.mxu0
        %v911 = vadd.f32 0.0, %v910
        %912 = vmatmul.bf16.gmra.mxu0 %v883
        %v913 = vpop.f32.mrf.mxu0
        %v914 = vadd.f32 0.0, %v913
        %v915 = vpop.f32.mrf.mxu0
        %v916 = vadd.f32 0.0, %v915
        %917 = vdwg.mxu0
        %v926 = vunpack.c.l.b16 %v726
        %v927 = vunpack.c.l.b16 %v727
        %v928 = vunpack.c.l.b16 %v728
        %v929 = vunpack.c.l.b16 %v729
        %v930 = vunpack.c.l.b16 %v730
        %v931 = vunpack.c.l.b16 %v731
        %v932 = vunpack.c.l.b16 %v732
        %v933 = vunpack.c.l.b16 %v733
        %v934 = vpack.c.b16 %v927, %v926
        %v935 = vpack.c.b16 %v929, %v928
        %v936 = vpack.c.b16 %v931, %v930
        %v937 = vpack.c.b16 %v933, %v932
        %v939 = vsel %vm872, %v934, 0
        %v942 = vsel %vm872, %v935, 0
        %v945 = vsel %vm872, %v936, 0
        %v948 = vsel %vm872, %v937, 0
        %v951 = vsel %vm885, %v734, 0
        %953 = vmatpush.bf16.msra.mxu0 0
        %954 = vmatpush.bf16.msra.mxu0 0
        %955 = vmatpush.bf16.msra.mxu0 0
        %956 = vmatpush.bf16.msra.mxu0 0
        %957 = vmatpush.bf16.msra.mxu0 0
        %958 = vmatpush.bf16.msra.mxu0 0
        %959 = vmatpush.bf16.msra.mxu0 0
        %960 = vmatpush.bf16.msra.mxu0 %v951
        %961 = vmatmul.bf16.gmra.mxu0 %v939
        %v962 = vpop.f32.mrf.mxu0
        %v963 = vadd.f32 %v899, %v962
        %v964 = vpop.f32.mrf.mxu0
        %v965 = vadd.f32 %v901, %v964
        %966 = vmatmul.bf16.gmra.mxu0 %v942
        %v967 = vpop.f32.mrf.mxu0
        %v968 = vadd.f32 %v904, %v967
        %v969 = vpop.f32.mrf.mxu0
        %v970 = vadd.f32 %v906, %v969
        %971 = vmatmul.bf16.gmra.mxu0 %v945
        %v972 = vpop.f32.mrf.mxu0
        %v973 = vadd.f32 %v909, %v972
        %v974 = vpop.f32.mrf.mxu0
        %v975 = vadd.f32 %v911, %v974
        %976 = vmatmul.bf16.gmra.mxu0 %v948
        %v977 = vpop.f32.mrf.mxu0
        %v978 = vadd.f32 %v914, %v977
        %v979 = vpop.f32.mrf.mxu0
        %v980 = vadd.f32 %v916, %v979
        %981 = vdwg.mxu0
        %v982 = vld [vmem:[#allocation2] sm:$0xe]
        %v983 = vld [vmem:[#allocation2 + $0x8] sm:$0xe]
        %v984 = vld [vmem:[#allocation2 + $0x10] sm:$0xe]
        %v985 = vld [vmem:[#allocation2 + $0x18] sm:$0xe]
        %v986 = vld [vmem:[#allocation2 + $0x20] sm:$0xe]
        %v987 = vld [vmem:[#allocation2 + $0x28] sm:$0xe]
        %v988 = vld [vmem:[#allocation2 + $0x30] sm:$0xe]
        %v989 = vld [vmem:[#allocation2 + $0x38] sm:$0xe]
        %vm1006 = vcmask 1042432
        %vm1007 = vcmask 1046532
        %vm1008 = vmor %vm1006, %vm1007
        %v1009 = vrot.slane %v982, 5
        %v1010 = vrot.slane %v1009, 4
        %v1011 = vrot.slane %v735, 5
        %v1012 = vsel %vm1008, %v1010, %v1011
        %v1013 = vrot.slane %v983, 5
        %v1014 = vrot.slane %v1013, 4
        %v1015 = vrot.slane %v736, 5
        %v1016 = vsel %vm1008, %v1014, %v1015
        %v1017 = vrot.slane %v984, 5
        %v1018 = vrot.slane %v1017, 4
        %v1019 = vrot.slane %v737, 5
        %v1020 = vsel %vm1008, %v1018, %v1019
        %v1021 = vrot.slane %v985, 5
        %v1022 = vrot.slane %v1021, 4
        %v1023 = vrot.slane %v738, 5
        %v1024 = vsel %vm1008, %v1022, %v1023
        %v1025 = vrot.slane %v986, 5
        %v1026 = vrot.slane %v1025, 4
        %v1027 = vrot.slane %v739, 5
        %v1028 = vsel %vm1008, %v1026, %v1027
        %v1029 = vrot.slane %v987, 5
        %v1030 = vrot.slane %v1029, 4
        %v1031 = vrot.slane %v740, 5
        %v1032 = vsel %vm1008, %v1030, %v1031
        %v1033 = vrot.slane %v988, 5
        %v1034 = vrot.slane %v1033, 4
        %v1035 = vrot.slane %v741, 5
        %v1036 = vsel %vm1008, %v1034, %v1035
        %v1037 = vrot.slane %v989, 5
        %v1038 = vrot.slane %v1037, 4
        %v1039 = vrot.slane %v742, 5
        %v1040 = vsel %vm1008, %v1038, %v1039
        %s1041 = scalar_lea.vmem %s1, 4
        %v1042 = vld [vmem:[%s1041] sm:$0x3]
        %v1043 = vunpack.c.l.b16 %v1012
        %v1044 = vunpack.c.l.b16 %v1016
        %v1045 = vunpack.c.l.b16 %v1020
        %v1046 = vunpack.c.l.b16 %v1024
        %v1047 = vunpack.c.l.b16 %v1028
        %v1048 = vunpack.c.l.b16 %v1032
        %v1049 = vunpack.c.l.b16 %v1036
        %v1050 = vunpack.c.l.b16 %v1040
        %v1051 = vpack.c.b16 %v1044, %v1043
        %v1052 = vpack.c.b16 %v1046, %v1045
        %v1053 = vpack.c.b16 %v1048, %v1047
        %v1054 = vpack.c.b16 %v1050, %v1049
        %v1056 = vsel %vm872, %v1051, 0
        %v1059 = vsel %vm872, %v1052, 0
        %v1062 = vsel %vm872, %v1053, 0
        %v1065 = vsel %vm872, %v1054, 0
        %v1068 = vsel %vm885, %v1042, 0
        %1070 = vmatpush.bf16.msra.mxu0 0
        %1071 = vmatpush.bf16.msra.mxu0 0
        %1072 = vmatpush.bf16.msra.mxu0 0
        %1073 = vmatpush.bf16.msra.mxu0 0
        %1074 = vmatpush.bf16.msra.mxu0 0
        %1075 = vmatpush.bf16.msra.mxu0 0
        %1076 = vmatpush.bf16.msra.mxu0 0
        %1077 = vmatpush.bf16.msra.mxu0 %v1068
        %1078 = vmatmul.bf16.gmra.mxu0 %v1056
        %v1079 = vpop.f32.mrf.mxu0
        %v1080 = vadd.f32 0.0, %v1079
        %v1081 = vpop.f32.mrf.mxu0
        %v1082 = vadd.f32 0.0, %v1081
        %1083 = vmatmul.bf16.gmra.mxu0 %v1059
        %v1084 = vpop.f32.mrf.mxu0
        %v1085 = vadd.f32 0.0, %v1084
        %v1086 = vpop.f32.mrf.mxu0
        %v1087 = vadd.f32 0.0, %v1086
        %1088 = vmatmul.bf16.gmra.mxu0 %v1062
        %v1089 = vpop.f32.mrf.mxu0
        %v1090 = vadd.f32 0.0, %v1089
        %v1091 = vpop.f32.mrf.mxu0
        %v1092 = vadd.f32 0.0, %v1091
        %1093 = vmatmul.bf16.gmra.mxu0 %v1065
        %v1094 = vpop.f32.mrf.mxu0
        %v1095 = vadd.f32 0.0, %v1094
        %v1096 = vpop.f32.mrf.mxu0
        %v1097 = vadd.f32 0.0, %v1096
        %1098 = vdwg.mxu0
        %v1099 = vadd.f32 %v963, %v1080
        %v1100 = vadd.f32 %v965, %v1082
        %v1101 = vadd.f32 %v968, %v1085
        %v1102 = vadd.f32 %v970, %v1087
        %v1103 = vadd.f32 %v973, %v1090
        %v1104 = vadd.f32 %v975, %v1092
        %v1105 = vadd.f32 %v978, %v1095
        %v1106 = vadd.f32 %v980, %v1097
        %v1107 = vld [vmem:[%s675] sm:$0xf]
        %v1108 = vld [vmem:[%s675 + $0x8] sm:$0xf]
        %v1109 = vld [vmem:[%s675 + $0x10] sm:$0xf]
        %v1110 = vld [vmem:[%s675 + $0x18] sm:$0xf]
        %v1111 = vld [vmem:[%s675 + $0x20] sm:$0xf]
        %v1112 = vld [vmem:[%s675 + $0x28] sm:$0xf]
        %v1113 = vld [vmem:[%s675 + $0x30] sm:$0xf]
        %v1114 = vld [vmem:[%s675 + $0x38] sm:$0xf]
        %s1115 = scalar_lea.vmem %s1, 6
        %v1116 = vld [vmem:[%s1115] sm:$0x3]
        %v1125 = vunpack.c.l.b16 %v1107
        %v1126 = vunpack.c.l.b16 %v1108
        %v1127 = vunpack.c.l.b16 %v1109
        %v1128 = vunpack.c.l.b16 %v1110
        %v1129 = vunpack.c.l.b16 %v1111
        %v1130 = vunpack.c.l.b16 %v1112
        %v1131 = vunpack.c.l.b16 %v1113
        %v1132 = vunpack.c.l.b16 %v1114
        %v1133 = vpack.c.b16 %v1126, %v1125
        %v1134 = vpack.c.b16 %v1128, %v1127
        %v1135 = vpack.c.b16 %v1130, %v1129
        %v1136 = vpack.c.b16 %v1132, %v1131
        %v1138 = vsel %vm872, %v1133, 0
        %v1141 = vsel %vm872, %v1134, 0
        %v1144 = vsel %vm872, %v1135, 0
        %v1147 = vsel %vm872, %v1136, 0
        %v1150 = vsel %vm885, %v1116, 0
        %1152 = vmatpush.bf16.msra.mxu0 0
        %1153 = vmatpush.bf16.msra.mxu0 0
        %1154 = vmatpush.bf16.msra.mxu0 0
        %1155 = vmatpush.bf16.msra.mxu0 0
        %1156 = vmatpush.bf16.msra.mxu0 0
        %1157 = vmatpush.bf16.msra.mxu0 0
        %1158 = vmatpush.bf16.msra.mxu0 0
        %1159 = vmatpush.bf16.msra.mxu0 %v1150
        %1160 = vmatmul.bf16.gmra.mxu0 %v1138
        %v1161 = vpop.f32.mrf.mxu0
        %v1162 = vadd.f32 0.0, %v1161
        %v1163 = vpop.f32.mrf.mxu0
        %v1164 = vadd.f32 0.0, %v1163
        %1165 = vmatmul.bf16.gmra.mxu0 %v1141
        %v1166 = vpop.f32.mrf.mxu0
        %v1167 = vadd.f32 0.0, %v1166
        %v1168 = vpop.f32.mrf.mxu0
        %v1169 = vadd.f32 0.0, %v1168
        %1170 = vmatmul.bf16.gmra.mxu0 %v1144
        %v1171 = vpop.f32.mrf.mxu0
        %v1172 = vadd.f32 0.0, %v1171
        %v1173 = vpop.f32.mrf.mxu0
        %v1174 = vadd.f32 0.0, %v1173
        %1175 = vmatmul.bf16.gmra.mxu0 %v1147
        %v1176 = vpop.f32.mrf.mxu0
        %v1177 = vadd.f32 0.0, %v1176
        %v1178 = vpop.f32.mrf.mxu0
        %v1179 = vadd.f32 0.0, %v1178
        %1180 = vdwg.mxu0
        %v1181 = vadd.f32 %v1099, %v1162
        %v1182 = vadd.f32 %v1100, %v1164
        %v1183 = vadd.f32 %v1101, %v1167
        %v1184 = vadd.f32 %v1102, %v1169
        %v1185 = vadd.f32 %v1103, %v1172
        %v1186 = vadd.f32 %v1104, %v1174
        %v1187 = vadd.f32 %v1105, %v1177
        %v1188 = vadd.f32 %v1106, %v1179
        %v1189 = vld [vmem:[%s675] sm:$0xf]
        %v1190 = vld [vmem:[%s675 + $0x4] sm:$0x1]
        %v1191 = vld [vmem:[%s675 + $0x8] sm:$0xf]
        %v1192 = vld [vmem:[%s675 + $0xc] sm:$0x1]
        %v1193 = vld [vmem:[%s675 + $0x10] sm:$0xf]
        %v1194 = vld [vmem:[%s675 + $0x14] sm:$0x1]
        %v1195 = vld [vmem:[%s675 + $0x18] sm:$0xf]
        %v1196 = vld [vmem:[%s675 + $0x1c] sm:$0x1]
        %v1197 = vld [vmem:[%s675 + $0x20] sm:$0xf]
        %v1198 = vld [vmem:[%s675 + $0x24] sm:$0x1]
        %v1199 = vld [vmem:[%s675 + $0x28] sm:$0xf]
        %v1200 = vld [vmem:[%s675 + $0x2c] sm:$0x1]
        %v1201 = vld [vmem:[%s675 + $0x30] sm:$0xf]
        %v1202 = vld [vmem:[%s675 + $0x34] sm:$0x1]
        %v1203 = vld [vmem:[%s675 + $0x38] sm:$0xf]
        %v1204 = vld [vmem:[%s675 + $0x3c] sm:$0x1]
        %v1206 = vshrl.u32 %v1189, 16
        %v1208 = vrot.slane %v1206, 4
        %v1209 = vshll.u32 %v1189, 16
        %v1211 = vrot.slane %v1209, 5
        %v1212 = vor.u32 %v1208, %v1211
        %v1213 = vrot.slane %v1212, 4
        %v1215 = vshll.u32 %v1190, 16
        %v1217 = vrot.slane %v1215, 5
        %v1218 = vsel %vm745, %v1213, %v1217
        %v1220 = vshrl.u32 %v1191, 16
        %v1222 = vrot.slane %v1220, 4
        %v1223 = vshll.u32 %v1191, 16
        %v1225 = vrot.slane %v1223, 5
        %v1226 = vor.u32 %v1222, %v1225
        %v1227 = vrot.slane %v1226, 4
        %v1229 = vshll.u32 %v1192, 16
        %v1231 = vrot.slane %v1229, 5
        %v1232 = vsel %vm745, %v1227, %v1231
        %v1234 = vshrl.u32 %v1193, 16
        %v1236 = vrot.slane %v1234, 4
        %v1237 = vshll.u32 %v1193, 16
        %v1239 = vrot.slane %v1237, 5
        %v1240 = vor.u32 %v1236, %v1239
        %v1241 = vrot.slane %v1240, 4
        %v1243 = vshll.u32 %v1194, 16
        %v1245 = vrot.slane %v1243, 5
        %v1246 = vsel %vm745, %v1241, %v1245
        %v1248 = vshrl.u32 %v1195, 16
        %v1250 = vrot.slane %v1248, 4
        %v1251 = vshll.u32 %v1195, 16
        %v1253 = vrot.slane %v1251, 5
        %v1254 = vor.u32 %v1250, %v1253
        %v1255 = vrot.slane %v1254, 4
        %v1257 = vshll.u32 %v1196, 16
        %v1259 = vrot.slane %v1257, 5
        %v1260 = vsel %vm745, %v1255, %v1259
        %v1262 = vshrl.u32 %v1197, 16
        %v1264 = vrot.slane %v1262, 4
        %v1265 = vshll.u32 %v1197, 16
        %v1267 = vrot.slane %v1265, 5
        %v1268 = vor.u32 %v1264, %v1267
        %v1269 = vrot.slane %v1268, 4
        %v1271 = vshll.u32 %v1198, 16
        %v1273 = vrot.slane %v1271, 5
        %v1274 = vsel %vm745, %v1269, %v1273
        %v1276 = vshrl.u32 %v1199, 16
        %v1278 = vrot.slane %v1276, 4
        %v1279 = vshll.u32 %v1199, 16
        %v1281 = vrot.slane %v1279, 5
        %v1282 = vor.u32 %v1278, %v1281
        %v1283 = vrot.slane %v1282, 4
        %v1285 = vshll.u32 %v1200, 16
        %v1287 = vrot.slane %v1285, 5
        %v1288 = vsel %vm745, %v1283, %v1287
        %v1290 = vshrl.u32 %v1201, 16
        %v1292 = vrot.slane %v1290, 4
        %v1293 = vshll.u32 %v1201, 16
        %v1295 = vrot.slane %v1293, 5
        %v1296 = vor.u32 %v1292, %v1295
        %v1297 = vrot.slane %v1296, 4
        %v1299 = vshll.u32 %v1202, 16
        %v1301 = vrot.slane %v1299, 5
        %v1302 = vsel %vm745, %v1297, %v1301
        %v1304 = vshrl.u32 %v1203, 16
        %v1306 = vrot.slane %v1304, 4
        %v1307 = vshll.u32 %v1203, 16
        %v1309 = vrot.slane %v1307, 5
        %v1310 = vor.u32 %v1306, %v1309
        %v1311 = vrot.slane %v1310, 4
        %v1313 = vshll.u32 %v1204, 16
        %v1315 = vrot.slane %v1313, 5
        %v1316 = vsel %vm745, %v1311, %v1315
        %s1317 = scalar_lea.vmem %s1, 8
        %v1318 = vld [vmem:[%s1317] sm:$0x3]
        %v1319 = vunpack.c.l.b16 %v1218
        %v1320 = vunpack.c.l.b16 %v1232
        %v1321 = vunpack.c.l.b16 %v1246
        %v1322 = vunpack.c.l.b16 %v1260
        %v1323 = vunpack.c.l.b16 %v1274
        %v1324 = vunpack.c.l.b16 %v1288
        %v1325 = vunpack.c.l.b16 %v1302
        %v1326 = vunpack.c.l.b16 %v1316
        %v1327 = vpack.c.b16 %v1320, %v1319
        %v1328 = vpack.c.b16 %v1322, %v1321
        %v1329 = vpack.c.b16 %v1324, %v1323
        %v1330 = vpack.c.b16 %v1326, %v1325
        %v1332 = vsel %vm872, %v1327, 0
        %v1335 = vsel %vm872, %v1328, 0
        %v1338 = vsel %vm872, %v1329, 0
        %v1341 = vsel %vm872, %v1330, 0
        %v1344 = vsel %vm885, %v1318, 0
        %1346 = vmatpush.bf16.msra.mxu0 0
        %1347 = vmatpush.bf16.msra.mxu0 0
        %1348 = vmatpush.bf16.msra.mxu0 0
        %1349 = vmatpush.bf16.msra.mxu0 0
        %1350 = vmatpush.bf16.msra.mxu0 0
        %1351 = vmatpush.bf16.msra.mxu0 0
        %1352 = vmatpush.bf16.msra.mxu0 0
        %1353 = vmatpush.bf16.msra.mxu0 %v1344
        %1354 = vmatmul.bf16.gmra.mxu0 %v1332
        %v1355 = vpop.f32.mrf.mxu0
        %v1356 = vadd.f32 0.0, %v1355
        %v1357 = vpop.f32.mrf.mxu0
        %v1358 = vadd.f32 0.0, %v1357
        %1359 = vmatmul.bf16.gmra.mxu0 %v1335
        %v1360 = vpop.f32.mrf.mxu0
        %v1361 = vadd.f32 0.0, %v1360
        %v1362 = vpop.f32.mrf.mxu0
        %v1363 = vadd.f32 0.0, %v1362
        %1364 = vmatmul.bf16.gmra.mxu0 %v1338
        %v1365 = vpop.f32.mrf.mxu0
        %v1366 = vadd.f32 0.0, %v1365
        %v1367 = vpop.f32.mrf.mxu0
        %v1368 = vadd.f32 0.0, %v1367
        %1369 = vmatmul.bf16.gmra.mxu0 %v1341
        %v1370 = vpop.f32.mrf.mxu0
        %v1371 = vadd.f32 0.0, %v1370
        %v1372 = vpop.f32.mrf.mxu0
        %v1373 = vadd.f32 0.0, %v1372
        %1374 = vdwg.mxu0
        %v1375 = vadd.f32 %v1181, %v1356
        %v1376 = vadd.f32 %v1182, %v1358
        %v1377 = vadd.f32 %v1183, %v1361
        %v1378 = vadd.f32 %v1184, %v1363
        %v1379 = vadd.f32 %v1185, %v1366
        %v1380 = vadd.f32 %v1186, %v1368
        %v1381 = vadd.f32 %v1187, %v1371
        %v1382 = vadd.f32 %v1188, %v1373
        %v1383 = vld [vmem:[%s675] sm:$0xe]
        %v1384 = vld [vmem:[%s675 + $0x8] sm:$0xe]
        %v1385 = vld [vmem:[%s675 + $0x10] sm:$0xe]
        %v1386 = vld [vmem:[%s675 + $0x18] sm:$0xe]
        %v1387 = vld [vmem:[%s675 + $0x20] sm:$0xe]
        %v1388 = vld [vmem:[%s675 + $0x28] sm:$0xe]
        %v1389 = vld [vmem:[%s675 + $0x30] sm:$0xe]
        %v1390 = vld [vmem:[%s675 + $0x38] sm:$0xe]
        %v1407 = vrot.slane %v1383, 5
        %v1408 = vrot.slane %v1407, 4
        %v1409 = vrot.slane %v1190, 5
        %v1410 = vsel %vm1008, %v1408, %v1409
        %v1411 = vrot.slane %v1384, 5
        %v1412 = vrot.slane %v1411, 4
        %v1413 = vrot.slane %v1192, 5
        %v1414 = vsel %vm1008, %v1412, %v1413
        %v1415 = vrot.slane %v1385, 5
        %v1416 = vrot.slane %v1415, 4
        %v1417 = vrot.slane %v1194, 5
        %v1418 = vsel %vm1008, %v1416, %v1417
        %v1419 = vrot.slane %v1386, 5
        %v1420 = vrot.slane %v1419, 4
        %v1421 = vrot.slane %v1196, 5
        %v1422 = vsel %vm1008, %v1420, %v1421
        %v1423 = vrot.slane %v1387, 5
        %v1424 = vrot.slane %v1423, 4
        %v1425 = vrot.slane %v1198, 5
        %v1426 = vsel %vm1008, %v1424, %v1425
        %v1427 = vrot.slane %v1388, 5
        %v1428 = vrot.slane %v1427, 4
        %v1429 = vrot.slane %v1200, 5
        %v1430 = vsel %vm1008, %v1428, %v1429
        %v1431 = vrot.slane %v1389, 5
        %v1432 = vrot.slane %v1431, 4
        %v1433 = vrot.slane %v1202, 5
        %v1434 = vsel %vm1008, %v1432, %v1433
        %v1435 = vrot.slane %v1390, 5
        %v1436 = vrot.slane %v1435, 4
        %v1437 = vrot.slane %v1204, 5
        %v1438 = vsel %vm1008, %v1436, %v1437
        %s1439 = scalar_lea.vmem %s1, 10
        %v1440 = vld [vmem:[%s1439] sm:$0x3]
        %v1441 = vunpack.c.l.b16 %v1410
        %v1442 = vunpack.c.l.b16 %v1414
        %v1443 = vunpack.c.l.b16 %v1418
        %v1444 = vunpack.c.l.b16 %v1422
        %v1445 = vunpack.c.l.b16 %v1426
        %v1446 = vunpack.c.l.b16 %v1430
        %v1447 = vunpack.c.l.b16 %v1434
        %v1448 = vunpack.c.l.b16 %v1438
        %v1449 = vpack.c.b16 %v1442, %v1441
        %v1450 = vpack.c.b16 %v1444, %v1443
        %v1451 = vpack.c.b16 %v1446, %v1445
        %v1452 = vpack.c.b16 %v1448, %v1447
        %v1454 = vsel %vm872, %v1449, 0
        %v1457 = vsel %vm872, %v1450, 0
        %v1460 = vsel %vm872, %v1451, 0
        %v1463 = vsel %vm872, %v1452, 0
        %v1466 = vsel %vm885, %v1440, 0
        %1468 = vmatpush.bf16.msra.mxu0 0
        %1469 = vmatpush.bf16.msra.mxu0 0
        %1470 = vmatpush.bf16.msra.mxu0 0
        %1471 = vmatpush.bf16.msra.mxu0 0
        %1472 = vmatpush.bf16.msra.mxu0 0
        %1473 = vmatpush.bf16.msra.mxu0 0
        %1474 = vmatpush.bf16.msra.mxu0 0
        %1475 = vmatpush.bf16.msra.mxu0 %v1466
        %1476 = vmatmul.bf16.gmra.mxu0 %v1454
        %v1477 = vpop.f32.mrf.mxu0
        %v1478 = vadd.f32 0.0, %v1477
        %v1479 = vpop.f32.mrf.mxu0
        %v1480 = vadd.f32 0.0, %v1479
        %1481 = vmatmul.bf16.gmra.mxu0 %v1457
        %v1482 = vpop.f32.mrf.mxu0
        %v1483 = vadd.f32 0.0, %v1482
        %v1484 = vpop.f32.mrf.mxu0
        %v1485 = vadd.f32 0.0, %v1484
        %1486 = vmatmul.bf16.gmra.mxu0 %v1460
        %v1487 = vpop.f32.mrf.mxu0
        %v1488 = vadd.f32 0.0, %v1487
        %v1489 = vpop.f32.mrf.mxu0
        %v1490 = vadd.f32 0.0, %v1489
        %1491 = vmatmul.bf16.gmra.mxu0 %v1463
        %v1492 = vpop.f32.mrf.mxu0
        %v1493 = vadd.f32 0.0, %v1492
        %v1494 = vpop.f32.mrf.mxu0
        %v1495 = vadd.f32 0.0, %v1494
        %1496 = vdwg.mxu0
        %v1497 = vadd.f32 %v1375, %v1478
        %v1498 = vadd.f32 %v1376, %v1480
        %v1499 = vadd.f32 %v1377, %v1483
        %v1500 = vadd.f32 %v1378, %v1485
        %v1501 = vadd.f32 %v1379, %v1488
        %v1502 = vadd.f32 %v1380, %v1490
        %v1503 = vadd.f32 %v1381, %v1493
        %v1504 = vadd.f32 %v1382, %v1495
        %s1505 = scalar_lea.vmem [#allocation2], 16
        %v1506 = vld [vmem:[%s1505] sm:$0xf]
        %v1507 = vld [vmem:[%s1505 + $0x8] sm:$0xf]
        %v1508 = vld [vmem:[%s1505 + $0x10] sm:$0xf]
        %v1509 = vld [vmem:[%s1505 + $0x18] sm:$0xf]
        %v1510 = vld [vmem:[%s1505 + $0x20] sm:$0xf]
        %v1511 = vld [vmem:[%s1505 + $0x28] sm:$0xf]
        %v1512 = vld [vmem:[%s1505 + $0x30] sm:$0xf]
        %v1513 = vld [vmem:[%s1505 + $0x38] sm:$0xf]
        %s1514 = scalar_lea.vmem %s1, 12
        %v1515 = vld [vmem:[%s1514] sm:$0x3]
        %v1524 = vunpack.c.l.b16 %v1506
        %v1525 = vunpack.c.l.b16 %v1507
        %v1526 = vunpack.c.l.b16 %v1508
        %v1527 = vunpack.c.l.b16 %v1509
        %v1528 = vunpack.c.l.b16 %v1510
        %v1529 = vunpack.c.l.b16 %v1511
        %v1530 = vunpack.c.l.b16 %v1512
        %v1531 = vunpack.c.l.b16 %v1513
        %v1532 = vpack.c.b16 %v1525, %v1524
        %v1533 = vpack.c.b16 %v1527, %v1526
        %v1534 = vpack.c.b16 %v1529, %v1528
        %v1535 = vpack.c.b16 %v1531, %v1530
        %v1537 = vsel %vm872, %v1532, 0
        %v1540 = vsel %vm872, %v1533, 0
        %v1543 = vsel %vm872, %v1534, 0
        %v1546 = vsel %vm872, %v1535, 0
        %v1549 = vsel %vm885, %v1515, 0
        %1551 = vmatpush.bf16.msra.mxu0 0
        %1552 = vmatpush.bf16.msra.mxu0 0
        %1553 = vmatpush.bf16.msra.mxu0 0
        %1554 = vmatpush.bf16.msra.mxu0 0
        %1555 = vmatpush.bf16.msra.mxu0 0
        %1556 = vmatpush.bf16.msra.mxu0 0
        %1557 = vmatpush.bf16.msra.mxu0 0
        %1558 = vmatpush.bf16.msra.mxu0 %v1549
        %1559 = vmatmul.bf16.gmra.mxu0 %v1537
        %v1560 = vpop.f32.mrf.mxu0
        %v1561 = vadd.f32 0.0, %v1560
        %v1562 = vpop.f32.mrf.mxu0
        %v1563 = vadd.f32 0.0, %v1562
        %1564 = vmatmul.bf16.gmra.mxu0 %v1540
        %v1565 = vpop.f32.mrf.mxu0
        %v1566 = vadd.f32 0.0, %v1565
        %v1567 = vpop.f32.mrf.mxu0
        %v1568 = vadd.f32 0.0, %v1567
        %1569 = vmatmul.bf16.gmra.mxu0 %v1543
        %v1570 = vpop.f32.mrf.mxu0
        %v1571 = vadd.f32 0.0, %v1570
        %v1572 = vpop.f32.mrf.mxu0
        %v1573 = vadd.f32 0.0, %v1572
        %1574 = vmatmul.bf16.gmra.mxu0 %v1546
        %v1575 = vpop.f32.mrf.mxu0
        %v1576 = vadd.f32 0.0, %v1575
        %v1577 = vpop.f32.mrf.mxu0
        %v1578 = vadd.f32 0.0, %v1577
        %1579 = vdwg.mxu0
        %v1580 = vadd.f32 %v1497, %v1561
        %v1581 = vadd.f32 %v1498, %v1563
        %v1582 = vadd.f32 %v1499, %v1566
        %v1583 = vadd.f32 %v1500, %v1568
        %v1584 = vadd.f32 %v1501, %v1571
        %v1585 = vadd.f32 %v1502, %v1573
        %v1586 = vadd.f32 %v1503, %v1576
        %v1587 = vadd.f32 %v1504, %v1578
        %v1588 = vld [vmem:[%s1505] sm:$0xf]
        %v1589 = vld [vmem:[%s1505 + $0x4] sm:$0x1]
        %v1590 = vld [vmem:[%s1505 + $0x8] sm:$0xf]
        %v1591 = vld [vmem:[%s1505 + $0xc] sm:$0x1]
        %v1592 = vld [vmem:[%s1505 + $0x10] sm:$0xf]
        %v1593 = vld [vmem:[%s1505 + $0x14] sm:$0x1]
        %v1594 = vld [vmem:[%s1505 + $0x18] sm:$0xf]
        %v1595 = vld [vmem:[%s1505 + $0x1c] sm:$0x1]
        %v1596 = vld [vmem:[%s1505 + $0x20] sm:$0xf]
        %v1597 = vld [vmem:[%s1505 + $0x24] sm:$0x1]
        %v1598 = vld [vmem:[%s1505 + $0x28] sm:$0xf]
        %v1599 = vld [vmem:[%s1505 + $0x2c] sm:$0x1]
        %v1600 = vld [vmem:[%s1505 + $0x30] sm:$0xf]
        %v1601 = vld [vmem:[%s1505 + $0x34] sm:$0x1]
        %v1602 = vld [vmem:[%s1505 + $0x38] sm:$0xf]
        %v1603 = vld [vmem:[%s1505 + $0x3c] sm:$0x1]
        %v1605 = vshrl.u32 %v1588, 16
        %v1607 = vrot.slane %v1605, 4
        %v1608 = vshll.u32 %v1588, 16
        %v1610 = vrot.slane %v1608, 5
        %v1611 = vor.u32 %v1607, %v1610
        %v1612 = vrot.slane %v1611, 4
        %v1614 = vshll.u32 %v1589, 16
        %v1616 = vrot.slane %v1614, 5
        %v1617 = vsel %vm745, %v1612, %v1616
        %v1619 = vshrl.u32 %v1590, 16
        %v1621 = vrot.slane %v1619, 4
        %v1622 = vshll.u32 %v1590, 16
        %v1624 = vrot.slane %v1622, 5
        %v1625 = vor.u32 %v1621, %v1624
        %v1626 = vrot.slane %v1625, 4
        %v1628 = vshll.u32 %v1591, 16
        %v1630 = vrot.slane %v1628, 5
        %v1631 = vsel %vm745, %v1626, %v1630
        %v1633 = vshrl.u32 %v1592, 16
        %v1635 = vrot.slane %v1633, 4
        %v1636 = vshll.u32 %v1592, 16
        %v1638 = vrot.slane %v1636, 5
        %v1639 = vor.u32 %v1635, %v1638
        %v1640 = vrot.slane %v1639, 4
        %v1642 = vshll.u32 %v1593, 16
        %v1644 = vrot.slane %v1642, 5
        %v1645 = vsel %vm745, %v1640, %v1644
        %v1647 = vshrl.u32 %v1594, 16
        %v1649 = vrot.slane %v1647, 4
        %v1650 = vshll.u32 %v1594, 16
        %v1652 = vrot.slane %v1650, 5
        %v1653 = vor.u32 %v1649, %v1652
        %v1654 = vrot.slane %v1653, 4
        %v1656 = vshll.u32 %v1595, 16
        %v1658 = vrot.slane %v1656, 5
        %v1659 = vsel %vm745, %v1654, %v1658
        %v1661 = vshrl.u32 %v1596, 16
        %v1663 = vrot.slane %v1661, 4
        %v1664 = vshll.u32 %v1596, 16
        %v1666 = vrot.slane %v1664, 5
        %v1667 = vor.u32 %v1663, %v1666
        %v1668 = vrot.slane %v1667, 4
        %v1670 = vshll.u32 %v1597, 16
        %v1672 = vrot.slane %v1670, 5
        %v1673 = vsel %vm745, %v1668, %v1672
        %v1675 = vshrl.u32 %v1598, 16
        %v1677 = vrot.slane %v1675, 4
        %v1678 = vshll.u32 %v1598, 16
        %v1680 = vrot.slane %v1678, 5
        %v1681 = vor.u32 %v1677, %v1680
        %v1682 = vrot.slane %v1681, 4
        %v1684 = vshll.u32 %v1599, 16
        %v1686 = vrot.slane %v1684, 5
        %v1687 = vsel %vm745, %v1682, %v1686
        %v1689 = vshrl.u32 %v1600, 16
        %v1691 = vrot.slane %v1689, 4
        %v1692 = vshll.u32 %v1600, 16
        %v1694 = vrot.slane %v1692, 5
        %v1695 = vor.u32 %v1691, %v1694
        %v1696 = vrot.slane %v1695, 4
        %v1698 = vshll.u32 %v1601, 16
        %v1700 = vrot.slane %v1698, 5
        %v1701 = vsel %vm745, %v1696, %v1700
        %v1703 = vshrl.u32 %v1602, 16
        %v1705 = vrot.slane %v1703, 4
        %v1706 = vshll.u32 %v1602, 16
        %v1708 = vrot.slane %v1706, 5
        %v1709 = vor.u32 %v1705, %v1708
        %v1710 = vrot.slane %v1709, 4
        %v1712 = vshll.u32 %v1603, 16
        %v1714 = vrot.slane %v1712, 5
        %v1715 = vsel %vm745, %v1710, %v1714
        %s1716 = scalar_lea.vmem %s1, 14
        %v1717 = vld [vmem:[%s1716] sm:$0x3]
        %v1718 = vunpack.c.l.b16 %v1617
        %v1719 = vunpack.c.l.b16 %v1631
        %v1720 = vunpack.c.l.b16 %v1645
        %v1721 = vunpack.c.l.b16 %v1659
        %v1722 = vunpack.c.l.b16 %v1673
        %v1723 = vunpack.c.l.b16 %v1687
        %v1724 = vunpack.c.l.b16 %v1701
        %v1725 = vunpack.c.l.b16 %v1715
        %v1726 = vpack.c.b16 %v1719, %v1718
        %v1727 = vpack.c.b16 %v1721, %v1720
        %v1728 = vpack.c.b16 %v1723, %v1722
        %v1729 = vpack.c.b16 %v1725, %v1724
        %v1731 = vsel %vm872, %v1726, 0
        %v1734 = vsel %vm872, %v1727, 0
        %v1737 = vsel %vm872, %v1728, 0
        %v1740 = vsel %vm872, %v1729, 0
        %v1743 = vsel %vm885, %v1717, 0
        %1745 = vmatpush.bf16.msra.mxu0 0
        %1746 = vmatpush.bf16.msra.mxu0 0
        %1747 = vmatpush.bf16.msra.mxu0 0
        %1748 = vmatpush.bf16.msra.mxu0 0
        %1749 = vmatpush.bf16.msra.mxu0 0
        %1750 = vmatpush.bf16.msra.mxu0 0
        %1751 = vmatpush.bf16.msra.mxu0 0
        %1752 = vmatpush.bf16.msra.mxu0 %v1743
        %1753 = vmatmul.bf16.gmra.mxu0 %v1731
        %v1754 = vpop.f32.mrf.mxu0
        %v1755 = vadd.f32 0.0, %v1754
        %v1756 = vpop.f32.mrf.mxu0
        %v1757 = vadd.f32 0.0, %v1756
        %1758 = vmatmul.bf16.gmra.mxu0 %v1734
        %v1759 = vpop.f32.mrf.mxu0
        %v1760 = vadd.f32 0.0, %v1759
        %v1761 = vpop.f32.mrf.mxu0
        %v1762 = vadd.f32 0.0, %v1761
        %1763 = vmatmul.bf16.gmra.mxu0 %v1737
        %v1764 = vpop.f32.mrf.mxu0
        %v1765 = vadd.f32 0.0, %v1764
        %v1766 = vpop.f32.mrf.mxu0
        %v1767 = vadd.f32 0.0, %v1766
        %1768 = vmatmul.bf16.gmra.mxu0 %v1740
        %v1769 = vpop.f32.mrf.mxu0
        %v1770 = vadd.f32 0.0, %v1769
        %v1771 = vpop.f32.mrf.mxu0
        %v1772 = vadd.f32 0.0, %v1771
        %1773 = vdwg.mxu0
        %v1774 = vadd.f32 %v1580, %v1755
        %v1775 = vadd.f32 %v1581, %v1757
        %v1776 = vadd.f32 %v1582, %v1760
        %v1777 = vadd.f32 %v1583, %v1762
        %v1778 = vadd.f32 %v1584, %v1765
        %v1779 = vadd.f32 %v1585, %v1767
        %v1780 = vadd.f32 %v1586, %v1770
        %v1781 = vadd.f32 %v1587, %v1772
        %v1782 = vld [vmem:[%s1505] sm:$0xe]
        %v1783 = vld [vmem:[%s1505 + $0x8] sm:$0xe]
        %v1784 = vld [vmem:[%s1505 + $0x10] sm:$0xe]
        %v1785 = vld [vmem:[%s1505 + $0x18] sm:$0xe]
        %v1786 = vld [vmem:[%s1505 + $0x20] sm:$0xe]
        %v1787 = vld [vmem:[%s1505 + $0x28] sm:$0xe]
        %v1788 = vld [vmem:[%s1505 + $0x30] sm:$0xe]
        %v1789 = vld [vmem:[%s1505 + $0x38] sm:$0xe]
        %v1806 = vrot.slane %v1782, 5
        %v1807 = vrot.slane %v1806, 4
        %v1808 = vrot.slane %v1589, 5
        %v1809 = vsel %vm1008, %v1807, %v1808
        %v1810 = vrot.slane %v1783, 5
        %v1811 = vrot.slane %v1810, 4
        %v1812 = vrot.slane %v1591, 5
        %v1813 = vsel %vm1008, %v1811, %v1812
        %v1814 = vrot.slane %v1784, 5
        %v1815 = vrot.slane %v1814, 4
        %v1816 = vrot.slane %v1593, 5
        %v1817 = vsel %vm1008, %v1815, %v1816
        %v1818 = vrot.slane %v1785, 5
        %v1819 = vrot.slane %v1818, 4
        %v1820 = vrot.slane %v1595, 5
        %v1821 = vsel %vm1008, %v1819, %v1820
        %v1822 = vrot.slane %v1786, 5
        %v1823 = vrot.slane %v1822, 4
        %v1824 = vrot.slane %v1597, 5
        %v1825 = vsel %vm1008, %v1823, %v1824
        %v1826 = vrot.slane %v1787, 5
        %v1827 = vrot.slane %v1826, 4
        %v1828 = vrot.slane %v1599, 5
        %v1829 = vsel %vm1008, %v1827, %v1828
        %v1830 = vrot.slane %v1788, 5
        %v1831 = vrot.slane %v1830, 4
        %v1832 = vrot.slane %v1601, 5
        %v1833 = vsel %vm1008, %v1831, %v1832
        %v1834 = vrot.slane %v1789, 5
        %v1835 = vrot.slane %v1834, 4
        %v1836 = vrot.slane %v1603, 5
        %v1837 = vsel %vm1008, %v1835, %v1836
        %s1838 = scalar_lea.vmem %s1, 16
        %v1839 = vld [vmem:[%s1838] sm:$0x3]
        %v1840 = vunpack.c.l.b16 %v1809
        %v1841 = vunpack.c.l.b16 %v1813
        %v1842 = vunpack.c.l.b16 %v1817
        %v1843 = vunpack.c.l.b16 %v1821
        %v1844 = vunpack.c.l.b16 %v1825
        %v1845 = vunpack.c.l.b16 %v1829
        %v1846 = vunpack.c.l.b16 %v1833
        %v1847 = vunpack.c.l.b16 %v1837
        %v1848 = vpack.c.b16 %v1841, %v1840
        %v1849 = vpack.c.b16 %v1843, %v1842
        %v1850 = vpack.c.b16 %v1845, %v1844
        %v1851 = vpack.c.b16 %v1847, %v1846
        %v1853 = vsel %vm872, %v1848, 0
        %v1856 = vsel %vm872, %v1849, 0
        %v1859 = vsel %vm872, %v1850, 0
        %v1862 = vsel %vm872, %v1851, 0
        %v1865 = vsel %vm885, %v1839, 0
        %1867 = vmatpush.bf16.msra.mxu0 0
        %1868 = vmatpush.bf16.msra.mxu0 0
        %1869 = vmatpush.bf16.msra.mxu0 0
        %1870 = vmatpush.bf16.msra.mxu0 0
        %1871 = vmatpush.bf16.msra.mxu0 0
        %1872 = vmatpush.bf16.msra.mxu0 0
        %1873 = vmatpush.bf16.msra.mxu0 0
        %1874 = vmatpush.bf16.msra.mxu0 %v1865
        %1875 = vmatmul.bf16.gmra.mxu0 %v1853
        %v1876 = vpop.f32.mrf.mxu0
        %v1877 = vadd.f32 0.0, %v1876
        %v1878 = vpop.f32.mrf.mxu0
        %v1879 = vadd.f32 0.0, %v1878
        %1880 = vmatmul.bf16.gmra.mxu0 %v1856
        %v1881 = vpop.f32.mrf.mxu0
        %v1882 = vadd.f32 0.0, %v1881
        %v1883 = vpop.f32.mrf.mxu0
        %v1884 = vadd.f32 0.0, %v1883
        %1885 = vmatmul.bf16.gmra.mxu0 %v1859
        %v1886 = vpop.f32.mrf.mxu0
        %v1887 = vadd.f32 0.0, %v1886
        %v1888 = vpop.f32.mrf.mxu0
        %v1889 = vadd.f32 0.0, %v1888
        %1890 = vmatmul.bf16.gmra.mxu0 %v1862
        %v1891 = vpop.f32.mrf.mxu0
        %v1892 = vadd.f32 0.0, %v1891
        %v1893 = vpop.f32.mrf.mxu0
        %v1894 = vadd.f32 0.0, %v1893
        %1895 = vdwg.mxu0
        %v1896 = vadd.f32 %v1774, %v1877
        %v1897 = vadd.f32 %v1775, %v1879
        %v1898 = vadd.f32 %v1776, %v1882
        %v1899 = vadd.f32 %v1777, %v1884
        %v1900 = vadd.f32 %v1778, %v1887
        %v1901 = vadd.f32 %v1779, %v1889
        %v1902 = vadd.f32 %v1780, %v1892
        %v1903 = vadd.f32 %v1781, %v1894
        %v1904 = vld [vmem:[%s2] sm:$0x1]
        %v1906 = vperm.slane %v1904, 0
        %v1908 = vadd.f32 %v1896, %v1906
        %v1909 = vadd.f32 %v1897, %v1906
        %v1910 = vadd.f32 %v1898, %v1906
        %v1911 = vadd.f32 %v1899, %v1906
        %v1912 = vadd.f32 %v1900, %v1906
        %v1913 = vadd.f32 %v1901, %v1906
        %v1914 = vadd.f32 %v1902, %v1906
        %v1915 = vadd.f32 %v1903, %v1906
        %v1916 = vmax.f32 %v1908, 0.0
        %v1917 = vmax.f32 %v1909, 0.0
        %v1918 = vmax.f32 %v1910, 0.0
        %v1919 = vmax.f32 %v1911, 0.0
        %v1920 = vmax.f32 %v1912, 0.0
        %v1921 = vmax.f32 %v1913, 0.0
        %v1922 = vmax.f32 %v1914, 0.0
        %v1923 = vmax.f32 %v1915, 0.0
        %vm1924 = vcmask 60416
        %1925 = vst.msk [vmem:[#allocation3] sm:$0xf] %vm1924, 0
        %vm1926 = vcmask 57344
        %1927 = vst.msk [vmem:[#allocation3 + $0x4] sm:$0x1] %vm1926, 0
        %s1928 = scalar_lea.vmem [#allocation3], 72
        %1929 = vst.msk [vmem:[%s1928] sm:$0xf] %vm1924, 0
        %1930 = vst.msk [vmem:[%s1928 + $0x4] sm:$0x1] %vm1926, 0
        %vm1931 = vcmask 57344
        %vm1932 = vmand %vm1931, %vm531
        %v1933 = vld [vmem:[#allocation3] sm:$0x1]
        %v1934 = vsel %vm1932, 0, %v1933
        %1935 = vst [vmem:[#allocation3] sm:$0x1] %v1934
        %v1936 = vld [vmem:[#allocation3 + $0x8] sm:$0x1]
        %v1937 = vsel %vm1932, 0, %v1936
        %1938 = vst [vmem:[#allocation3 + $0x8] sm:$0x1] %v1937
        %v1939 = vld [vmem:[#allocation3 + $0x10] sm:$0x1]
        %v1940 = vsel %vm1932, 0, %v1939
        %1941 = vst [vmem:[#allocation3 + $0x10] sm:$0x1] %v1940
        %v1942 = vld [vmem:[#allocation3 + $0x18] sm:$0x1]
        %v1943 = vsel %vm1932, 0, %v1942
        %1944 = vst [vmem:[#allocation3 + $0x18] sm:$0x1] %v1943
        %v1945 = vld [vmem:[#allocation3 + $0x20] sm:$0x1]
        %v1946 = vsel %vm1932, 0, %v1945
        %1947 = vst [vmem:[#allocation3 + $0x20] sm:$0x1] %v1946
        %v1948 = vld [vmem:[#allocation3 + $0x28] sm:$0x1]
        %v1949 = vsel %vm1932, 0, %v1948
        %1950 = vst [vmem:[#allocation3 + $0x28] sm:$0x1] %v1949
        %v1951 = vld [vmem:[#allocation3 + $0x30] sm:$0x1]
        %v1952 = vsel %vm1932, 0, %v1951
        %1953 = vst [vmem:[#allocation3 + $0x30] sm:$0x1] %v1952
        %v1954 = vld [vmem:[#allocation3 + $0x38] sm:$0x1]
        %v1955 = vsel %vm1932, 0, %v1954
        %1956 = vst [vmem:[#allocation3 + $0x38] sm:$0x1] %v1955
        %v1957 = vld [vmem:[#allocation3 + $0x40] sm:$0x1]
        %v1958 = vsel %vm1932, 0, %v1957
        %1959 = vst [vmem:[#allocation3 + $0x40] sm:$0x1] %v1958
        %v1960 = vld [vmem:[#allocation3 + $0x48] sm:$0x1]
        %v1961 = vsel %vm1932, 0, %v1960
        %1962 = vst [vmem:[#allocation3 + $0x48] sm:$0x1] %v1961
        %vm1963 = vmand %vm1931, %vm563
        %v1964 = vld [vmem:[#allocation3 + $0x4] sm:$0x1]
        %v1965 = vsel %vm1963, 0, %v1964
        %1966 = vst [vmem:[#allocation3 + $0x4] sm:$0x1] %v1965
        %v1967 = vld [vmem:[#allocation3 + $0xc] sm:$0x1]
        %v1968 = vsel %vm1963, 0, %v1967
        %1969 = vst [vmem:[#allocation3 + $0xc] sm:$0x1] %v1968
        %v1970 = vld [vmem:[#allocation3 + $0x14] sm:$0x1]
        %v1971 = vsel %vm1963, 0, %v1970
        %1972 = vst [vmem:[#allocation3 + $0x14] sm:$0x1] %v1971
        %v1973 = vld [vmem:[#allocation3 + $0x1c] sm:$0x1]
        %v1974 = vsel %vm1963, 0, %v1973
        %1975 = vst [vmem:[#allocation3 + $0x1c] sm:$0x1] %v1974
        %v1976 = vld [vmem:[#allocation3 + $0x24] sm:$0x1]
        %v1977 = vsel %vm1963, 0, %v1976
        %1978 = vst [vmem:[#allocation3 + $0x24] sm:$0x1] %v1977
        %v1979 = vld [vmem:[#allocation3 + $0x2c] sm:$0x1]
        %v1980 = vsel %vm1963, 0, %v1979
        %1981 = vst [vmem:[#allocation3 + $0x2c] sm:$0x1] %v1980
        %v1982 = vld [vmem:[#allocation3 + $0x34] sm:$0x1]
        %v1983 = vsel %vm1963, 0, %v1982
        %1984 = vst [vmem:[#allocation3 + $0x34] sm:$0x1] %v1983
        %v1985 = vld [vmem:[#allocation3 + $0x3c] sm:$0x1]
        %v1986 = vsel %vm1963, 0, %v1985
        %1987 = vst [vmem:[#allocation3 + $0x3c] sm:$0x1] %v1986
        %v1988 = vld [vmem:[#allocation3 + $0x44] sm:$0x1]
        %v1989 = vsel %vm1963, 0, %v1988
        %1990 = vst [vmem:[#allocation3 + $0x44] sm:$0x1] %v1989
        %v1991 = vld [vmem:[#allocation3 + $0x4c] sm:$0x1]
        %v1992 = vsel %vm1963, 0, %v1991
        %1993 = vst [vmem:[#allocation3 + $0x4c] sm:$0x1] %v1992
        %v1994 = vpack.c.bf16 %v1916, %v1916
        %v1995 = vpack.c.bf16 %v1917, %v1917
        %v1996 = vpack.c.bf16 %v1918, %v1918
        %v1997 = vpack.c.bf16 %v1919, %v1919
        %v1998 = vpack.c.bf16 %v1920, %v1920
        %v1999 = vpack.c.bf16 %v1921, %v1921
        %v2000 = vpack.c.bf16 %v1922, %v1922
        %v2001 = vpack.c.bf16 %v1923, %v1923
        %v2003 = vshrl.u32 %v1994, 16
        %v2005 = vrot.slane %v2003, 7
        %v2006 = vshll.u32 %v1994, 16
        %v2008 = vor.u32 %v2005, %v2006
        %v2009 = vrot.slane %v2005, 4
        %v2011 = vshrl.u32 %v1995, 16
        %v2013 = vrot.slane %v2011, 7
        %v2014 = vshll.u32 %v1995, 16
        %v2016 = vor.u32 %v2013, %v2014
        %v2017 = vrot.slane %v2013, 4
        %v2019 = vshrl.u32 %v1996, 16
        %v2021 = vrot.slane %v2019, 7
        %v2022 = vshll.u32 %v1996, 16
        %v2024 = vor.u32 %v2021, %v2022
        %v2025 = vrot.slane %v2021, 4
        %v2027 = vshrl.u32 %v1997, 16
        %v2029 = vrot.slane %v2027, 7
        %v2030 = vshll.u32 %v1997, 16
        %v2032 = vor.u32 %v2029, %v2030
        %v2033 = vrot.slane %v2029, 4
        %v2035 = vshrl.u32 %v1998, 16
        %v2037 = vrot.slane %v2035, 7
        %v2038 = vshll.u32 %v1998, 16
        %v2040 = vor.u32 %v2037, %v2038
        %v2041 = vrot.slane %v2037, 4
        %v2043 = vshrl.u32 %v1999, 16
        %v2045 = vrot.slane %v2043, 7
        %v2046 = vshll.u32 %v1999, 16
        %v2048 = vor.u32 %v2045, %v2046
        %v2049 = vrot.slane %v2045, 4
        %v2051 = vshrl.u32 %v2000, 16
        %v2053 = vrot.slane %v2051, 7
        %v2054 = vshll.u32 %v2000, 16
        %v2056 = vor.u32 %v2053, %v2054
        %v2057 = vrot.slane %v2053, 4
        %v2059 = vshrl.u32 %v2001, 16
        %v2061 = vrot.slane %v2059, 7
        %v2062 = vshll.u32 %v2001, 16
        %v2064 = vor.u32 %v2061, %v2062
        %v2065 = vrot.slane %v2061, 4
        %s2082 = scalar_lea.vmem [#allocation3], 8
        %vm2083 = vcmask 60416
        %vm2084 = vmand %vm2083, %vm563
        %v2085 = vld [vmem:[%s2082] sm:$0xf]
        %v2086 = vsel %vm2084, %v2008, %v2085
        %2087 = vst [vmem:[%s2082] sm:$0xf] %v2086
        %v2088 = vld [vmem:[%s2082 + $0x4] sm:$0x1]
        %v2089 = vsel %vm1932, %v2009, %v2088
        %2090 = vst [vmem:[%s2082 + $0x4] sm:$0x1] %v2089
        %v2091 = vld [vmem:[%s2082 + $0x8] sm:$0xf]
        %v2092 = vsel %vm2084, %v2016, %v2091
        %2093 = vst [vmem:[%s2082 + $0x8] sm:$0xf] %v2092
        %v2094 = vld [vmem:[%s2082 + $0xc] sm:$0x1]
        %v2095 = vsel %vm1932, %v2017, %v2094
        %2096 = vst [vmem:[%s2082 + $0xc] sm:$0x1] %v2095
        %v2097 = vld [vmem:[%s2082 + $0x10] sm:$0xf]
        %v2098 = vsel %vm2084, %v2024, %v2097
        %2099 = vst [vmem:[%s2082 + $0x10] sm:$0xf] %v2098
        %v2100 = vld [vmem:[%s2082 + $0x14] sm:$0x1]
        %v2101 = vsel %vm1932, %v2025, %v2100
        %2102 = vst [vmem:[%s2082 + $0x14] sm:$0x1] %v2101
        %v2103 = vld [vmem:[%s2082 + $0x18] sm:$0xf]
        %v2104 = vsel %vm2084, %v2032, %v2103
        %2105 = vst [vmem:[%s2082 + $0x18] sm:$0xf] %v2104
        %v2106 = vld [vmem:[%s2082 + $0x1c] sm:$0x1]
        %v2107 = vsel %vm1932, %v2033, %v2106
        %2108 = vst [vmem:[%s2082 + $0x1c] sm:$0x1] %v2107
        %v2109 = vld [vmem:[%s2082 + $0x20] sm:$0xf]
        %v2110 = vsel %vm2084, %v2040, %v2109
        %2111 = vst [vmem:[%s2082 + $0x20] sm:$0xf] %v2110
        %v2112 = vld [vmem:[%s2082 + $0x24] sm:$0x1]
        %v2113 = vsel %vm1932, %v2041, %v2112
        %2114 = vst [vmem:[%s2082 + $0x24] sm:$0x1] %v2113
        %v2115 = vld [vmem:[%s2082 + $0x28] sm:$0xf]
        %v2116 = vsel %vm2084, %v2048, %v2115
        %2117 = vst [vmem:[%s2082 + $0x28] sm:$0xf] %v2116
        %v2118 = vld [vmem:[%s2082 + $0x2c] sm:$0x1]
        %v2119 = vsel %vm1932, %v2049, %v2118
        %2120 = vst [vmem:[%s2082 + $0x2c] sm:$0x1] %v2119
        %v2121 = vld [vmem:[%s2082 + $0x30] sm:$0xf]
        %v2122 = vsel %vm2084, %v2056, %v2121
        %2123 = vst [vmem:[%s2082 + $0x30] sm:$0xf] %v2122
        %v2124 = vld [vmem:[%s2082 + $0x34] sm:$0x1]
        %v2125 = vsel %vm1932, %v2057, %v2124
        %2126 = vst [vmem:[%s2082 + $0x34] sm:$0x1] %v2125
        %v2127 = vld [vmem:[%s2082 + $0x38] sm:$0xf]
        %v2128 = vsel %vm2084, %v2064, %v2127
        %2129 = vst [vmem:[%s2082 + $0x38] sm:$0xf] %v2128
        %v2130 = vld [vmem:[%s2082 + $0x3c] sm:$0x1]
        %v2131 = vsel %vm1932, %v2065, %v2130
        %2132 = vst [vmem:[%s2082 + $0x3c] sm:$0x1] %v2131
        %v2133 = vld [vmem:[#allocation3] sm:$0xf]
        %v2134 = vld [vmem:[#allocation3 + $0x8] sm:$0xf]
        %v2135 = vld [vmem:[#allocation3 + $0x10] sm:$0xf]
        %v2136 = vld [vmem:[#allocation3 + $0x18] sm:$0xf]
        %v2137 = vld [vmem:[#allocation3 + $0x20] sm:$0xf]
        %v2138 = vld [vmem:[#allocation3 + $0x28] sm:$0xf]
        %v2139 = vld [vmem:[#allocation3 + $0x30] sm:$0xf]
        %v2140 = vld [vmem:[#allocation3 + $0x38] sm:$0xf]
        %v2141 = vld [vmem:[%s3] sm:$0xf]
        %v2142 = vld [vmem:[#allocation3 + $0x4] sm:$0x1]
        %v2143 = vld [vmem:[#allocation3 + $0xc] sm:$0x1]
        %v2144 = vld [vmem:[#allocation3 + $0x14] sm:$0x1]
        %v2145 = vld [vmem:[#allocation3 + $0x1c] sm:$0x1]
        %v2146 = vld [vmem:[#allocation3 + $0x24] sm:$0x1]
        %v2147 = vld [vmem:[#allocation3 + $0x2c] sm:$0x1]
        %v2148 = vld [vmem:[#allocation3 + $0x34] sm:$0x1]
        %v2149 = vld [vmem:[#allocation3 + $0x3c] sm:$0x1]
        %v2151 = vshrl.u32 %v2133, 16
        %v2153 = vrot.slane %v2151, 4
        %v2154 = vshll.u32 %v2133, 16
        %v2156 = vrot.slane %v2154, 5
        %v2157 = vor.u32 %v2153, %v2156
        %v2158 = vrot.slane %v2157, 4
        %v2160 = vshll.u32 %v2142, 16
        %v2162 = vrot.slane %v2160, 5
        %v2163 = vsel %vm745, %v2158, %v2162
        %v2165 = vshrl.u32 %v2134, 16
        %v2167 = vrot.slane %v2165, 4
        %v2168 = vshll.u32 %v2134, 16
        %v2170 = vrot.slane %v2168, 5
        %v2171 = vor.u32 %v2167, %v2170
        %v2172 = vrot.slane %v2171, 4
        %v2174 = vshll.u32 %v2143, 16
        %v2176 = vrot.slane %v2174, 5
        %v2177 = vsel %vm745, %v2172, %v2176
        %v2179 = vshrl.u32 %v2135, 16
        %v2181 = vrot.slane %v2179, 4
        %v2182 = vshll.u32 %v2135, 16
        %v2184 = vrot.slane %v2182, 5
        %v2185 = vor.u32 %v2181, %v2184
        %v2186 = vrot.slane %v2185, 4
        %v2188 = vshll.u32 %v2144, 16
        %v2190 = vrot.slane %v2188, 5
        %v2191 = vsel %vm745, %v2186, %v2190
        %v2193 = vshrl.u32 %v2136, 16
        %v2195 = vrot.slane %v2193, 4
        %v2196 = vshll.u32 %v2136, 16
        %v2198 = vrot.slane %v2196, 5
        %v2199 = vor.u32 %v2195, %v2198
        %v2200 = vrot.slane %v2199, 4
        %v2202 = vshll.u32 %v2145, 16
        %v2204 = vrot.slane %v2202, 5
        %v2205 = vsel %vm745, %v2200, %v2204
        %v2207 = vshrl.u32 %v2137, 16
        %v2209 = vrot.slane %v2207, 4
        %v2210 = vshll.u32 %v2137, 16
        %v2212 = vrot.slane %v2210, 5
        %v2213 = vor.u32 %v2209, %v2212
        %v2214 = vrot.slane %v2213, 4
        %v2216 = vshll.u32 %v2146, 16
        %v2218 = vrot.slane %v2216, 5
        %v2219 = vsel %vm745, %v2214, %v2218
        %v2221 = vshrl.u32 %v2138, 16
        %v2223 = vrot.slane %v2221, 4
        %v2224 = vshll.u32 %v2138, 16
        %v2226 = vrot.slane %v2224, 5
        %v2227 = vor.u32 %v2223, %v2226
        %v2228 = vrot.slane %v2227, 4
        %v2230 = vshll.u32 %v2147, 16
        %v2232 = vrot.slane %v2230, 5
        %v2233 = vsel %vm745, %v2228, %v2232
        %v2235 = vshrl.u32 %v2139, 16
        %v2237 = vrot.slane %v2235, 4
        %v2238 = vshll.u32 %v2139, 16
        %v2240 = vrot.slane %v2238, 5
        %v2241 = vor.u32 %v2237, %v2240
        %v2242 = vrot.slane %v2241, 4
        %v2244 = vshll.u32 %v2148, 16
        %v2246 = vrot.slane %v2244, 5
        %v2247 = vsel %vm745, %v2242, %v2246
        %v2249 = vshrl.u32 %v2140, 16
        %v2251 = vrot.slane %v2249, 4
        %v2252 = vshll.u32 %v2140, 16
        %v2254 = vrot.slane %v2252, 5
        %v2255 = vor.u32 %v2251, %v2254
        %v2256 = vrot.slane %v2255, 4
        %v2258 = vshll.u32 %v2149, 16
        %v2260 = vrot.slane %v2258, 5
        %v2261 = vsel %vm745, %v2256, %v2260
        %s2262 = scalar_lea.vmem %s3, 4
        %v2263 = vld [vmem:[%s2262] sm:$0xf]
        %v2264 = vunpack.c.l.b16 %v2163
        %v2265 = vunpack.c.l.b16 %v2177
        %v2266 = vunpack.c.l.b16 %v2191
        %v2267 = vunpack.c.l.b16 %v2205
        %v2268 = vunpack.c.l.b16 %v2219
        %v2269 = vunpack.c.l.b16 %v2233
        %v2270 = vunpack.c.l.b16 %v2247
        %v2271 = vunpack.c.l.b16 %v2261
        %v2272 = vpack.c.b16 %v2265, %v2264
        %v2273 = vpack.c.b16 %v2267, %v2266
        %v2274 = vpack.c.b16 %v2269, %v2268
        %v2275 = vpack.c.b16 %v2271, %v2270
        %vm2276 = vcmask 64512
        %v2278 = vsel %vm2276, %v2272, 0
        %v2281 = vsel %vm2276, %v2273, 0
        %v2284 = vsel %vm2276, %v2274, 0
        %v2287 = vsel %vm2276, %v2275, 0
        %vm2289 = vcmask 1043456
        %v2291 = vsel %vm2289, %v2263, 0
        %2293 = vmatpush.bf16.msra.mxu0 0
        %2294 = vmatpush.bf16.msra.mxu0 0
        %2295 = vmatpush.bf16.msra.mxu0 0
        %2296 = vmatpush.bf16.msra.mxu0 0
        %2297 = vmatpush.bf16.msra.mxu0 0
        %2298 = vmatpush.bf16.msra.mxu0 0
        %2299 = vmatpush.bf16.msra.mxu0 0
        %2300 = vmatpush.bf16.msra.mxu0 %v2291
        %2301 = vmatmul.bf16.gmra.mxu0 %v2278
        %v2302 = vpop.f32.mrf.mxu0
        %v2303 = vadd.f32 0.0, %v2302
        %v2304 = vpop.f32.mrf.mxu0
        %v2305 = vadd.f32 0.0, %v2304
        %2306 = vmatmul.bf16.gmra.mxu0 %v2281
        %v2307 = vpop.f32.mrf.mxu0
        %v2308 = vadd.f32 0.0, %v2307
        %v2309 = vpop.f32.mrf.mxu0
        %v2310 = vadd.f32 0.0, %v2309
        %2311 = vmatmul.bf16.gmra.mxu0 %v2284
        %v2312 = vpop.f32.mrf.mxu0
        %v2313 = vadd.f32 0.0, %v2312
        %v2314 = vpop.f32.mrf.mxu0
        %v2315 = vadd.f32 0.0, %v2314
        %2316 = vmatmul.bf16.gmra.mxu0 %v2287
        %v2317 = vpop.f32.mrf.mxu0
        %v2318 = vadd.f32 0.0, %v2317
        %v2319 = vpop.f32.mrf.mxu0
        %v2320 = vadd.f32 0.0, %v2319
        %2321 = vdwg.mxu0
        %v2330 = vunpack.c.l.b16 %v2133
        %v2331 = vunpack.c.l.b16 %v2134
        %v2332 = vunpack.c.l.b16 %v2135
        %v2333 = vunpack.c.l.b16 %v2136
        %v2334 = vunpack.c.l.b16 %v2137
        %v2335 = vunpack.c.l.b16 %v2138
        %v2336 = vunpack.c.l.b16 %v2139
        %v2337 = vunpack.c.l.b16 %v2140
        %v2338 = vpack.c.b16 %v2331, %v2330
        %v2339 = vpack.c.b16 %v2333, %v2332
        %v2340 = vpack.c.b16 %v2335, %v2334
        %v2341 = vpack.c.b16 %v2337, %v2336
        %v2343 = vsel %vm2276, %v2338, 0
        %v2346 = vsel %vm2276, %v2339, 0
        %v2349 = vsel %vm2276, %v2340, 0
        %v2352 = vsel %vm2276, %v2341, 0
        %v2355 = vsel %vm2289, %v2141, 0
        %2357 = vmatpush.bf16.msra.mxu0 0
        %2358 = vmatpush.bf16.msra.mxu0 0
        %2359 = vmatpush.bf16.msra.mxu0 0
        %2360 = vmatpush.bf16.msra.mxu0 0
        %2361 = vmatpush.bf16.msra.mxu0 0
        %2362 = vmatpush.bf16.msra.mxu0 0
        %2363 = vmatpush.bf16.msra.mxu0 0
        %2364 = vmatpush.bf16.msra.mxu0 %v2355
        %2365 = vmatmul.bf16.gmra.mxu0 %v2343
        %v2366 = vpop.f32.mrf.mxu0
        %v2367 = vadd.f32 %v2303, %v2366
        %v2368 = vpop.f32.mrf.mxu0
        %v2369 = vadd.f32 %v2305, %v2368
        %2370 = vmatmul.bf16.gmra.mxu0 %v2346
        %v2371 = vpop.f32.mrf.mxu0
        %v2372 = vadd.f32 %v2308, %v2371
        %v2373 = vpop.f32.mrf.mxu0
        %v2374 = vadd.f32 %v2310, %v2373
        %2375 = vmatmul.bf16.gmra.mxu0 %v2349
        %v2376 = vpop.f32.mrf.mxu0
        %v2377 = vadd.f32 %v2313, %v2376
        %v2378 = vpop.f32.mrf.mxu0
        %v2379 = vadd.f32 %v2315, %v2378
        %2380 = vmatmul.bf16.gmra.mxu0 %v2352
        %v2381 = vpop.f32.mrf.mxu0
        %v2382 = vadd.f32 %v2318, %v2381
        %v2383 = vpop.f32.mrf.mxu0
        %v2384 = vadd.f32 %v2320, %v2383
        %2385 = vdwg.mxu0
        %v2386 = vld [vmem:[#allocation3] sm:$0xe]
        %v2387 = vld [vmem:[#allocation3 + $0x8] sm:$0xe]
        %v2388 = vld [vmem:[#allocation3 + $0x10] sm:$0xe]
        %v2389 = vld [vmem:[#allocation3 + $0x18] sm:$0xe]
        %v2390 = vld [vmem:[#allocation3 + $0x20] sm:$0xe]
        %v2391 = vld [vmem:[#allocation3 + $0x28] sm:$0xe]
        %v2392 = vld [vmem:[#allocation3 + $0x30] sm:$0xe]
        %v2393 = vld [vmem:[#allocation3 + $0x38] sm:$0xe]
        %v2410 = vrot.slane %v2386, 5
        %v2411 = vrot.slane %v2410, 4
        %v2412 = vrot.slane %v2142, 5
        %v2413 = vsel %vm1008, %v2411, %v2412
        %v2414 = vrot.slane %v2387, 5
        %v2415 = vrot.slane %v2414, 4
        %v2416 = vrot.slane %v2143, 5
        %v2417 = vsel %vm1008, %v2415, %v2416
        %v2418 = vrot.slane %v2388, 5
        %v2419 = vrot.slane %v2418, 4
        %v2420 = vrot.slane %v2144, 5
        %v2421 = vsel %vm1008, %v2419, %v2420
        %v2422 = vrot.slane %v2389, 5
        %v2423 = vrot.slane %v2422, 4
        %v2424 = vrot.slane %v2145, 5
        %v2425 = vsel %vm1008, %v2423, %v2424
        %v2426 = vrot.slane %v2390, 5
        %v2427 = vrot.slane %v2426, 4
        %v2428 = vrot.slane %v2146, 5
        %v2429 = vsel %vm1008, %v2427, %v2428
        %v2430 = vrot.slane %v2391, 5
        %v2431 = vrot.slane %v2430, 4
        %v2432 = vrot.slane %v2147, 5
        %v2433 = vsel %vm1008, %v2431, %v2432
        %v2434 = vrot.slane %v2392, 5
        %v2435 = vrot.slane %v2434, 4
        %v2436 = vrot.slane %v2148, 5
        %v2437 = vsel %vm1008, %v2435, %v2436
        %v2438 = vrot.slane %v2393, 5
        %v2439 = vrot.slane %v2438, 4
        %v2440 = vrot.slane %v2149, 5
        %v2441 = vsel %vm1008, %v2439, %v2440
        %s2442 = scalar_lea.vmem %s3, 8
        %v2443 = vld [vmem:[%s2442] sm:$0xf]
        %v2444 = vunpack.c.l.b16 %v2413
        %v2445 = vunpack.c.l.b16 %v2417
        %v2446 = vunpack.c.l.b16 %v2421
        %v2447 = vunpack.c.l.b16 %v2425
        %v2448 = vunpack.c.l.b16 %v2429
        %v2449 = vunpack.c.l.b16 %v2433
        %v2450 = vunpack.c.l.b16 %v2437
        %v2451 = vunpack.c.l.b16 %v2441
        %v2452 = vpack.c.b16 %v2445, %v2444
        %v2453 = vpack.c.b16 %v2447, %v2446
        %v2454 = vpack.c.b16 %v2449, %v2448
        %v2455 = vpack.c.b16 %v2451, %v2450
        %v2457 = vsel %vm2276, %v2452, 0
        %v2460 = vsel %vm2276, %v2453, 0
        %v2463 = vsel %vm2276, %v2454, 0
        %v2466 = vsel %vm2276, %v2455, 0
        %v2469 = vsel %vm2289, %v2443, 0
        %2471 = vmatpush.bf16.msra.mxu0 0
        %2472 = vmatpush.bf16.msra.mxu0 0
        %2473 = vmatpush.bf16.msra.mxu0 0
        %2474 = vmatpush.bf16.msra.mxu0 0
        %2475 = vmatpush.bf16.msra.mxu0 0
        %2476 = vmatpush.bf16.msra.mxu0 0
        %2477 = vmatpush.bf16.msra.mxu0 0
        %2478 = vmatpush.bf16.msra.mxu0 %v2469
        %2479 = vmatmul.bf16.gmra.mxu0 %v2457
        %v2480 = vpop.f32.mrf.mxu0
        %v2481 = vadd.f32 0.0, %v2480
        %v2482 = vpop.f32.mrf.mxu0
        %v2483 = vadd.f32 0.0, %v2482
        %2484 = vmatmul.bf16.gmra.mxu0 %v2460
        %v2485 = vpop.f32.mrf.mxu0
        %v2486 = vadd.f32 0.0, %v2485
        %v2487 = vpop.f32.mrf.mxu0
        %v2488 = vadd.f32 0.0, %v2487
        %2489 = vmatmul.bf16.gmra.mxu0 %v2463
        %v2490 = vpop.f32.mrf.mxu0
        %v2491 = vadd.f32 0.0, %v2490
        %v2492 = vpop.f32.mrf.mxu0
        %v2493 = vadd.f32 0.0, %v2492
        %2494 = vmatmul.bf16.gmra.mxu0 %v2466
        %v2495 = vpop.f32.mrf.mxu0
        %v2496 = vadd.f32 0.0, %v2495
        %v2497 = vpop.f32.mrf.mxu0
        %v2498 = vadd.f32 0.0, %v2497
        %2499 = vdwg.mxu0
        %v2500 = vadd.f32 %v2367, %v2481
        %v2501 = vadd.f32 %v2369, %v2483
        %v2502 = vadd.f32 %v2372, %v2486
        %v2503 = vadd.f32 %v2374, %v2488
        %v2504 = vadd.f32 %v2377, %v2491
        %v2505 = vadd.f32 %v2379, %v2493
        %v2506 = vadd.f32 %v2382, %v2496
        %v2507 = vadd.f32 %v2384, %v2498
        %v2508 = vld [vmem:[%s2082] sm:$0xf]
        %v2509 = vld [vmem:[%s2082 + $0x8] sm:$0xf]
        %v2510 = vld [vmem:[%s2082 + $0x10] sm:$0xf]
        %v2511 = vld [vmem:[%s2082 + $0x18] sm:$0xf]
        %v2512 = vld [vmem:[%s2082 + $0x20] sm:$0xf]
        %v2513 = vld [vmem:[%s2082 + $0x28] sm:$0xf]
        %v2514 = vld [vmem:[%s2082 + $0x30] sm:$0xf]
        %v2515 = vld [vmem:[%s2082 + $0x38] sm:$0xf]
        %s2516 = scalar_lea.vmem %s3, 12
        %v2517 = vld [vmem:[%s2516] sm:$0xf]
        %v2526 = vunpack.c.l.b16 %v2508
        %v2527 = vunpack.c.l.b16 %v2509
        %v2528 = vunpack.c.l.b16 %v2510
        %v2529 = vunpack.c.l.b16 %v2511
        %v2530 = vunpack.c.l.b16 %v2512
        %v2531 = vunpack.c.l.b16 %v2513
        %v2532 = vunpack.c.l.b16 %v2514
        %v2533 = vunpack.c.l.b16 %v2515
        %v2534 = vpack.c.b16 %v2527, %v2526
        %v2535 = vpack.c.b16 %v2529, %v2528
        %v2536 = vpack.c.b16 %v2531, %v2530
        %v2537 = vpack.c.b16 %v2533, %v2532
        %v2539 = vsel %vm2276, %v2534, 0
        %v2542 = vsel %vm2276, %v2535, 0
        %v2545 = vsel %vm2276, %v2536, 0
        %v2548 = vsel %vm2276, %v2537, 0
        %v2551 = vsel %vm2289, %v2517, 0
        %2553 = vmatpush.bf16.msra.mxu0 0
        %2554 = vmatpush.bf16.msra.mxu0 0
        %2555 = vmatpush.bf16.msra.mxu0 0
        %2556 = vmatpush.bf16.msra.mxu0 0
        %2557 = vmatpush.bf16.msra.mxu0 0
        %2558 = vmatpush.bf16.msra.mxu0 0
        %2559 = vmatpush.bf16.msra.mxu0 0
        %2560 = vmatpush.bf16.msra.mxu0 %v2551
        %2561 = vmatmul.bf16.gmra.mxu0 %v2539
        %v2562 = vpop.f32.mrf.mxu0
        %v2563 = vadd.f32 0.0, %v2562
        %v2564 = vpop.f32.mrf.mxu0
        %v2565 = vadd.f32 0.0, %v2564
        %2566 = vmatmul.bf16.gmra.mxu0 %v2542
        %v2567 = vpop.f32.mrf.mxu0
        %v2568 = vadd.f32 0.0, %v2567
        %v2569 = vpop.f32.mrf.mxu0
        %v2570 = vadd.f32 0.0, %v2569
        %2571 = vmatmul.bf16.gmra.mxu0 %v2545
        %v2572 = vpop.f32.mrf.mxu0
        %v2573 = vadd.f32 0.0, %v2572
        %v2574 = vpop.f32.mrf.mxu0
        %v2575 = vadd.f32 0.0, %v2574
        %2576 = vmatmul.bf16.gmra.mxu0 %v2548
        %v2577 = vpop.f32.mrf.mxu0
        %v2578 = vadd.f32 0.0, %v2577
        %v2579 = vpop.f32.mrf.mxu0
        %v2580 = vadd.f32 0.0, %v2579
        %2581 = vdwg.mxu0
        %v2582 = vadd.f32 %v2500, %v2563
        %v2583 = vadd.f32 %v2501, %v2565
        %v2584 = vadd.f32 %v2502, %v2568
        %v2585 = vadd.f32 %v2503, %v2570
        %v2586 = vadd.f32 %v2504, %v2573
        %v2587 = vadd.f32 %v2505, %v2575
        %v2588 = vadd.f32 %v2506, %v2578
        %v2589 = vadd.f32 %v2507, %v2580
        %v2590 = vld [vmem:[%s2082] sm:$0xf]
        %v2591 = vld [vmem:[%s2082 + $0x4] sm:$0x1]
        %v2592 = vld [vmem:[%s2082 + $0x8] sm:$0xf]
        %v2593 = vld [vmem:[%s2082 + $0xc] sm:$0x1]
        %v2594 = vld [vmem:[%s2082 + $0x10] sm:$0xf]
        %v2595 = vld [vmem:[%s2082 + $0x14] sm:$0x1]
        %v2596 = vld [vmem:[%s2082 + $0x18] sm:$0xf]
        %v2597 = vld [vmem:[%s2082 + $0x1c] sm:$0x1]
        %v2598 = vld [vmem:[%s2082 + $0x20] sm:$0xf]
        %v2599 = vld [vmem:[%s2082 + $0x24] sm:$0x1]
        %v2600 = vld [vmem:[%s2082 + $0x28] sm:$0xf]
        %v2601 = vld [vmem:[%s2082 + $0x2c] sm:$0x1]
        %v2602 = vld [vmem:[%s2082 + $0x30] sm:$0xf]
        %v2603 = vld [vmem:[%s2082 + $0x34] sm:$0x1]
        %v2604 = vld [vmem:[%s2082 + $0x38] sm:$0xf]
        %v2605 = vld [vmem:[%s2082 + $0x3c] sm:$0x1]
        %v2607 = vshrl.u32 %v2590, 16
        %v2609 = vrot.slane %v2607, 4
        %v2610 = vshll.u32 %v2590, 16
        %v2612 = vrot.slane %v2610, 5
        %v2613 = vor.u32 %v2609, %v2612
        %v2614 = vrot.slane %v2613, 4
        %v2616 = vshll.u32 %v2591, 16
        %v2618 = vrot.slane %v2616, 5
        %v2619 = vsel %vm745, %v2614, %v2618
        %v2621 = vshrl.u32 %v2592, 16
        %v2623 = vrot.slane %v2621, 4
        %v2624 = vshll.u32 %v2592, 16
        %v2626 = vrot.slane %v2624, 5
        %v2627 = vor.u32 %v2623, %v2626
        %v2628 = vrot.slane %v2627, 4
        %v2630 = vshll.u32 %v2593, 16
        %v2632 = vrot.slane %v2630, 5
        %v2633 = vsel %vm745, %v2628, %v2632
        %v2635 = vshrl.u32 %v2594, 16
        %v2637 = vrot.slane %v2635, 4
        %v2638 = vshll.u32 %v2594, 16
        %v2640 = vrot.slane %v2638, 5
        %v2641 = vor.u32 %v2637, %v2640
        %v2642 = vrot.slane %v2641, 4
        %v2644 = vshll.u32 %v2595, 16
        %v2646 = vrot.slane %v2644, 5
        %v2647 = vsel %vm745, %v2642, %v2646
        %v2649 = vshrl.u32 %v2596, 16
        %v2651 = vrot.slane %v2649, 4
        %v2652 = vshll.u32 %v2596, 16
        %v2654 = vrot.slane %v2652, 5
        %v2655 = vor.u32 %v2651, %v2654
        %v2656 = vrot.slane %v2655, 4
        %v2658 = vshll.u32 %v2597, 16
        %v2660 = vrot.slane %v2658, 5
        %v2661 = vsel %vm745, %v2656, %v2660
        %v2663 = vshrl.u32 %v2598, 16
        %v2665 = vrot.slane %v2663, 4
        %v2666 = vshll.u32 %v2598, 16
        %v2668 = vrot.slane %v2666, 5
        %v2669 = vor.u32 %v2665, %v2668
        %v2670 = vrot.slane %v2669, 4
        %v2672 = vshll.u32 %v2599, 16
        %v2674 = vrot.slane %v2672, 5
        %v2675 = vsel %vm745, %v2670, %v2674
        %v2677 = vshrl.u32 %v2600, 16
        %v2679 = vrot.slane %v2677, 4
        %v2680 = vshll.u32 %v2600, 16
        %v2682 = vrot.slane %v2680, 5
        %v2683 = vor.u32 %v2679, %v2682
        %v2684 = vrot.slane %v2683, 4
        %v2686 = vshll.u32 %v2601, 16
        %v2688 = vrot.slane %v2686, 5
        %v2689 = vsel %vm745, %v2684, %v2688
        %v2691 = vshrl.u32 %v2602, 16
        %v2693 = vrot.slane %v2691, 4
        %v2694 = vshll.u32 %v2602, 16
        %v2696 = vrot.slane %v2694, 5
        %v2697 = vor.u32 %v2693, %v2696
        %v2698 = vrot.slane %v2697, 4
        %v2700 = vshll.u32 %v2603, 16
        %v2702 = vrot.slane %v2700, 5
        %v2703 = vsel %vm745, %v2698, %v2702
        %v2705 = vshrl.u32 %v2604, 16
        %v2707 = vrot.slane %v2705, 4
        %v2708 = vshll.u32 %v2604, 16
        %v2710 = vrot.slane %v2708, 5
        %v2711 = vor.u32 %v2707, %v2710
        %v2712 = vrot.slane %v2711, 4
        %v2714 = vshll.u32 %v2605, 16
        %v2716 = vrot.slane %v2714, 5
        %v2717 = vsel %vm745, %v2712, %v2716
        %s2718 = scalar_lea.vmem %s3, 16
        %v2719 = vld [vmem:[%s2718] sm:$0xf]
        %v2720 = vunpack.c.l.b16 %v2619
        %v2721 = vunpack.c.l.b16 %v2633
        %v2722 = vunpack.c.l.b16 %v2647
        %v2723 = vunpack.c.l.b16 %v2661
        %v2724 = vunpack.c.l.b16 %v2675
        %v2725 = vunpack.c.l.b16 %v2689
        %v2726 = vunpack.c.l.b16 %v2703
        %v2727 = vunpack.c.l.b16 %v2717
        %v2728 = vpack.c.b16 %v2721, %v2720
        %v2729 = vpack.c.b16 %v2723, %v2722
        %v2730 = vpack.c.b16 %v2725, %v2724
        %v2731 = vpack.c.b16 %v2727, %v2726
        %v2733 = vsel %vm2276, %v2728, 0
        %v2736 = vsel %vm2276, %v2729, 0
        %v2739 = vsel %vm2276, %v2730, 0
        %v2742 = vsel %vm2276, %v2731, 0
        %v2745 = vsel %vm2289, %v2719, 0
        %2747 = vmatpush.bf16.msra.mxu0 0
        %2748 = vmatpush.bf16.msra.mxu0 0
        %2749 = vmatpush.bf16.msra.mxu0 0
        %2750 = vmatpush.bf16.msra.mxu0 0
        %2751 = vmatpush.bf16.msra.mxu0 0
        %2752 = vmatpush.bf16.msra.mxu0 0
        %2753 = vmatpush.bf16.msra.mxu0 0
        %2754 = vmatpush.bf16.msra.mxu0 %v2745
        %2755 = vmatmul.bf16.gmra.mxu0 %v2733
        %v2756 = vpop.f32.mrf.mxu0
        %v2757 = vadd.f32 0.0, %v2756
        %v2758 = vpop.f32.mrf.mxu0
        %v2759 = vadd.f32 0.0, %v2758
        %2760 = vmatmul.bf16.gmra.mxu0 %v2736
        %v2761 = vpop.f32.mrf.mxu0
        %v2762 = vadd.f32 0.0, %v2761
        %v2763 = vpop.f32.mrf.mxu0
        %v2764 = vadd.f32 0.0, %v2763
        %2765 = vmatmul.bf16.gmra.mxu0 %v2739
        %v2766 = vpop.f32.mrf.mxu0
        %v2767 = vadd.f32 0.0, %v2766
        %v2768 = vpop.f32.mrf.mxu0
        %v2769 = vadd.f32 0.0, %v2768
        %2770 = vmatmul.bf16.gmra.mxu0 %v2742
        %v2771 = vpop.f32.mrf.mxu0
        %v2772 = vadd.f32 0.0, %v2771
        %v2773 = vpop.f32.mrf.mxu0
        %v2774 = vadd.f32 0.0, %v2773
        %2775 = vdwg.mxu0
        %v2776 = vadd.f32 %v2582, %v2757
        %v2777 = vadd.f32 %v2583, %v2759
        %v2778 = vadd.f32 %v2584, %v2762
        %v2779 = vadd.f32 %v2585, %v2764
        %v2780 = vadd.f32 %v2586, %v2767
        %v2781 = vadd.f32 %v2587, %v2769
        %v2782 = vadd.f32 %v2588, %v2772
        %v2783 = vadd.f32 %v2589, %v2774
        %v2784 = vld [vmem:[%s2082] sm:$0xe]
        %v2785 = vld [vmem:[%s2082 + $0x8] sm:$0xe]
        %v2786 = vld [vmem:[%s2082 + $0x10] sm:$0xe]
        %v2787 = vld [vmem:[%s2082 + $0x18] sm:$0xe]
        %v2788 = vld [vmem:[%s2082 + $0x20] sm:$0xe]
        %v2789 = vld [vmem:[%s2082 + $0x28] sm:$0xe]
        %v2790 = vld [vmem:[%s2082 + $0x30] sm:$0xe]
        %v2791 = vld [vmem:[%s2082 + $0x38] sm:$0xe]
        %v2808 = vrot.slane %v2784, 5
        %v2809 = vrot.slane %v2808, 4
        %v2810 = vrot.slane %v2591, 5
        %v2811 = vsel %vm1008, %v2809, %v2810
        %v2812 = vrot.slane %v2785, 5
        %v2813 = vrot.slane %v2812, 4
        %v2814 = vrot.slane %v2593, 5
        %v2815 = vsel %vm1008, %v2813, %v2814
        %v2816 = vrot.slane %v2786, 5
        %v2817 = vrot.slane %v2816, 4
        %v2818 = vrot.slane %v2595, 5
        %v2819 = vsel %vm1008, %v2817, %v2818
        %v2820 = vrot.slane %v2787, 5
        %v2821 = vrot.slane %v2820, 4
        %v2822 = vrot.slane %v2597, 5
        %v2823 = vsel %vm1008, %v2821, %v2822
        %v2824 = vrot.slane %v2788, 5
        %v2825 = vrot.slane %v2824, 4
        %v2826 = vrot.slane %v2599, 5
        %v2827 = vsel %vm1008, %v2825, %v2826
        %v2828 = vrot.slane %v2789, 5
        %v2829 = vrot.slane %v2828, 4
        %v2830 = vrot.slane %v2601, 5
        %v2831 = vsel %vm1008, %v2829, %v2830
        %v2832 = vrot.slane %v2790, 5
        %v2833 = vrot.slane %v2832, 4
        %v2834 = vrot.slane %v2603, 5
        %v2835 = vsel %vm1008, %v2833, %v2834
        %v2836 = vrot.slane %v2791, 5
        %v2837 = vrot.slane %v2836, 4
        %v2838 = vrot.slane %v2605, 5
        %v2839 = vsel %vm1008, %v2837, %v2838
        %s2840 = scalar_lea.vmem %s3, 20
        %v2841 = vld [vmem:[%s2840] sm:$0xf]
        %v2842 = vunpack.c.l.b16 %v2811
        %v2843 = vunpack.c.l.b16 %v2815
        %v2844 = vunpack.c.l.b16 %v2819
        %v2845 = vunpack.c.l.b16 %v2823
        %v2846 = vunpack.c.l.b16 %v2827
        %v2847 = vunpack.c.l.b16 %v2831
        %v2848 = vunpack.c.l.b16 %v2835
        %v2849 = vunpack.c.l.b16 %v2839
        %v2850 = vpack.c.b16 %v2843, %v2842
        %v2851 = vpack.c.b16 %v2845, %v2844
        %v2852 = vpack.c.b16 %v2847, %v2846
        %v2853 = vpack.c.b16 %v2849, %v2848
        %v2855 = vsel %vm2276, %v2850, 0
        %v2858 = vsel %vm2276, %v2851, 0
        %v2861 = vsel %vm2276, %v2852, 0
        %v2864 = vsel %vm2276, %v2853, 0
        %v2867 = vsel %vm2289, %v2841, 0
        %2869 = vmatpush.bf16.msra.mxu0 0
        %2870 = vmatpush.bf16.msra.mxu0 0
        %2871 = vmatpush.bf16.msra.mxu0 0
        %2872 = vmatpush.bf16.msra.mxu0 0
        %2873 = vmatpush.bf16.msra.mxu0 0
        %2874 = vmatpush.bf16.msra.mxu0 0
        %2875 = vmatpush.bf16.msra.mxu0 0
        %2876 = vmatpush.bf16.msra.mxu0 %v2867
        %2877 = vmatmul.bf16.gmra.mxu0 %v2855
        %v2878 = vpop.f32.mrf.mxu0
        %v2879 = vadd.f32 0.0, %v2878
        %v2880 = vpop.f32.mrf.mxu0
        %v2881 = vadd.f32 0.0, %v2880
        %2882 = vmatmul.bf16.gmra.mxu0 %v2858
        %v2883 = vpop.f32.mrf.mxu0
        %v2884 = vadd.f32 0.0, %v2883
        %v2885 = vpop.f32.mrf.mxu0
        %v2886 = vadd.f32 0.0, %v2885
        %2887 = vmatmul.bf16.gmra.mxu0 %v2861
        %v2888 = vpop.f32.mrf.mxu0
        %v2889 = vadd.f32 0.0, %v2888
        %v2890 = vpop.f32.mrf.mxu0
        %v2891 = vadd.f32 0.0, %v2890
        %2892 = vmatmul.bf16.gmra.mxu0 %v2864
        %v2893 = vpop.f32.mrf.mxu0
        %v2894 = vadd.f32 0.0, %v2893
        %v2895 = vpop.f32.mrf.mxu0
        %v2896 = vadd.f32 0.0, %v2895
        %2897 = vdwg.mxu0
        %v2898 = vadd.f32 %v2776, %v2879
        %v2899 = vadd.f32 %v2777, %v2881
        %v2900 = vadd.f32 %v2778, %v2884
        %v2901 = vadd.f32 %v2779, %v2886
        %v2902 = vadd.f32 %v2780, %v2889
        %v2903 = vadd.f32 %v2781, %v2891
        %v2904 = vadd.f32 %v2782, %v2894
        %v2905 = vadd.f32 %v2783, %v2896
        %s2906 = scalar_lea.vmem [#allocation3], 16
        %v2907 = vld [vmem:[%s2906] sm:$0xf]
        %v2908 = vld [vmem:[%s2906 + $0x8] sm:$0xf]
        %v2909 = vld [vmem:[%s2906 + $0x10] sm:$0xf]
        %v2910 = vld [vmem:[%s2906 + $0x18] sm:$0xf]
        %v2911 = vld [vmem:[%s2906 + $0x20] sm:$0xf]
        %v2912 = vld [vmem:[%s2906 + $0x28] sm:$0xf]
        %v2913 = vld [vmem:[%s2906 + $0x30] sm:$0xf]
        %v2914 = vld [vmem:[%s2906 + $0x38] sm:$0xf]
        %s2915 = scalar_lea.vmem %s3, 24
        %v2916 = vld [vmem:[%s2915] sm:$0xf]
        %v2925 = vunpack.c.l.b16 %v2907
        %v2926 = vunpack.c.l.b16 %v2908
        %v2927 = vunpack.c.l.b16 %v2909
        %v2928 = vunpack.c.l.b16 %v2910
        %v2929 = vunpack.c.l.b16 %v2911
        %v2930 = vunpack.c.l.b16 %v2912
        %v2931 = vunpack.c.l.b16 %v2913
        %v2932 = vunpack.c.l.b16 %v2914
        %v2933 = vpack.c.b16 %v2926, %v2925
        %v2934 = vpack.c.b16 %v2928, %v2927
        %v2935 = vpack.c.b16 %v2930, %v2929
        %v2936 = vpack.c.b16 %v2932, %v2931
        %v2938 = vsel %vm2276, %v2933, 0
        %v2941 = vsel %vm2276, %v2934, 0
        %v2944 = vsel %vm2276, %v2935, 0
        %v2947 = vsel %vm2276, %v2936, 0
        %v2950 = vsel %vm2289, %v2916, 0
        %2952 = vmatpush.bf16.msra.mxu0 0
        %2953 = vmatpush.bf16.msra.mxu0 0
        %2954 = vmatpush.bf16.msra.mxu0 0
        %2955 = vmatpush.bf16.msra.mxu0 0
        %2956 = vmatpush.bf16.msra.mxu0 0
        %2957 = vmatpush.bf16.msra.mxu0 0
        %2958 = vmatpush.bf16.msra.mxu0 0
        %2959 = vmatpush.bf16.msra.mxu0 %v2950
        %2960 = vmatmul.bf16.gmra.mxu0 %v2938
        %v2961 = vpop.f32.mrf.mxu0
        %v2962 = vadd.f32 0.0, %v2961
        %v2963 = vpop.f32.mrf.mxu0
        %v2964 = vadd.f32 0.0, %v2963
        %2965 = vmatmul.bf16.gmra.mxu0 %v2941
        %v2966 = vpop.f32.mrf.mxu0
        %v2967 = vadd.f32 0.0, %v2966
        %v2968 = vpop.f32.mrf.mxu0
        %v2969 = vadd.f32 0.0, %v2968
        %2970 = vmatmul.bf16.gmra.mxu0 %v2944
        %v2971 = vpop.f32.mrf.mxu0
        %v2972 = vadd.f32 0.0, %v2971
        %v2973 = vpop.f32.mrf.mxu0
        %v2974 = vadd.f32 0.0, %v2973
        %2975 = vmatmul.bf16.gmra.mxu0 %v2947
        %v2976 = vpop.f32.mrf.mxu0
        %v2977 = vadd.f32 0.0, %v2976
        %v2978 = vpop.f32.mrf.mxu0
        %v2979 = vadd.f32 0.0, %v2978
        %2980 = vdwg.mxu0
        %v2981 = vadd.f32 %v2898, %v2962
        %v2982 = vadd.f32 %v2899, %v2964
        %v2983 = vadd.f32 %v2900, %v2967
        %v2984 = vadd.f32 %v2901, %v2969
        %v2985 = vadd.f32 %v2902, %v2972
        %v2986 = vadd.f32 %v2903, %v2974
        %v2987 = vadd.f32 %v2904, %v2977
        %v2988 = vadd.f32 %v2905, %v2979
        %v2989 = vld [vmem:[%s2906] sm:$0xf]
        %v2990 = vld [vmem:[%s2906 + $0x4] sm:$0x1]
        %v2991 = vld [vmem:[%s2906 + $0x8] sm:$0xf]
        %v2992 = vld [vmem:[%s2906 + $0xc] sm:$0x1]
        %v2993 = vld [vmem:[%s2906 + $0x10] sm:$0xf]
        %v2994 = vld [vmem:[%s2906 + $0x14] sm:$0x1]
        %v2995 = vld [vmem:[%s2906 + $0x18] sm:$0xf]
        %v2996 = vld [vmem:[%s2906 + $0x1c] sm:$0x1]
        %v2997 = vld [vmem:[%s2906 + $0x20] sm:$0xf]
        %v2998 = vld [vmem:[%s2906 + $0x24] sm:$0x1]
        %v2999 = vld [vmem:[%s2906 + $0x28] sm:$0xf]
        %v3000 = vld [vmem:[%s2906 + $0x2c] sm:$0x1]
        %v3001 = vld [vmem:[%s2906 + $0x30] sm:$0xf]
        %v3002 = vld [vmem:[%s2906 + $0x34] sm:$0x1]
        %v3003 = vld [vmem:[%s2906 + $0x38] sm:$0xf]
        %v3004 = vld [vmem:[%s2906 + $0x3c] sm:$0x1]
        %v3006 = vshrl.u32 %v2989, 16
        %v3008 = vrot.slane %v3006, 4
        %v3009 = vshll.u32 %v2989, 16
        %v3011 = vrot.slane %v3009, 5
        %v3012 = vor.u32 %v3008, %v3011
        %v3013 = vrot.slane %v3012, 4
        %v3015 = vshll.u32 %v2990, 16
        %v3017 = vrot.slane %v3015, 5
        %v3018 = vsel %vm745, %v3013, %v3017
        %v3020 = vshrl.u32 %v2991, 16
        %v3022 = vrot.slane %v3020, 4
        %v3023 = vshll.u32 %v2991, 16
        %v3025 = vrot.slane %v3023, 5
        %v3026 = vor.u32 %v3022, %v3025
        %v3027 = vrot.slane %v3026, 4
        %v3029 = vshll.u32 %v2992, 16
        %v3031 = vrot.slane %v3029, 5
        %v3032 = vsel %vm745, %v3027, %v3031
        %v3034 = vshrl.u32 %v2993, 16
        %v3036 = vrot.slane %v3034, 4
        %v3037 = vshll.u32 %v2993, 16
        %v3039 = vrot.slane %v3037, 5
        %v3040 = vor.u32 %v3036, %v3039
        %v3041 = vrot.slane %v3040, 4
        %v3043 = vshll.u32 %v2994, 16
        %v3045 = vrot.slane %v3043, 5
        %v3046 = vsel %vm745, %v3041, %v3045
        %v3048 = vshrl.u32 %v2995, 16
        %v3050 = vrot.slane %v3048, 4
        %v3051 = vshll.u32 %v2995, 16
        %v3053 = vrot.slane %v3051, 5
        %v3054 = vor.u32 %v3050, %v3053
        %v3055 = vrot.slane %v3054, 4
        %v3057 = vshll.u32 %v2996, 16
        %v3059 = vrot.slane %v3057, 5
        %v3060 = vsel %vm745, %v3055, %v3059
        %v3062 = vshrl.u32 %v2997, 16
        %v3064 = vrot.slane %v3062, 4
        %v3065 = vshll.u32 %v2997, 16
        %v3067 = vrot.slane %v3065, 5
        %v3068 = vor.u32 %v3064, %v3067
        %v3069 = vrot.slane %v3068, 4
        %v3071 = vshll.u32 %v2998, 16
        %v3073 = vrot.slane %v3071, 5
        %v3074 = vsel %vm745, %v3069, %v3073
        %v3076 = vshrl.u32 %v2999, 16
        %v3078 = vrot.slane %v3076, 4
        %v3079 = vshll.u32 %v2999, 16
        %v3081 = vrot.slane %v3079, 5
        %v3082 = vor.u32 %v3078, %v3081
        %v3083 = vrot.slane %v3082, 4
        %v3085 = vshll.u32 %v3000, 16
        %v3087 = vrot.slane %v3085, 5
        %v3088 = vsel %vm745, %v3083, %v3087
        %v3090 = vshrl.u32 %v3001, 16
        %v3092 = vrot.slane %v3090, 4
        %v3093 = vshll.u32 %v3001, 16
        %v3095 = vrot.slane %v3093, 5
        %v3096 = vor.u32 %v3092, %v3095
        %v3097 = vrot.slane %v3096, 4
        %v3099 = vshll.u32 %v3002, 16
        %v3101 = vrot.slane %v3099, 5
        %v3102 = vsel %vm745, %v3097, %v3101
        %v3104 = vshrl.u32 %v3003, 16
        %v3106 = vrot.slane %v3104, 4
        %v3107 = vshll.u32 %v3003, 16
        %v3109 = vrot.slane %v3107, 5
        %v3110 = vor.u32 %v3106, %v3109
        %v3111 = vrot.slane %v3110, 4
        %v3113 = vshll.u32 %v3004, 16
        %v3115 = vrot.slane %v3113, 5
        %v3116 = vsel %vm745, %v3111, %v3115
        %s3117 = scalar_lea.vmem %s3, 28
        %v3118 = vld [vmem:[%s3117] sm:$0xf]
        %v3119 = vunpack.c.l.b16 %v3018
        %v3120 = vunpack.c.l.b16 %v3032
        %v3121 = vunpack.c.l.b16 %v3046
        %v3122 = vunpack.c.l.b16 %v3060
        %v3123 = vunpack.c.l.b16 %v3074
        %v3124 = vunpack.c.l.b16 %v3088
        %v3125 = vunpack.c.l.b16 %v3102
        %v3126 = vunpack.c.l.b16 %v3116
        %v3127 = vpack.c.b16 %v3120, %v3119
        %v3128 = vpack.c.b16 %v3122, %v3121
        %v3129 = vpack.c.b16 %v3124, %v3123
        %v3130 = vpack.c.b16 %v3126, %v3125
        %v3132 = vsel %vm2276, %v3127, 0
        %v3135 = vsel %vm2276, %v3128, 0
        %v3138 = vsel %vm2276, %v3129, 0
        %v3141 = vsel %vm2276, %v3130, 0
        %v3144 = vsel %vm2289, %v3118, 0
        %3146 = vmatpush.bf16.msra.mxu0 0
        %3147 = vmatpush.bf16.msra.mxu0 0
        %3148 = vmatpush.bf16.msra.mxu0 0
        %3149 = vmatpush.bf16.msra.mxu0 0
        %3150 = vmatpush.bf16.msra.mxu0 0
        %3151 = vmatpush.bf16.msra.mxu0 0
        %3152 = vmatpush.bf16.msra.mxu0 0
        %3153 = vmatpush.bf16.msra.mxu0 %v3144
        %3154 = vmatmul.bf16.gmra.mxu0 %v3132
        %v3155 = vpop.f32.mrf.mxu0
        %v3156 = vadd.f32 0.0, %v3155
        %v3157 = vpop.f32.mrf.mxu0
        %v3158 = vadd.f32 0.0, %v3157
        %3159 = vmatmul.bf16.gmra.mxu0 %v3135
        %v3160 = vpop.f32.mrf.mxu0
        %v3161 = vadd.f32 0.0, %v3160
        %v3162 = vpop.f32.mrf.mxu0
        %v3163 = vadd.f32 0.0, %v3162
        %3164 = vmatmul.bf16.gmra.mxu0 %v3138
        %v3165 = vpop.f32.mrf.mxu0
        %v3166 = vadd.f32 0.0, %v3165
        %v3167 = vpop.f32.mrf.mxu0
        %v3168 = vadd.f32 0.0, %v3167
        %3169 = vmatmul.bf16.gmra.mxu0 %v3141
        %v3170 = vpop.f32.mrf.mxu0
        %v3171 = vadd.f32 0.0, %v3170
        %v3172 = vpop.f32.mrf.mxu0
        %v3173 = vadd.f32 0.0, %v3172
        %3174 = vdwg.mxu0
        %v3175 = vadd.f32 %v2981, %v3156
        %v3176 = vadd.f32 %v2982, %v3158
        %v3177 = vadd.f32 %v2983, %v3161
        %v3178 = vadd.f32 %v2984, %v3163
        %v3179 = vadd.f32 %v2985, %v3166
        %v3180 = vadd.f32 %v2986, %v3168
        %v3181 = vadd.f32 %v2987, %v3171
        %v3182 = vadd.f32 %v2988, %v3173
        %v3183 = vld [vmem:[%s2906] sm:$0xe]
        %v3184 = vld [vmem:[%s2906 + $0x8] sm:$0xe]
        %v3185 = vld [vmem:[%s2906 + $0x10] sm:$0xe]
        %v3186 = vld [vmem:[%s2906 + $0x18] sm:$0xe]
        %v3187 = vld [vmem:[%s2906 + $0x20] sm:$0xe]
        %v3188 = vld [vmem:[%s2906 + $0x28] sm:$0xe]
        %v3189 = vld [vmem:[%s2906 + $0x30] sm:$0xe]
        %v3190 = vld [vmem:[%s2906 + $0x38] sm:$0xe]
        %v3207 = vrot.slane %v3183, 5
        %v3208 = vrot.slane %v3207, 4
        %v3209 = vrot.slane %v2990, 5
        %v3210 = vsel %vm1008, %v3208, %v3209
        %v3211 = vrot.slane %v3184, 5
        %v3212 = vrot.slane %v3211, 4
        %v3213 = vrot.slane %v2992, 5
        %v3214 = vsel %vm1008, %v3212, %v3213
        %v3215 = vrot.slane %v3185, 5
        %v3216 = vrot.slane %v3215, 4
        %v3217 = vrot.slane %v2994, 5
        %v3218 = vsel %vm1008, %v3216, %v3217
        %v3219 = vrot.slane %v3186, 5
        %v3220 = vrot.slane %v3219, 4
        %v3221 = vrot.slane %v2996, 5
        %v3222 = vsel %vm1008, %v3220, %v3221
        %v3223 = vrot.slane %v3187, 5
        %v3224 = vrot.slane %v3223, 4
        %v3225 = vrot.slane %v2998, 5
        %v3226 = vsel %vm1008, %v3224, %v3225
        %v3227 = vrot.slane %v3188, 5
        %v3228 = vrot.slane %v3227, 4
        %v3229 = vrot.slane %v3000, 5
        %v3230 = vsel %vm1008, %v3228, %v3229
        %v3231 = vrot.slane %v3189, 5
        %v3232 = vrot.slane %v3231, 4
        %v3233 = vrot.slane %v3002, 5
        %v3234 = vsel %vm1008, %v3232, %v3233
        %v3235 = vrot.slane %v3190, 5
        %v3236 = vrot.slane %v3235, 4
        %v3237 = vrot.slane %v3004, 5
        %v3238 = vsel %vm1008, %v3236, %v3237
        %s3239 = scalar_lea.vmem %s3, 32
        %v3240 = vld [vmem:[%s3239] sm:$0xf]
        %v3241 = vunpack.c.l.b16 %v3210
        %v3242 = vunpack.c.l.b16 %v3214
        %v3243 = vunpack.c.l.b16 %v3218
        %v3244 = vunpack.c.l.b16 %v3222
        %v3245 = vunpack.c.l.b16 %v3226
        %v3246 = vunpack.c.l.b16 %v3230
        %v3247 = vunpack.c.l.b16 %v3234
        %v3248 = vunpack.c.l.b16 %v3238
        %v3249 = vpack.c.b16 %v3242, %v3241
        %v3250 = vpack.c.b16 %v3244, %v3243
        %v3251 = vpack.c.b16 %v3246, %v3245
        %v3252 = vpack.c.b16 %v3248, %v3247
        %v3254 = vsel %vm2276, %v3249, 0
        %v3257 = vsel %vm2276, %v3250, 0
        %v3260 = vsel %vm2276, %v3251, 0
        %v3263 = vsel %vm2276, %v3252, 0
        %v3266 = vsel %vm2289, %v3240, 0
        %3268 = vmatpush.bf16.msra.mxu0 0
        %3269 = vmatpush.bf16.msra.mxu0 0
        %3270 = vmatpush.bf16.msra.mxu0 0
        %3271 = vmatpush.bf16.msra.mxu0 0
        %3272 = vmatpush.bf16.msra.mxu0 0
        %3273 = vmatpush.bf16.msra.mxu0 0
        %3274 = vmatpush.bf16.msra.mxu0 0
        %3275 = vmatpush.bf16.msra.mxu0 %v3266
        %3276 = vmatmul.bf16.gmra.mxu0 %v3254
        %v3277 = vpop.f32.mrf.mxu0
        %v3278 = vadd.f32 0.0, %v3277
        %v3279 = vpop.f32.mrf.mxu0
        %v3280 = vadd.f32 0.0, %v3279
        %3281 = vmatmul.bf16.gmra.mxu0 %v3257
        %v3282 = vpop.f32.mrf.mxu0
        %v3283 = vadd.f32 0.0, %v3282
        %v3284 = vpop.f32.mrf.mxu0
        %v3285 = vadd.f32 0.0, %v3284
        %3286 = vmatmul.bf16.gmra.mxu0 %v3260
        %v3287 = vpop.f32.mrf.mxu0
        %v3288 = vadd.f32 0.0, %v3287
        %v3289 = vpop.f32.mrf.mxu0
        %v3290 = vadd.f32 0.0, %v3289
        %3291 = vmatmul.bf16.gmra.mxu0 %v3263
        %v3292 = vpop.f32.mrf.mxu0
        %v3293 = vadd.f32 0.0, %v3292
        %v3294 = vpop.f32.mrf.mxu0
        %v3295 = vadd.f32 0.0, %v3294
        %3296 = vdwg.mxu0
        %v3297 = vadd.f32 %v3175, %v3278
        %v3298 = vadd.f32 %v3176, %v3280
        %v3299 = vadd.f32 %v3177, %v3283
        %v3300 = vadd.f32 %v3178, %v3285
        %v3301 = vadd.f32 %v3179, %v3288
        %v3302 = vadd.f32 %v3180, %v3290
        %v3303 = vadd.f32 %v3181, %v3293
        %v3304 = vadd.f32 %v3182, %v3295
        %v3305 = vld [vmem:[%s4] sm:$0x1]
        %v3307 = vperm.slane %v3305, 0
        %v3309 = vadd.f32 %v3297, %v3307
        %v3310 = vadd.f32 %v3298, %v3307
        %v3311 = vadd.f32 %v3299, %v3307
        %v3312 = vadd.f32 %v3300, %v3307
        %v3313 = vadd.f32 %v3301, %v3307
        %v3314 = vadd.f32 %v3302, %v3307
        %v3315 = vadd.f32 %v3303, %v3307
        %v3316 = vadd.f32 %v3304, %v3307
        %v3317 = vmax.f32 %v3309, 0.0
        %v3318 = vmax.f32 %v3310, 0.0
        %v3319 = vmax.f32 %v3311, 0.0
        %v3320 = vmax.f32 %v3312, 0.0
        %v3321 = vmax.f32 %v3313, 0.0
        %v3322 = vmax.f32 %v3314, 0.0
        %v3323 = vmax.f32 %v3315, 0.0
        %v3324 = vmax.f32 %v3316, 0.0
        %3325 = vxpose.xlu0.b32.start [1/16] %v3317, 128
        %3326 = vxpose.xlu0.b32.cont [2/16] %v3318, 128
        %3327 = vxpose.xlu0.b32.cont [3/16] %v3319, 128
        %3328 = vxpose.xlu0.b32.cont [4/16] %v3320, 128
        %3329 = vxpose.xlu0.b32.cont [5/16] %v3321, 128
        %3330 = vxpose.xlu0.b32.cont [6/16] %v3322, 128
        %3331 = vxpose.xlu0.b32.cont [7/16] %v3323, 128
        %3332 = vxpose.xlu0.b32.cont [8/16] %v3324, 128
        %3333 = vxpose.xlu0.b32.cont [9/16] 0.0, 128
        %3334 = vxpose.xlu0.b32.cont [10/16] 0.0, 128
        %3335 = vxpose.xlu0.b32.cont [11/16] 0.0, 128
        %3336 = vxpose.xlu0.b32.cont [12/16] 0.0, 128
        %3337 = vxpose.xlu0.b32.cont [13/16] 0.0, 128
        %3338 = vxpose.xlu0.b32.cont [14/16] 0.0, 128
        %3339 = vxpose.xlu0.b32.cont [15/16] 0.0, 128
        %3340 = vxpose.xlu0.b32.end [16/16] 0.0, 128
        %v3341 = vpop.trf.xlu0
        %v3342 = vpop.trf.xlu0
        %v3343 = vpop.trf.xlu0
        %v3344 = vpop.trf.xlu0
        %v3345 = vpop.trf.xlu0
        %v3346 = vpop.trf.xlu0
        %v3347 = vpop.trf.xlu0
        %v3348 = vpop.trf.xlu0
        %v3349 = vpop.trf.xlu0
        %v3350 = vpop.trf.xlu0
        %v3351 = vpop.trf.xlu0
        %v3352 = vpop.trf.xlu0
        %v3353 = vpop.trf.xlu0
        %v3354 = vpop.trf.xlu0
        %v3355 = vpop.trf.xlu0
        %v3356 = vpop.trf.xlu0
        %vm3357 = vcmask 523264
        %3358 = vst.msk [vmem:[%s390] sm:$0xff] %vm3357, %v3341
        %s3359 = sand.u32 %s137, 1
        %s3360 = scalar_lea.sflag [#allocation6], %s3359
        %s3361 = sand.u32 %s137, 1
        %s3362 = smul.addr %s3361, 8
        %s3363 = scalar_lea.vmem [#allocation5], %s3362
        // Predicated region
        $region82: #{tpu_custom_call.1} parent=76 // pred_check
          %p3364 = pneg %p147
        $region83: #{tpu_custom_call.1} parent=76 // pred_check_branch
          %3366 = sbr.rel (%p3364) target = $region85
        $region84: #{tpu_custom_call.1} parent=76 // pred_region
          %3368 = vsyncadd %s3360, 0
          %s3369 = smul.addr %s19, 8
          %s3370 = scalar_lea.hbm %s5, %s3369
          %s3372 = sshll.u32 %s3363, 4
          %s3373 = int_to_ptr.vmem [resolvable:$true] %s3372
          %s3374 = sshll.u32 %s3370, 4
          %s3375 = int_to_ptr.hbm [resolvable:$true] %s3374
          %3377 = dma.vmem_to_hbm [thread:$0]  %s3373, 128, %s3375, %s3360
        $region85: #{tpu_custom_call.1} parent=76 // pred_fallthru
          _
      $region77: #{tpu_custom_call.1} parent=5 // pred_fallthru
        _
      %p3378 = scmp.le.s32.totalorder 2, %s14
      // Predicated region
      $region86: #{tpu_custom_call.1} parent=5 // pred_check
        %p3379 = pneg %p3378
      $region87: #{tpu_custom_call.1} parent=5 // pred_check_branch
        %3381 = sbr.rel (%p3379) target = $region89
      $region88: #{tpu_custom_call.1} parent=5 // pred_region
        %s3382 = ssub.s32 %s14, 2
        // Predicated region
        $region90: #{tpu_custom_call.1} parent=88 // pred_check
          %p3383 = pneg %p153
        $region91: #{tpu_custom_call.1} parent=88 // pred_check_branch
          %3385 = sbr.rel (%p3383) target = $region93
        $region92: #{tpu_custom_call.1} parent=88 // pred_region
          %s3386 = sand.u32 %s138, 1
          %s3387 = scalar_lea.sflag [#allocation6], %s3386
          %s3388 = sand.u32 %s138, 1
          %s3389 = smul.addr %s3388, 8
          %s3390 = scalar_lea.vmem [#allocation5], %s3389
          %3392 = dma.done %s3387, 128
        $region93: #{tpu_custom_call.1} parent=88 // pred_fallthru
          _
      $region89: #{tpu_custom_call.1} parent=5 // pred_fallthru
        _
    $region6: #{tpu_custom_call.1} parent=1 // loop_footer
      %s18 = sadd.s32 1, %s14
    $region7: #{tpu_custom_call.1} parent=1 // loop_footer_branch
      %13 = sbr.rel target = $region3
    $region8: #{tpu_custom_call.1} parent=1 // loop_exit
      _
    %3393 = vsyncpa [#allocation6], 1
    %s3394 = scalar_lea.sflag [#allocation6], 1
    %3395 = vsyncpa %s3394, 1

</llo_original>
